<compile_context>
chip_gen: v5e
topology: v5e:2x2
jax: 0.10.0
libtpu: 0.0.40
codegen_flags: <defaults>
</compile_context>

<pallas_src>
import jax
import jax.numpy as jnp
import numpy as np
from jax.experimental import pallas as pl
from jax.experimental.pallas import tpu as pltpu

TAU = 2.0
V_TH = 1.0
BN_EPS = 1e-5
_WPAD = 8   # left/right halo width in the VMEM scratch (8 keeps the interior
            # store sublane-aligned; only 1 zero column is actually used)


# ----------------------------- Pallas kernel -------------------------------

def _conv3x3_from_scratch(xp_ref, w_ref, B, H, W, Cin, Cout):
    """SAME 3x3 conv from a zero-halo VMEM scratch via 9 shifted matmuls.

    xp_ref: (B, H+2, W+2*_WPAD, Cin) scratch; image interior lives at rows
            1..H and cols _WPAD.._WPAD+W-1, everything else is zero.
    w_ref:  (9, Cin, Cout) weights (BN scale pre-folded), tap order (kh, kw).
    Returns (B*H*W, Cout) f32 accumulator.
    """
    xp = xp_ref[...]
    acc = jnp.zeros((B * H * W, Cout), jnp.float32)
    # NOTE: intentionally 9 thin matmuls (see header) — proven to lower cleanly.
    for k in range(9):
        dh, dw = k // 3, k % 3
        patch = xp[:, dh:dh + H, (_WPAD - 1) + dw:(_WPAD - 1) + dw + W, :]
        acc = acc + jnp.dot(patch.reshape(B * H * W, Cin), w_ref[k],
                            preferred_element_type=jnp.float32)
    return acc


def lif_resblock_kernel(x_ref, w1_ref, b1_ref, wd_ref, bd_ref, w2_ref, b2_ref,
                        o_ref, xp_s, sp_s):
    # x_ref: (B, H, W, Cin) NHWC block; o_ref: (B, H, W, Cout)
    # xp_s / sp_s: zero-halo VMEM scratch for conv1 / conv2 inputs.
    B, H, W, Cin = x_ref.shape
    Cout = wd_ref.shape[1]
    M = B * H * W

    x = x_ref[...]

    # --- build the zero-halo padded input in VMEM (no HBM jnp.pad round trip)
    xp_s[...] = jnp.zeros_like(xp_s)
    xp_s[:, 1:1 + H, _WPAD:_WPAD + W, :] = x          # aligned interior store

    # --- downsample path: 1x1 conv (BN scale folded into wd) + bias
    xm = x.reshape(M, Cin)
    ident = jnp.dot(xm, wd_ref[...],
                    preferred_element_type=jnp.float32) + bd_ref[...]

    # --- conv1 + bn1 (folded) + lif1 (fresh membrane, v0 = 0)
    c1 = _conv3x3_from_scratch(xp_s, w1_ref, B, H, W, Cin, Cout) + b1_ref[...]
    s1 = (c1 * (1.0 / TAU) >= V_TH).astype(jnp.float32)

    # --- pad lif1 spikes into the second VMEM halo buffer (s1 never hits HBM)
    sp_s[...] = jnp.zeros_like(sp_s)
    sp_s[:, 1:1 + H, _WPAD:_WPAD + W, :] = s1.reshape(B, H, W, Cout)

    # --- conv2 + bn2 (folded) + lif2 (first application)
    c2 = _conv3x3_from_scratch(sp_s, w2_ref, B, H, W, Cout, Cout) + b2_ref[...]
    v = c2 * (1.0 / TAU)
    s2 = (v >= V_TH).astype(jnp.float32)
    v = v * (1.0 - s2)                                # hard reset, v_reset = 0

    # --- residual add, then lif2 again (membrane state carries over)
    z = s2 + ident
    v = v + (z - v) * (1.0 / TAU)
    out = (v >= V_TH).astype(jnp.float32)

    # TODO(synk): a lane-dense (B, H, W*Cout) store would use full 128-lane
    # stores, but the required sublane->lane merge reshape is not reliably
    # lowered for Cout=8; output here is only ~16 KiB so the masked store is
    # not the bottleneck.
    o_ref[...] = out.reshape(B, H, W, Cout)


# ------------------------------- wrapper ------------------------------------

def _fold_bn(w, gamma, beta, mean, var):
    """Fold inference-mode BN into conv weight (scale) + separate bias row."""
    scale = (gamma / jnp.sqrt(var + BN_EPS)).astype(jnp.float32)
    bias = (beta - mean * scale).astype(jnp.float32)
    return (w * scale).astype(jnp.float32), bias.reshape(1, -1)


def lif_resblock_pallas(x_nchw, p, *, b_tile=None):
    x = jnp.transpose(x_nchw, (0, 2, 3, 1)).astype(jnp.float32)   # NCHW -> NHWC
    N, H, W, Cin = x.shape
    Cout = p["w1"].shape[0]

    if b_tile is None:
        # batch images per grid step, but keep >= 2 grid steps so both v7x
        # TensorCores get work, and cap the per-step footprint for 64 MiB VMEM.
        per_img = 4 * ((H + 2) * (W + 2 * _WPAD) * (Cin + Cout)
                       + 2 * H * W * (Cin + Cout))
        cap = max(1, (8 * 1024 * 1024) // per_img)
        b_tile = min(max(1, N // 2), cap)
        while N % b_tile:
            b_tile -= 1
    n_steps = N // b_tile

    # PyTorch OIHW -> (kh*kw, Cin, Cout); BN scale folded into the weights.
    w1 = jnp.transpose(p["w1"], (2, 3, 1, 0)).reshape(9, Cin, Cout)
    w2 = jnp.transpose(p["w2"], (2, 3, 1, 0)).reshape(9, Cout, Cout)
    wd = jnp.transpose(p["wd"], (2, 3, 1, 0)).reshape(Cin, Cout)
    w1, b1 = _fold_bn(w1, *p["bn1"])
    w2, b2 = _fold_bn(w2, *p["bn2"])
    wd, bd = _fold_bn(wd, *p["bnd"])

    def full_spec(shape):
        return pl.BlockSpec(shape, lambda n: (0,) * len(shape))

    scratch_shapes = [
        pltpu.VMEM((b_tile, H + 2, W + 2 * _WPAD, Cin), jnp.float32),
        pltpu.VMEM((b_tile, H + 2, W + 2 * _WPAD, Cout), jnp.float32),
    ]

    # explicit VMEM budget (sized so larger problems stay v7x-safe):
    need = 4 * (2 * b_tile * H * W * (Cin + Cout)                      # dbl-buffered I/O
                + b_tile * (H + 2) * (W + 2 * _WPAD) * (Cin + Cout)    # halo scratch
                + 2 * (9 * Cin * Cout + 9 * Cout * Cout + Cin * Cout + 3 * Cout))
    vmem_limit = int(min(48 * 1024 * 1024, max(16 * 1024 * 1024, 4 * need)))

    out = pl.pallas_call(
        lif_resblock_kernel,
        out_shape=jax.ShapeDtypeStruct((N, H, W, Cout), jnp.float32),
        grid=(n_steps,),
        in_specs=[
            pl.BlockSpec((b_tile, H, W, Cin), lambda n: (n, 0, 0, 0)),
            full_spec((9, Cin, Cout)),
            full_spec((1, Cout)),
            full_spec((Cin, Cout)),
            full_spec((1, Cout)),
            full_spec((9, Cout, Cout)),
            full_spec((1, Cout)),
        ],
        out_specs=pl.BlockSpec((b_tile, H, W, Cout), lambda n: (n, 0, 0, 0)),
        scratch_shapes=scratch_shapes,
        compiler_params=pltpu.CompilerParams(
            dimension_semantics=("parallel",),
            vmem_limit_bytes=vmem_limit,
        ),
    )(x, w1, b1, wd, bd, w2, b2)

    return jnp.transpose(out, (0, 3, 1, 2))           # NHWC -> NCHW


# --------------------------- pure-JAX reference -----------------------------

def _lif_step(x, v):
    v = v + (x - v) / TAU
    s = (v >= V_TH).astype(x.dtype)
    v = v * (1.0 - s)
    return s, v


def reference_forward(x_nchw, p):
    x = jnp.transpose(x_nchw, (0, 2, 3, 1)).astype(jnp.float32)
    dn = ("NHWC", "HWIO", "NHWC")
    conv = lambda a, w: jax.lax.conv_general_dilated(
        a, w, (1, 1), "SAME", dimension_numbers=dn)
    bn = lambda a, g, b, m, v: (a - m) / jnp.sqrt(v + BN_EPS) * g + b
    w1 = jnp.transpose(p["w1"], (2, 3, 1, 0))
    w2 = jnp.transpose(p["w2"], (2, 3, 1, 0))
    wd = jnp.transpose(p["wd"], (2, 3, 1, 0))

    ident = bn(conv(x, wd), *p["bnd"])
    out = bn(conv(x, w1), *p["bn1"])
    s1, _ = _lif_step(out, jnp.zeros_like(out))
    out = bn(conv(s1, w2), *p["bn2"])
    s2, v2 = _lif_step(out, jnp.zeros_like(out))
    s3, _ = _lif_step(s2 + ident, v2)
    return jnp.transpose(s3, (0, 3, 1, 2))


# ---------------------------------- main ------------------------------------

if __name__ == "__main__":
    N, Cin, Cout, H, W = 2, 4, 8, 16, 16
    key = jax.random.PRNGKey(0)
    ks = jax.random.split(key, 8)

    x = jax.random.normal(ks[0], (N, Cin, H, W), jnp.float32)

    def bn_params(k):
        k1, k2, k3, k4 = jax.random.split(k, 4)
        gamma = jax.random.uniform(k1, (Cout,), minval=0.8, maxval=1.6)
        beta = 0.1 * jax.random.normal(k2, (Cout,))
        mean = 0.1 * jax.random.normal(k3, (Cout,))
        var = jax.random.uniform(k4, (Cout,), minval=0.5, maxval=1.5)
        return (gamma.astype(jnp.float32), beta.astype(jnp.float32),
                mean.astype(jnp.float32), var.astype(jnp.float32))

    params = {
        "w1": jax.random.normal(ks[1], (Cout, Cin, 3, 3), jnp.float32) / np.sqrt(Cin * 9),
        "w2": jax.random.normal(ks[2], (Cout, Cout, 3, 3), jnp.float32) / np.sqrt(Cout * 9),
        "wd": jax.random.normal(ks[3], (Cout, Cin, 1, 1), jnp.float32) / np.sqrt(Cin),
        "bn1": bn_params(ks[4]),
        "bn2": bn_params(ks[5]),
        "bnd": bn_params(ks[6]),
    }

    out = jax.block_until_ready(lif_resblock_pallas(x, params))
    ref = jax.block_until_ready(reference_forward(x, params))

    assert out.shape == (N, Cout, H, W), out.shape
    # spikes are {0,1}: mean abs diff == fraction of differing elements
    mismatch = float(jnp.mean(jnp.abs(out - ref)))
    assert mismatch < 1e-2, f"spike mismatch fraction {mismatch}"
    print("KERNEL_OK")
</pallas_src>

<mosaic_0001>
module attributes {stable_mosaic.version = 11 : i64} {
  func.func @lif_resblock_kernel(%arg0: i32, %arg1: memref<1x16x16x4xf32, #tpu.memory_space<vmem>>, %arg2: memref<9x4x8xf32, #tpu.memory_space<vmem>>, %arg3: memref<1x8xf32, #tpu.memory_space<vmem>>, %arg4: memref<4x8xf32, #tpu.memory_space<vmem>>, %arg5: memref<1x8xf32, #tpu.memory_space<vmem>>, %arg6: memref<9x8x8xf32, #tpu.memory_space<vmem>>, %arg7: memref<1x8xf32, #tpu.memory_space<vmem>>, %arg8: memref<1x16x16x8xf32, #tpu.memory_space<vmem>>, %arg9: memref<1x18x32x4xf32, #tpu.memory_space<vmem>>, %arg10: memref<1x18x32x8xf32, #tpu.memory_space<vmem>>) attributes {dimension_semantics = [#tpu.dimension_semantics<parallel>], iteration_bounds = array<i64: 2>, scalar_prefetch = 0 : i64, scratch_operands = 2 : i64, tpu.core_type = #tpu.core_type<tc>, window_params = [{transform_indices = @transform_0, window_bounds = array<i64: 1, 16, 16, 4>}, {pipeline_mode = #tpu.pipeline_mode<synchronous>, transform_indices = @transform_1, window_bounds = array<i64: 9, 4, 8>}, {pipeline_mode = #tpu.pipeline_mode<synchronous>, transform_indices = @transform_2, window_bounds = array<i64: 1, 8>}, {pipeline_mode = #tpu.pipeline_mode<synchronous>, transform_indices = @transform_3, window_bounds = array<i64: 4, 8>}, {pipeline_mode = #tpu.pipeline_mode<synchronous>, transform_indices = @transform_4, window_bounds = array<i64: 1, 8>}, {pipeline_mode = #tpu.pipeline_mode<synchronous>, transform_indices = @transform_5, window_bounds = array<i64: 9, 8, 8>}, {pipeline_mode = #tpu.pipeline_mode<synchronous>, transform_indices = @transform_6, window_bounds = array<i64: 1, 8>}, {transform_indices = @transform_7, window_bounds = array<i64: 1, 16, 16, 8>}]} {
    %c0 = arith.constant 0 : index
    %c0_0 = arith.constant 0 : index
    %c0_1 = arith.constant 0 : index
    %c0_2 = arith.constant 0 : index
    %0 = vector.load %arg1[%c0, %c0_0, %c0_1, %c0_2] : memref<1x16x16x4xf32, #tpu.memory_space<vmem>>, vector<1x16x16x4xf32>
    %cst = arith.constant 0.000000e+00 : f32
    %1 = vector.broadcast %cst : f32 to vector<1x18x32x4xf32>
    %c0_3 = arith.constant 0 : index
    %c0_4 = arith.constant 0 : index
    %c0_5 = arith.constant 0 : index
    %c0_6 = arith.constant 0 : index
    %2 = vector.load %arg9[%c0_3, %c0_4, %c0_5, %c0_6] : memref<1x18x32x4xf32, #tpu.memory_space<vmem>>, vector<1x18x32x4xf32>
    tpu.vector_store %arg9[%c0_3, %c0_4, %c0_5, %c0_6], %1 {strides = array<i32>} : memref<1x18x32x4xf32, #tpu.memory_space<vmem>>, vector<1x18x32x4xf32>,
    %c0_7 = arith.constant 0 : index
    %c1 = arith.constant 1 : index
    %c8 = arith.constant 8 : index
    %c0_8 = arith.constant 0 : index
    %3 = vector.load %arg9[%c0_7, %c1, %c8, %c0_8] : memref<1x18x32x4xf32, #tpu.memory_space<vmem>>, vector<1x16x16x4xf32>
    tpu.vector_store %arg9[%c0_7, %c1, %c8, %c0_8], %0 {strides = array<i32>} : memref<1x18x32x4xf32, #tpu.memory_space<vmem>>, vector<1x16x16x4xf32>,
    %4 = vector.shape_cast %0 : vector<1x16x16x4xf32> to vector<256x4xf32>
    %c0_9 = arith.constant 0 : index
    %c0_10 = arith.constant 0 : index
    %5 = vector.load %arg4[%c0_9, %c0_10] : memref<4x8xf32, #tpu.memory_space<vmem>>, vector<4x8xf32>
    %cst_11 = arith.constant dense<0.000000e+00> : vector<256x8xf32>
    %6 = tpu.matmul %4, %5, %cst_11 {dimension_numbers = #tpu.dot_dimension_numbers<[1], [0], [0], [1], [0, 0, 1, 1], [], []>} : vector<256x4xf32>, vector<4x8xf32>, vector<256x8xf32> -> vector<256x8xf32>
    %c0_12 = arith.constant 0 : index
    %c0_13 = arith.constant 0 : index
    %7 = vector.load %arg5[%c0_12, %c0_13] : memref<1x8xf32, #tpu.memory_space<vmem>>, vector<1x8xf32>
    %8 = vector.broadcast %7 : vector<1x8xf32> to vector<256x8xf32>
    %9 = arith.addf %6, %8 : vector<256x8xf32>
    %c0_14 = arith.constant 0 : index
    %c0_15 = arith.constant 0 : index
    %c0_16 = arith.constant 0 : index
    %c0_17 = arith.constant 0 : index
    %10 = vector.load %arg9[%c0_14, %c0_15, %c0_16, %c0_17] : memref<1x18x32x4xf32, #tpu.memory_space<vmem>>, vector<1x18x32x4xf32>
    %cst_18 = arith.constant 0.000000e+00 : f32
    %11 = vector.broadcast %cst_18 : f32 to vector<256x8xf32>
    %12 = vector.extract_strided_slice %10 {offsets = [0, 0, 7, 0], sizes = [1, 16, 16, 4], strides = [1, 1, 1, 1]} : vector<1x18x32x4xf32> to vector<1x16x16x4xf32>
    %13 = vector.shape_cast %12 : vector<1x16x16x4xf32> to vector<256x4xf32>
    %c0_19 = arith.constant 0 : index
    %c0_20 = arith.constant 0 : index
    %c0_21 = arith.constant 0 : index
    %14 = vector.load %arg2[%c0_19, %c0_20, %c0_21] : memref<9x4x8xf32, #tpu.memory_space<vmem>>, vector<1x4x8xf32>
    %15 = vector.shape_cast %14 : vector<1x4x8xf32> to vector<4x8xf32>
    %cst_22 = arith.constant dense<0.000000e+00> : vector<256x8xf32>
    %16 = tpu.matmul %13, %15, %cst_22 {dimension_numbers = #tpu.dot_dimension_numbers<[1], [0], [0], [1], [0, 0, 1, 1], [], []>} : vector<256x4xf32>, vector<4x8xf32>, vector<256x8xf32> -> vector<256x8xf32>
    %17 = arith.addf %11, %16 : vector<256x8xf32>
    %18 = vector.extract_strided_slice %10 {offsets = [0, 0, 8, 0], sizes = [1, 16, 16, 4], strides = [1, 1, 1, 1]} : vector<1x18x32x4xf32> to vector<1x16x16x4xf32>
    %19 = vector.shape_cast %18 : vector<1x16x16x4xf32> to vector<256x4xf32>
    %c1_23 = arith.constant 1 : index
    %c0_24 = arith.constant 0 : index
    %c0_25 = arith.constant 0 : index
    %20 = vector.load %arg2[%c1_23, %c0_24, %c0_25] : memref<9x4x8xf32, #tpu.memory_space<vmem>>, vector<1x4x8xf32>
    %21 = vector.shape_cast %20 : vector<1x4x8xf32> to vector<4x8xf32>
    %cst_26 = arith.constant dense<0.000000e+00> : vector<256x8xf32>
    %22 = tpu.matmul %19, %21, %cst_26 {dimension_numbers = #tpu.dot_dimension_numbers<[1], [0], [0], [1], [0, 0, 1, 1], [], []>} : vector<256x4xf32>, vector<4x8xf32>, vector<256x8xf32> -> vector<256x8xf32>
    %23 = arith.addf %17, %22 : vector<256x8xf32>
    %24 = vector.extract_strided_slice %10 {offsets = [0, 0, 9, 0], sizes = [1, 16, 16, 4], strides = [1, 1, 1, 1]} : vector<1x18x32x4xf32> to vector<1x16x16x4xf32>
    %25 = vector.shape_cast %24 : vector<1x16x16x4xf32> to vector<256x4xf32>
    %c2 = arith.constant 2 : index
    %c0_27 = arith.constant 0 : index
    %c0_28 = arith.constant 0 : index
    %26 = vector.load %arg2[%c2, %c0_27, %c0_28] : memref<9x4x8xf32, #tpu.memory_space<vmem>>, vector<1x4x8xf32>
    %27 = vector.shape_cast %26 : vector<1x4x8xf32> to vector<4x8xf32>
    %cst_29 = arith.constant dense<0.000000e+00> : vector<256x8xf32>
    %28 = tpu.matmul %25, %27, %cst_29 {dimension_numbers = #tpu.dot_dimension_numbers<[1], [0], [0], [1], [0, 0, 1, 1], [], []>} : vector<256x4xf32>, vector<4x8xf32>, vector<256x8xf32> -> vector<256x8xf32>
    %29 = arith.addf %23, %28 : vector<256x8xf32>
    %30 = vector.extract_strided_slice %10 {offsets = [0, 1, 7, 0], sizes = [1, 16, 16, 4], strides = [1, 1, 1, 1]} : vector<1x18x32x4xf32> to vector<1x16x16x4xf32>
    %31 = vector.shape_cast %30 : vector<1x16x16x4xf32> to vector<256x4xf32>
    %c3 = arith.constant 3 : index
    %c0_30 = arith.constant 0 : index
    %c0_31 = arith.constant 0 : index
    %32 = vector.load %arg2[%c3, %c0_30, %c0_31] : memref<9x4x8xf32, #tpu.memory_space<vmem>>, vector<1x4x8xf32>
    %33 = vector.shape_cast %32 : vector<1x4x8xf32> to vector<4x8xf32>
    %cst_32 = arith.constant dense<0.000000e+00> : vector<256x8xf32>
    %34 = tpu.matmul %31, %33, %cst_32 {dimension_numbers = #tpu.dot_dimension_numbers<[1], [0], [0], [1], [0, 0, 1, 1], [], []>} : vector<256x4xf32>, vector<4x8xf32>, vector<256x8xf32> -> vector<256x8xf32>
    %35 = arith.addf %29, %34 : vector<256x8xf32>
    %36 = vector.extract_strided_slice %10 {offsets = [0, 1, 8, 0], sizes = [1, 16, 16, 4], strides = [1, 1, 1, 1]} : vector<1x18x32x4xf32> to vector<1x16x16x4xf32>
    %37 = vector.shape_cast %36 : vector<1x16x16x4xf32> to vector<256x4xf32>
    %c4 = arith.constant 4 : index
    %c0_33 = arith.constant 0 : index
    %c0_34 = arith.constant 0 : index
    %38 = vector.load %arg2[%c4, %c0_33, %c0_34] : memref<9x4x8xf32, #tpu.memory_space<vmem>>, vector<1x4x8xf32>
    %39 = vector.shape_cast %38 : vector<1x4x8xf32> to vector<4x8xf32>
    %cst_35 = arith.constant dense<0.000000e+00> : vector<256x8xf32>
    %40 = tpu.matmul %37, %39, %cst_35 {dimension_numbers = #tpu.dot_dimension_numbers<[1], [0], [0], [1], [0, 0, 1, 1], [], []>} : vector<256x4xf32>, vector<4x8xf32>, vector<256x8xf32> -> vector<256x8xf32>
    %41 = arith.addf %35, %40 : vector<256x8xf32>
    %42 = vector.extract_strided_slice %10 {offsets = [0, 1, 9, 0], sizes = [1, 16, 16, 4], strides = [1, 1, 1, 1]} : vector<1x18x32x4xf32> to vector<1x16x16x4xf32>
    %43 = vector.shape_cast %42 : vector<1x16x16x4xf32> to vector<256x4xf32>
    %c5 = arith.constant 5 : index
    %c0_36 = arith.constant 0 : index
    %c0_37 = arith.constant 0 : index
    %44 = vector.load %arg2[%c5, %c0_36, %c0_37] : memref<9x4x8xf32, #tpu.memory_space<vmem>>, vector<1x4x8xf32>
    %45 = vector.shape_cast %44 : vector<1x4x8xf32> to vector<4x8xf32>
    %cst_38 = arith.constant dense<0.000000e+00> : vector<256x8xf32>
    %46 = tpu.matmul %43, %45, %cst_38 {dimension_numbers = #tpu.dot_dimension_numbers<[1], [0], [0], [1], [0, 0, 1, 1], [], []>} : vector<256x4xf32>, vector<4x8xf32>, vector<256x8xf32> -> vector<256x8xf32>
    %47 = arith.addf %41, %46 : vector<256x8xf32>
    %48 = vector.extract_strided_slice %10 {offsets = [0, 2, 7, 0], sizes = [1, 16, 16, 4], strides = [1, 1, 1, 1]} : vector<1x18x32x4xf32> to vector<1x16x16x4xf32>
    %49 = vector.shape_cast %48 : vector<1x16x16x4xf32> to vector<256x4xf32>
    %c6 = arith.constant 6 : index
    %c0_39 = arith.constant 0 : index
    %c0_40 = arith.constant 0 : index
    %50 = vector.load %arg2[%c6, %c0_39, %c0_40] : memref<9x4x8xf32, #tpu.memory_space<vmem>>, vector<1x4x8xf32>
    %51 = vector.shape_cast %50 : vector<1x4x8xf32> to vector<4x8xf32>
    %cst_41 = arith.constant dense<0.000000e+00> : vector<256x8xf32>
    %52 = tpu.matmul %49, %51, %cst_41 {dimension_numbers = #tpu.dot_dimension_numbers<[1], [0], [0], [1], [0, 0, 1, 1], [], []>} : vector<256x4xf32>, vector<4x8xf32>, vector<256x8xf32> -> vector<256x8xf32>
    %53 = arith.addf %47, %52 : vector<256x8xf32>
    %54 = vector.extract_strided_slice %10 {offsets = [0, 2, 8, 0], sizes = [1, 16, 16, 4], strides = [1, 1, 1, 1]} : vector<1x18x32x4xf32> to vector<1x16x16x4xf32>
    %55 = vector.shape_cast %54 : vector<1x16x16x4xf32> to vector<256x4xf32>
    %c7 = arith.constant 7 : index
    %c0_42 = arith.constant 0 : index
    %c0_43 = arith.constant 0 : index
    %56 = vector.load %arg2[%c7, %c0_42, %c0_43] : memref<9x4x8xf32, #tpu.memory_space<vmem>>, vector<1x4x8xf32>
    %57 = vector.shape_cast %56 : vector<1x4x8xf32> to vector<4x8xf32>
    %cst_44 = arith.constant dense<0.000000e+00> : vector<256x8xf32>
    %58 = tpu.matmul %55, %57, %cst_44 {dimension_numbers = #tpu.dot_dimension_numbers<[1], [0], [0], [1], [0, 0, 1, 1], [], []>} : vector<256x4xf32>, vector<4x8xf32>, vector<256x8xf32> -> vector<256x8xf32>
    %59 = arith.addf %53, %58 : vector<256x8xf32>
    %60 = vector.extract_strided_slice %10 {offsets = [0, 2, 9, 0], sizes = [1, 16, 16, 4], strides = [1, 1, 1, 1]} : vector<1x18x32x4xf32> to vector<1x16x16x4xf32>
    %61 = vector.shape_cast %60 : vector<1x16x16x4xf32> to vector<256x4xf32>
    %c8_45 = arith.constant 8 : index
    %c0_46 = arith.constant 0 : index
    %c0_47 = arith.constant 0 : index
    %62 = vector.load %arg2[%c8_45, %c0_46, %c0_47] : memref<9x4x8xf32, #tpu.memory_space<vmem>>, vector<1x4x8xf32>
    %63 = vector.shape_cast %62 : vector<1x4x8xf32> to vector<4x8xf32>
    %cst_48 = arith.constant dense<0.000000e+00> : vector<256x8xf32>
    %64 = tpu.matmul %61, %63, %cst_48 {dimension_numbers = #tpu.dot_dimension_numbers<[1], [0], [0], [1], [0, 0, 1, 1], [], []>} : vector<256x4xf32>, vector<4x8xf32>, vector<256x8xf32> -> vector<256x8xf32>
    %65 = arith.addf %59, %64 : vector<256x8xf32>
    %c0_49 = arith.constant 0 : index
    %c0_50 = arith.constant 0 : index
    %66 = vector.load %arg3[%c0_49, %c0_50] : memref<1x8xf32, #tpu.memory_space<vmem>>, vector<1x8xf32>
    %67 = vector.broadcast %66 : vector<1x8xf32> to vector<256x8xf32>
    %68 = arith.addf %65, %67 : vector<256x8xf32>
    %cst_51 = arith.constant 5.000000e-01 : f32
    %69 = vector.broadcast %cst_51 : f32 to vector<256x8xf32>
    %70 = arith.mulf %68, %69 : vector<256x8xf32>
    %cst_52 = arith.constant 1.000000e+00 : f32
    %71 = vector.broadcast %cst_52 : f32 to vector<256x8xf32>
    %72 = arith.cmpf oge, %70, %71 : vector<256x8xf32>
    %73 = arith.extui %72 : vector<256x8xi1> to vector<256x8xi32>
    %74 = arith.sitofp %73 : vector<256x8xi32> to vector<256x8xf32>
    %cst_53 = arith.constant 0.000000e+00 : f32
    %75 = vector.broadcast %cst_53 : f32 to vector<1x18x32x8xf32>
    %c0_54 = arith.constant 0 : index
    %c0_55 = arith.constant 0 : index
    %c0_56 = arith.constant 0 : index
    %c0_57 = arith.constant 0 : index
    %76 = vector.load %arg10[%c0_54, %c0_55, %c0_56, %c0_57] : memref<1x18x32x8xf32, #tpu.memory_space<vmem>>, vector<1x18x32x8xf32>
    tpu.vector_store %arg10[%c0_54, %c0_55, %c0_56, %c0_57], %75 {strides = array<i32>} : memref<1x18x32x8xf32, #tpu.memory_space<vmem>>, vector<1x18x32x8xf32>,
    %77 = vector.shape_cast %74 : vector<256x8xf32> to vector<1x16x16x8xf32>
    %c0_58 = arith.constant 0 : index
    %c1_59 = arith.constant 1 : index
    %c8_60 = arith.constant 8 : index
    %c0_61 = arith.constant 0 : index
    %78 = vector.load %arg10[%c0_58, %c1_59, %c8_60, %c0_61] : memref<1x18x32x8xf32, #tpu.memory_space<vmem>>, vector<1x16x16x8xf32>
    tpu.vector_store %arg10[%c0_58, %c1_59, %c8_60, %c0_61], %77 {strides = array<i32>} : memref<1x18x32x8xf32, #tpu.memory_space<vmem>>, vector<1x16x16x8xf32>,
    %c0_62 = arith.constant 0 : index
    %c0_63 = arith.constant 0 : index
    %c0_64 = arith.constant 0 : index
    %c0_65 = arith.constant 0 : index
    %79 = vector.load %arg10[%c0_62, %c0_63, %c0_64, %c0_65] : memref<1x18x32x8xf32, #tpu.memory_space<vmem>>, vector<1x18x32x8xf32>
    %cst_66 = arith.constant 0.000000e+00 : f32
    %80 = vector.broadcast %cst_66 : f32 to vector<256x8xf32>
    %81 = vector.extract_strided_slice %79 {offsets = [0, 0, 7, 0], sizes = [1, 16, 16, 8], strides = [1, 1, 1, 1]} : vector<1x18x32x8xf32> to vector<1x16x16x8xf32>
    %82 = vector.shape_cast %81 : vector<1x16x16x8xf32> to vector<256x8xf32>
    %c0_67 = arith.constant 0 : index
    %c0_68 = arith.constant 0 : index
    %c0_69 = arith.constant 0 : index
    %83 = vector.load %arg6[%c0_67, %c0_68, %c0_69] : memref<9x8x8xf32, #tpu.memory_space<vmem>>, vector<1x8x8xf32>
    %84 = vector.shape_cast %83 : vector<1x8x8xf32> to vector<8x8xf32>
    %cst_70 = arith.constant dense<0.000000e+00> : vector<256x8xf32>
    %85 = tpu.matmul %82, %84, %cst_70 {dimension_numbers = #tpu.dot_dimension_numbers<[1], [0], [0], [1], [0, 0, 1, 1], [], []>} : vector<256x8xf32>, vector<8x8xf32>, vector<256x8xf32> -> vector<256x8xf32>
    %86 = arith.addf %80, %85 : vector<256x8xf32>
    %87 = vector.extract_strided_slice %79 {offsets = [0, 0, 8, 0], sizes = [1, 16, 16, 8], strides = [1, 1, 1, 1]} : vector<1x18x32x8xf32> to vector<1x16x16x8xf32>
    %88 = vector.shape_cast %87 : vector<1x16x16x8xf32> to vector<256x8xf32>
    %c1_71 = arith.constant 1 : index
    %c0_72 = arith.constant 0 : index
    %c0_73 = arith.constant 0 : index
    %89 = vector.load %arg6[%c1_71, %c0_72, %c0_73] : memref<9x8x8xf32, #tpu.memory_space<vmem>>, vector<1x8x8xf32>
    %90 = vector.shape_cast %89 : vector<1x8x8xf32> to vector<8x8xf32>
    %cst_74 = arith.constant dense<0.000000e+00> : vector<256x8xf32>
    %91 = tpu.matmul %88, %90, %cst_74 {dimension_numbers = #tpu.dot_dimension_numbers<[1], [0], [0], [1], [0, 0, 1, 1], [], []>} : vector<256x8xf32>, vector<8x8xf32>, vector<256x8xf32> -> vector<256x8xf32>
    %92 = arith.addf %86, %91 : vector<256x8xf32>
    %93 = vector.extract_strided_slice %79 {offsets = [0, 0, 9, 0], sizes = [1, 16, 16, 8], strides = [1, 1, 1, 1]} : vector<1x18x32x8xf32> to vector<1x16x16x8xf32>
    %94 = vector.shape_cast %93 : vector<1x16x16x8xf32> to vector<256x8xf32>
    %c2_75 = arith.constant 2 : index
    %c0_76 = arith.constant 0 : index
    %c0_77 = arith.constant 0 : index
    %95 = vector.load %arg6[%c2_75, %c0_76, %c0_77] : memref<9x8x8xf32, #tpu.memory_space<vmem>>, vector<1x8x8xf32>
    %96 = vector.shape_cast %95 : vector<1x8x8xf32> to vector<8x8xf32>
    %cst_78 = arith.constant dense<0.000000e+00> : vector<256x8xf32>
    %97 = tpu.matmul %94, %96, %cst_78 {dimension_numbers = #tpu.dot_dimension_numbers<[1], [0], [0], [1], [0, 0, 1, 1], [], []>} : vector<256x8xf32>, vector<8x8xf32>, vector<256x8xf32> -> vector<256x8xf32>
    %98 = arith.addf %92, %97 : vector<256x8xf32>
    %99 = vector.extract_strided_slice %79 {offsets = [0, 1, 7, 0], sizes = [1, 16, 16, 8], strides = [1, 1, 1, 1]} : vector<1x18x32x8xf32> to vector<1x16x16x8xf32>
    %100 = vector.shape_cast %99 : vector<1x16x16x8xf32> to vector<256x8xf32>
    %c3_79 = arith.constant 3 : index
    %c0_80 = arith.constant 0 : index
    %c0_81 = arith.constant 0 : index
    %101 = vector.load %arg6[%c3_79, %c0_80, %c0_81] : memref<9x8x8xf32, #tpu.memory_space<vmem>>, vector<1x8x8xf32>
    %102 = vector.shape_cast %101 : vector<1x8x8xf32> to vector<8x8xf32>
    %cst_82 = arith.constant dense<0.000000e+00> : vector<256x8xf32>
    %103 = tpu.matmul %100, %102, %cst_82 {dimension_numbers = #tpu.dot_dimension_numbers<[1], [0], [0], [1], [0, 0, 1, 1], [], []>} : vector<256x8xf32>, vector<8x8xf32>, vector<256x8xf32> -> vector<256x8xf32>
    %104 = arith.addf %98, %103 : vector<256x8xf32>
    %105 = vector.extract_strided_slice %79 {offsets = [0, 1, 8, 0], sizes = [1, 16, 16, 8], strides = [1, 1, 1, 1]} : vector<1x18x32x8xf32> to vector<1x16x16x8xf32>
    %106 = vector.shape_cast %105 : vector<1x16x16x8xf32> to vector<256x8xf32>
    %c4_83 = arith.constant 4 : index
    %c0_84 = arith.constant 0 : index
    %c0_85 = arith.constant 0 : index
    %107 = vector.load %arg6[%c4_83, %c0_84, %c0_85] : memref<9x8x8xf32, #tpu.memory_space<vmem>>, vector<1x8x8xf32>
    %108 = vector.shape_cast %107 : vector<1x8x8xf32> to vector<8x8xf32>
    %cst_86 = arith.constant dense<0.000000e+00> : vector<256x8xf32>
    %109 = tpu.matmul %106, %108, %cst_86 {dimension_numbers = #tpu.dot_dimension_numbers<[1], [0], [0], [1], [0, 0, 1, 1], [], []>} : vector<256x8xf32>, vector<8x8xf32>, vector<256x8xf32> -> vector<256x8xf32>
    %110 = arith.addf %104, %109 : vector<256x8xf32>
    %111 = vector.extract_strided_slice %79 {offsets = [0, 1, 9, 0], sizes = [1, 16, 16, 8], strides = [1, 1, 1, 1]} : vector<1x18x32x8xf32> to vector<1x16x16x8xf32>
    %112 = vector.shape_cast %111 : vector<1x16x16x8xf32> to vector<256x8xf32>
    %c5_87 = arith.constant 5 : index
    %c0_88 = arith.constant 0 : index
    %c0_89 = arith.constant 0 : index
    %113 = vector.load %arg6[%c5_87, %c0_88, %c0_89] : memref<9x8x8xf32, #tpu.memory_space<vmem>>, vector<1x8x8xf32>
    %114 = vector.shape_cast %113 : vector<1x8x8xf32> to vector<8x8xf32>
    %cst_90 = arith.constant dense<0.000000e+00> : vector<256x8xf32>
    %115 = tpu.matmul %112, %114, %cst_90 {dimension_numbers = #tpu.dot_dimension_numbers<[1], [0], [0], [1], [0, 0, 1, 1], [], []>} : vector<256x8xf32>, vector<8x8xf32>, vector<256x8xf32> -> vector<256x8xf32>
    %116 = arith.addf %110, %115 : vector<256x8xf32>
    %117 = vector.extract_strided_slice %79 {offsets = [0, 2, 7, 0], sizes = [1, 16, 16, 8], strides = [1, 1, 1, 1]} : vector<1x18x32x8xf32> to vector<1x16x16x8xf32>
    %118 = vector.shape_cast %117 : vector<1x16x16x8xf32> to vector<256x8xf32>
    %c6_91 = arith.constant 6 : index
    %c0_92 = arith.constant 0 : index
    %c0_93 = arith.constant 0 : index
    %119 = vector.load %arg6[%c6_91, %c0_92, %c0_93] : memref<9x8x8xf32, #tpu.memory_space<vmem>>, vector<1x8x8xf32>
    %120 = vector.shape_cast %119 : vector<1x8x8xf32> to vector<8x8xf32>
    %cst_94 = arith.constant dense<0.000000e+00> : vector<256x8xf32>
    %121 = tpu.matmul %118, %120, %cst_94 {dimension_numbers = #tpu.dot_dimension_numbers<[1], [0], [0], [1], [0, 0, 1, 1], [], []>} : vector<256x8xf32>, vector<8x8xf32>, vector<256x8xf32> -> vector<256x8xf32>
    %122 = arith.addf %116, %121 : vector<256x8xf32>
    %123 = vector.extract_strided_slice %79 {offsets = [0, 2, 8, 0], sizes = [1, 16, 16, 8], strides = [1, 1, 1, 1]} : vector<1x18x32x8xf32> to vector<1x16x16x8xf32>
    %124 = vector.shape_cast %123 : vector<1x16x16x8xf32> to vector<256x8xf32>
    %c7_95 = arith.constant 7 : index
    %c0_96 = arith.constant 0 : index
    %c0_97 = arith.constant 0 : index
    %125 = vector.load %arg6[%c7_95, %c0_96, %c0_97] : memref<9x8x8xf32, #tpu.memory_space<vmem>>, vector<1x8x8xf32>
    %126 = vector.shape_cast %125 : vector<1x8x8xf32> to vector<8x8xf32>
    %cst_98 = arith.constant dense<0.000000e+00> : vector<256x8xf32>
    %127 = tpu.matmul %124, %126, %cst_98 {dimension_numbers = #tpu.dot_dimension_numbers<[1], [0], [0], [1], [0, 0, 1, 1], [], []>} : vector<256x8xf32>, vector<8x8xf32>, vector<256x8xf32> -> vector<256x8xf32>
    %128 = arith.addf %122, %127 : vector<256x8xf32>
    %129 = vector.extract_strided_slice %79 {offsets = [0, 2, 9, 0], sizes = [1, 16, 16, 8], strides = [1, 1, 1, 1]} : vector<1x18x32x8xf32> to vector<1x16x16x8xf32>
    %130 = vector.shape_cast %129 : vector<1x16x16x8xf32> to vector<256x8xf32>
    %c8_99 = arith.constant 8 : index
    %c0_100 = arith.constant 0 : index
    %c0_101 = arith.constant 0 : index
    %131 = vector.load %arg6[%c8_99, %c0_100, %c0_101] : memref<9x8x8xf32, #tpu.memory_space<vmem>>, vector<1x8x8xf32>
    %132 = vector.shape_cast %131 : vector<1x8x8xf32> to vector<8x8xf32>
    %cst_102 = arith.constant dense<0.000000e+00> : vector<256x8xf32>
    %133 = tpu.matmul %130, %132, %cst_102 {dimension_numbers = #tpu.dot_dimension_numbers<[1], [0], [0], [1], [0, 0, 1, 1], [], []>} : vector<256x8xf32>, vector<8x8xf32>, vector<256x8xf32> -> vector<256x8xf32>
    %134 = arith.addf %128, %133 : vector<256x8xf32>
    %c0_103 = arith.constant 0 : index
    %c0_104 = arith.constant 0 : index
    %135 = vector.load %arg7[%c0_103, %c0_104] : memref<1x8xf32, #tpu.memory_space<vmem>>, vector<1x8xf32>
    %136 = vector.broadcast %135 : vector<1x8xf32> to vector<256x8xf32>
    %137 = arith.addf %134, %136 : vector<256x8xf32>
    %cst_105 = arith.constant 5.000000e-01 : f32
    %138 = vector.broadcast %cst_105 : f32 to vector<256x8xf32>
    %139 = arith.mulf %137, %138 : vector<256x8xf32>
    %cst_106 = arith.constant 1.000000e+00 : f32
    %140 = vector.broadcast %cst_106 : f32 to vector<256x8xf32>
    %141 = arith.cmpf oge, %139, %140 : vector<256x8xf32>
    %142 = arith.extui %141 : vector<256x8xi1> to vector<256x8xi32>
    %143 = arith.sitofp %142 : vector<256x8xi32> to vector<256x8xf32>
    %cst_107 = arith.constant 1.000000e+00 : f32
    %144 = vector.broadcast %cst_107 : f32 to vector<256x8xf32>
    %145 = arith.subf %144, %143 : vector<256x8xf32>
    %146 = arith.mulf %139, %145 : vector<256x8xf32>
    %147 = arith.addf %143, %9 : vector<256x8xf32>
    %148 = arith.subf %147, %146 : vector<256x8xf32>
    %cst_108 = arith.constant 5.000000e-01 : f32
    %149 = vector.broadcast %cst_108 : f32 to vector<256x8xf32>
    %150 = arith.mulf %148, %149 : vector<256x8xf32>
    %151 = arith.addf %146, %150 : vector<256x8xf32>
    %cst_109 = arith.constant 1.000000e+00 : f32
    %152 = vector.broadcast %cst_109 : f32 to vector<256x8xf32>
    %153 = arith.cmpf oge, %151, %152 : vector<256x8xf32>
    %154 = arith.extui %153 : vector<256x8xi1> to vector<256x8xi32>
    %155 = arith.sitofp %154 : vector<256x8xi32> to vector<256x8xf32>
    %156 = vector.shape_cast %155 : vector<256x8xf32> to vector<1x16x16x8xf32>
    %c0_110 = arith.constant 0 : index
    %c0_111 = arith.constant 0 : index
    %c0_112 = arith.constant 0 : index
    %c0_113 = arith.constant 0 : index
    %157 = vector.load %arg8[%c0_110, %c0_111, %c0_112, %c0_113] : memref<1x16x16x8xf32, #tpu.memory_space<vmem>>, vector<1x16x16x8xf32>
    tpu.vector_store %arg8[%c0_110, %c0_111, %c0_112, %c0_113], %156 {strides = array<i32>} : memref<1x16x16x8xf32, #tpu.memory_space<vmem>>, vector<1x16x16x8xf32>,
    return
  }
  func.func @transform_0(%arg0: i32) -> (i32, i32, i32, i32) {
    %c0_i32 = arith.constant 0 : i32
    %c0_i32_0 = arith.constant 0 : i32
    %c0_i32_1 = arith.constant 0 : i32
    %c0_i32_2 = arith.constant 0 : i32
    return %arg0, %c0_i32, %c0_i32_0, %c0_i32_1 : i32, i32, i32, i32
  }
  func.func @transform_1(%arg0: i32) -> (i32, i32, i32) {
    %c0_i32 = arith.constant 0 : i32
    %c0_i32_0 = arith.constant 0 : i32
    %c0_i32_1 = arith.constant 0 : i32
    %c0_i32_2 = arith.constant 0 : i32
    return %c0_i32, %c0_i32_0, %c0_i32_1 : i32, i32, i32
  }
  func.func @transform_2(%arg0: i32) -> (i32, i32) {
    %c0_i32 = arith.constant 0 : i32
    %c0_i32_0 = arith.constant 0 : i32
    %c0_i32_1 = arith.constant 0 : i32
    return %c0_i32, %c0_i32_0 : i32, i32
  }
  func.func @transform_3(%arg0: i32) -> (i32, i32) {
    %c0_i32 = arith.constant 0 : i32
    %c0_i32_0 = arith.constant 0 : i32
    %c0_i32_1 = arith.constant 0 : i32
    return %c0_i32, %c0_i32_0 : i32, i32
  }
  func.func @transform_4(%arg0: i32) -> (i32, i32) {
    %c0_i32 = arith.constant 0 : i32
    %c0_i32_0 = arith.constant 0 : i32
    %c0_i32_1 = arith.constant 0 : i32
    return %c0_i32, %c0_i32_0 : i32, i32
  }
  func.func @transform_5(%arg0: i32) -> (i32, i32, i32) {
    %c0_i32 = arith.constant 0 : i32
    %c0_i32_0 = arith.constant 0 : i32
    %c0_i32_1 = arith.constant 0 : i32
    %c0_i32_2 = arith.constant 0 : i32
    return %c0_i32, %c0_i32_0, %c0_i32_1 : i32, i32, i32
  }
  func.func @transform_6(%arg0: i32) -> (i32, i32) {
    %c0_i32 = arith.constant 0 : i32
    %c0_i32_0 = arith.constant 0 : i32
    %c0_i32_1 = arith.constant 0 : i32
    return %c0_i32, %c0_i32_0 : i32, i32
  }
  func.func @transform_7(%arg0: i32) -> (i32, i32, i32, i32) {
    %c0_i32 = arith.constant 0 : i32
    %c0_i32_0 = arith.constant 0 : i32
    %c0_i32_1 = arith.constant 0 : i32
    %c0_i32_2 = arith.constant 0 : i32
    return %arg0, %c0_i32, %c0_i32_0, %c0_i32_1 : i32, i32, i32, i32
  }
}

</mosaic_0001>

<llo_original>
// kernel: tpu_custom_call.1
$region0: #{tpu_custom_call.1}
  #allocation0 [shape = 'u32[]', space=smem, size = 0x4, offset = 0x4, fixed_abs, tag = 'smem constant byte address 0x4 - core index']
  #allocation1 [shape = 'u32[72,128]{1,0:T(1,128)}', space=vmem, size = 0x9000, scoped, tag = 'internal scratch']
  #allocation2 [shape = 'f32[1,18,32,4]{3,2,1,0:T(8,128)}', space=vmem, size = 0x48000, scoped, tag = 'scratch operand']
  #allocation3 [shape = 'f32[1,18,32,8]{3,2,1,0:T(8,128)}', space=vmem, size = 0x48000, scoped, tag = 'scratch operand']
  %s0 = inlined_call_operand.vmem [shape: f32[2,16,16,4], index: 0, kind: input, shape index: {}]
  %s1 = inlined_call_operand.vmem [shape: f32[9,4,8], index: 1, kind: input, shape index: {}]
  %s2 = inlined_call_operand.vmem [shape: f32[1,8], index: 2, kind: input, shape index: {}]
  %s3 = inlined_call_operand.vmem [shape: f32[4,8], index: 3, kind: input, shape index: {}]
  %s4 = inlined_call_operand.vmem [shape: f32[1,8], index: 4, kind: input, shape index: {}]
  %s5 = inlined_call_operand.vmem [shape: f32[9,8,8], index: 5, kind: input, shape index: {}]
  %s6 = inlined_call_operand.vmem [shape: f32[1,8], index: 6, kind: input, shape index: {}]
  %s7 = inlined_call_operand.vmem [shape: f32[2,16,16,8], index: 7, kind: output, shape index: {}]
  %s8 = sld [smem:[#allocation0]]
  $region61: #{tpu_custom_call.1} parent=0
    _
  %s10 = ssub.s32 1, %s8
  %s11 = scalar_select 0, %s10, %s8
  loop: start=0, step=1, limit=4
  $region2: #{tpu_custom_call.1} parent=0 // loop_pre_header
    _
  $region3: #{tpu_custom_call.1} parent=0 // loop_header
    %s13 = sphi 0, %s17
    %p14 = scmp.ge.s32.totalorder %s13, 4
    %s23 = sphi 0, %s25
    %s26 = sphi 0, %s23
    %s27 = sphi 0, %s26
    %s43 = sphi 0, %s27
    %s47 = sphi 0, %s47
    %s49 = sphi 0, %s47
    %s50 = sphi 0, %s49
    %s64 = sphi 0, %s50
    %s68 = sphi 0, %s68
    %s70 = sphi 0, %s68
    %s71 = sphi 0, %s70
    %s85 = sphi 0, %s71
    %s89 = sphi 0, %s89
    %s91 = sphi 0, %s89
    %s92 = sphi 0, %s91
    %s106 = sphi 0, %s92
    %s110 = sphi 0, %s110
    %s112 = sphi 0, %s110
    %s113 = sphi 0, %s112
    %s127 = sphi 0, %s113
    %s131 = sphi 0, %s131
    %s133 = sphi 0, %s131
    %s134 = sphi 0, %s133
    %s148 = sphi 0, %s134
    %s152 = sphi 0, %s152
    %s154 = sphi 0, %s152
    %s155 = sphi 0, %s154
    %s169 = sphi 0, %s155
    %s175 = sphi 0, %s177
    %s178 = sphi 0, %s175
    %s179 = sphi 0, %s178
    %s195 = sphi 0, %s179
  $region4: #{tpu_custom_call.1} parent=0 // loop_header_branch
    %16 = sbr.rel (%p14) target = $region8
  $region5: #{tpu_custom_call.1} parent=0 // loop_body
    %s18 = ssub.s32 %s13, 1
    %s19 = ssub.s32 %s13, 2
    %s20 = sadd.s32 %s13, 1
    %s21 = ssub.s32 %s13, %s20
    %p22 = scmp.eq.s32.totalorder %s21, 0
    %s24 = sadd.s32 %s23, 1
    %s25 = scalar_select %p22, %s23, %s24
    %p28 = pneg %p22
    %p29 = scmp.eq.s32.totalorder %s13, 1
    %p30 = por %p28, %p29
    %p31 = scmp.ne.s32.totalorder %s23, %s26
    %p32 = scmp.eq.s32.totalorder %s13, 0
    %p33 = por %p31, %p32
    %p34 = scmp.ne.s32.totalorder %s23, %s26
    %p35 = scmp.eq.s32.totalorder %s18, 1
    %p36 = por %p34, %p35
    %p37 = scmp.ne.s32.totalorder %s26, %s27
    %p38 = scmp.eq.s32.totalorder %s18, 0
    %p39 = por %p37, %p38
    %p40 = scmp.ne.s32.totalorder %s26, %s27
    %p41 = scmp.eq.s32.totalorder %s19, 1
    %p42 = por %p40, %p41
    %p44 = scmp.ne.s32.totalorder %s27, %s43
    %p45 = scmp.eq.s32.totalorder %s19, 0
    %p46 = por %p44, %p45
    %s48 = sadd.s32 %s47, 1
    %p51 = scmp.eq.s32.totalorder %s13, 1
    %p52 = scmp.ne.s32.totalorder %s47, %s49
    %p53 = scmp.eq.s32.totalorder %s13, 0
    %p54 = por %p52, %p53
    %p55 = scmp.ne.s32.totalorder %s47, %s49
    %p56 = scmp.eq.s32.totalorder %s18, 1
    %p57 = por %p55, %p56
    %p58 = scmp.ne.s32.totalorder %s49, %s50
    %p59 = scmp.eq.s32.totalorder %s18, 0
    %p60 = por %p58, %p59
    %p61 = scmp.ne.s32.totalorder %s49, %s50
    %p62 = scmp.eq.s32.totalorder %s19, 1
    %p63 = por %p61, %p62
    %p65 = scmp.ne.s32.totalorder %s50, %s64
    %p66 = scmp.eq.s32.totalorder %s19, 0
    %p67 = por %p65, %p66
    %s69 = sadd.s32 %s68, 1
    %p72 = scmp.eq.s32.totalorder %s13, 1
    %p73 = scmp.ne.s32.totalorder %s68, %s70
    %p74 = scmp.eq.s32.totalorder %s13, 0
    %p75 = por %p73, %p74
    %p76 = scmp.ne.s32.totalorder %s68, %s70
    %p77 = scmp.eq.s32.totalorder %s18, 1
    %p78 = por %p76, %p77
    %p79 = scmp.ne.s32.totalorder %s70, %s71
    %p80 = scmp.eq.s32.totalorder %s18, 0
    %p81 = por %p79, %p80
    %p82 = scmp.ne.s32.totalorder %s70, %s71
    %p83 = scmp.eq.s32.totalorder %s19, 1
    %p84 = por %p82, %p83
    %p86 = scmp.ne.s32.totalorder %s71, %s85
    %p87 = scmp.eq.s32.totalorder %s19, 0
    %p88 = por %p86, %p87
    %s90 = sadd.s32 %s89, 1
    %p93 = scmp.eq.s32.totalorder %s13, 1
    %p94 = scmp.ne.s32.totalorder %s89, %s91
    %p95 = scmp.eq.s32.totalorder %s13, 0
    %p96 = por %p94, %p95
    %p97 = scmp.ne.s32.totalorder %s89, %s91
    %p98 = scmp.eq.s32.totalorder %s18, 1
    %p99 = por %p97, %p98
    %p100 = scmp.ne.s32.totalorder %s91, %s92
    %p101 = scmp.eq.s32.totalorder %s18, 0
    %p102 = por %p100, %p101
    %p103 = scmp.ne.s32.totalorder %s91, %s92
    %p104 = scmp.eq.s32.totalorder %s19, 1
    %p105 = por %p103, %p104
    %p107 = scmp.ne.s32.totalorder %s92, %s106
    %p108 = scmp.eq.s32.totalorder %s19, 0
    %p109 = por %p107, %p108
    %s111 = sadd.s32 %s110, 1
    %p114 = scmp.eq.s32.totalorder %s13, 1
    %p115 = scmp.ne.s32.totalorder %s110, %s112
    %p116 = scmp.eq.s32.totalorder %s13, 0
    %p117 = por %p115, %p116
    %p118 = scmp.ne.s32.totalorder %s110, %s112
    %p119 = scmp.eq.s32.totalorder %s18, 1
    %p120 = por %p118, %p119
    %p121 = scmp.ne.s32.totalorder %s112, %s113
    %p122 = scmp.eq.s32.totalorder %s18, 0
    %p123 = por %p121, %p122
    %p124 = scmp.ne.s32.totalorder %s112, %s113
    %p125 = scmp.eq.s32.totalorder %s19, 1
    %p126 = por %p124, %p125
    %p128 = scmp.ne.s32.totalorder %s113, %s127
    %p129 = scmp.eq.s32.totalorder %s19, 0
    %p130 = por %p128, %p129
    %s132 = sadd.s32 %s131, 1
    %p135 = scmp.eq.s32.totalorder %s13, 1
    %p136 = scmp.ne.s32.totalorder %s131, %s133
    %p137 = scmp.eq.s32.totalorder %s13, 0
    %p138 = por %p136, %p137
    %p139 = scmp.ne.s32.totalorder %s131, %s133
    %p140 = scmp.eq.s32.totalorder %s18, 1
    %p141 = por %p139, %p140
    %p142 = scmp.ne.s32.totalorder %s133, %s134
    %p143 = scmp.eq.s32.totalorder %s18, 0
    %p144 = por %p142, %p143
    %p145 = scmp.ne.s32.totalorder %s133, %s134
    %p146 = scmp.eq.s32.totalorder %s19, 1
    %p147 = por %p145, %p146
    %p149 = scmp.ne.s32.totalorder %s134, %s148
    %p150 = scmp.eq.s32.totalorder %s19, 0
    %p151 = por %p149, %p150
    %s153 = sadd.s32 %s152, 1
    %p156 = scmp.eq.s32.totalorder %s13, 1
    %p157 = scmp.ne.s32.totalorder %s152, %s154
    %p158 = scmp.eq.s32.totalorder %s13, 0
    %p159 = por %p157, %p158
    %p160 = scmp.ne.s32.totalorder %s152, %s154
    %p161 = scmp.eq.s32.totalorder %s18, 1
    %p162 = por %p160, %p161
    %p163 = scmp.ne.s32.totalorder %s154, %s155
    %p164 = scmp.eq.s32.totalorder %s18, 0
    %p165 = por %p163, %p164
    %p166 = scmp.ne.s32.totalorder %s154, %s155
    %p167 = scmp.eq.s32.totalorder %s19, 1
    %p168 = por %p166, %p167
    %p170 = scmp.ne.s32.totalorder %s155, %s169
    %p171 = scmp.eq.s32.totalorder %s19, 0
    %p172 = por %p170, %p171
    %s173 = ssub.s32 %s13, %s20
    %p174 = scmp.eq.s32.totalorder %s173, 0
    %s176 = sadd.s32 %s175, 1
    %s177 = scalar_select %p174, %s175, %s176
    %p180 = pneg %p174
    %p181 = scmp.eq.s32.totalorder %s13, 1
    %p182 = por %p180, %p181
    %p183 = scmp.ne.s32.totalorder %s175, %s178
    %p184 = scmp.eq.s32.totalorder %s13, 0
    %p185 = por %p183, %p184
    %p186 = scmp.ne.s32.totalorder %s175, %s178
    %p187 = scmp.eq.s32.totalorder %s18, 1
    %p188 = por %p186, %p187
    %p189 = scmp.ne.s32.totalorder %s178, %s179
    %p190 = scmp.eq.s32.totalorder %s18, 0
    %p191 = por %p189, %p190
    %p192 = scmp.ne.s32.totalorder %s178, %s179
    %p193 = scmp.eq.s32.totalorder %s19, 1
    %p194 = por %p192, %p193
    %p196 = scmp.ne.s32.totalorder %s179, %s195
    %p197 = scmp.eq.s32.totalorder %s19, 0
    %p198 = por %p196, %p197
    %p199 = scmp.le.s32.totalorder 1, %s13
    %p200 = scmp.lt.s32.totalorder %s13, 3
    %p201 = pnand %p199, %p200
    %p202 = pneg %p201
    // Predicated region
    $region9: #{tpu_custom_call.1} parent=5 // pred_check
      _
    $region10: #{tpu_custom_call.1} parent=5 // pred_check_branch
      %204 = sbr.rel (%p201) target = $region12
    $region11: #{tpu_custom_call.1} parent=5 // pred_region
      %s205 = ssub.s32 %s13, 1
      // Predicated region
      $region13: #{tpu_custom_call.1} parent=11 // pred_check
        %p206 = pneg %p60
      $region14: #{tpu_custom_call.1} parent=11 // pred_check_branch
        %208 = sbr.rel (%p206) target = $region16
      $region15: #{tpu_custom_call.1} parent=11 // pred_region
        _
      $region16: #{tpu_custom_call.1} parent=11 // pred_fallthru
        _
      // Predicated region
      $region17: #{tpu_custom_call.1} parent=11 // pred_check
        %p209 = pneg %p81
      $region18: #{tpu_custom_call.1} parent=11 // pred_check_branch
        %211 = sbr.rel (%p209) target = $region20
      $region19: #{tpu_custom_call.1} parent=11 // pred_region
        _
      $region20: #{tpu_custom_call.1} parent=11 // pred_fallthru
        _
      // Predicated region
      $region21: #{tpu_custom_call.1} parent=11 // pred_check
        %p212 = pneg %p102
      $region22: #{tpu_custom_call.1} parent=11 // pred_check_branch
        %214 = sbr.rel (%p212) target = $region24
      $region23: #{tpu_custom_call.1} parent=11 // pred_region
        _
      $region24: #{tpu_custom_call.1} parent=11 // pred_fallthru
        _
      // Predicated region
      $region25: #{tpu_custom_call.1} parent=11 // pred_check
        %p215 = pneg %p123
      $region26: #{tpu_custom_call.1} parent=11 // pred_check_branch
        %217 = sbr.rel (%p215) target = $region28
      $region27: #{tpu_custom_call.1} parent=11 // pred_region
        _
      $region28: #{tpu_custom_call.1} parent=11 // pred_fallthru
        _
      // Predicated region
      $region29: #{tpu_custom_call.1} parent=11 // pred_check
        %p218 = pneg %p144
      $region30: #{tpu_custom_call.1} parent=11 // pred_check_branch
        %220 = sbr.rel (%p218) target = $region32
      $region31: #{tpu_custom_call.1} parent=11 // pred_region
        _
      $region32: #{tpu_custom_call.1} parent=11 // pred_fallthru
        _
      // Predicated region
      $region33: #{tpu_custom_call.1} parent=11 // pred_check
        %p221 = pneg %p165
      $region34: #{tpu_custom_call.1} parent=11 // pred_check_branch
        %223 = sbr.rel (%p221) target = $region36
      $region35: #{tpu_custom_call.1} parent=11 // pred_region
        _
      $region36: #{tpu_custom_call.1} parent=11 // pred_fallthru
        _
    $region12: #{tpu_custom_call.1} parent=5 // pred_fallthru
      _
    %p224 = scmp.lt.s32.totalorder %s13, 2
    // Predicated region
    $region37: #{tpu_custom_call.1} parent=5 // pred_check
      %p225 = pneg %p224
    $region38: #{tpu_custom_call.1} parent=5 // pred_check_branch
      %227 = sbr.rel (%p225) target = $region40
    $region39: #{tpu_custom_call.1} parent=5 // pred_region
      // Predicated region
      $region41: #{tpu_custom_call.1} parent=39 // pred_check
        %p228 = pneg %p33
      $region42: #{tpu_custom_call.1} parent=39 // pred_check_branch
        %230 = sbr.rel (%p228) target = $region44
      $region43: #{tpu_custom_call.1} parent=39 // pred_region
        %p231 = scmp.lt.s32.totalorder %s13, 1
        %s232 = scalar_select %p231, %s13, 1
        %s233 = smul.addr %s232, 32
        %s234 = smul.addr %s233, 8
        %s235 = scalar_lea.vmem %s0, %s234
      $region44: #{tpu_custom_call.1} parent=39 // pred_fallthru
        _
    $region40: #{tpu_custom_call.1} parent=5 // pred_fallthru
      _
    %p236 = scmp.le.s32.totalorder 1, %s13
    %p237 = scmp.lt.s32.totalorder %s13, 3
    %p238 = pnand %p236, %p237
    %p239 = pneg %p238
    // Predicated region
    $region45: #{tpu_custom_call.1} parent=5 // pred_check
      _
    $region46: #{tpu_custom_call.1} parent=5 // pred_check_branch
      %241 = sbr.rel (%p238) target = $region48
    $region47: #{tpu_custom_call.1} parent=5 // pred_region
      %s242 = ssub.s32 %s13, 1
      %p243 = scmp.lt.s32.totalorder %s18, 1
      %s244 = scalar_select %p243, %s18, 1
      %s245 = smul.addr %s244, 32
      %s246 = smul.addr %s245, 8
      %s247 = scalar_lea.vmem %s0, %s246
      %p248 = pneg %p39
      %p249 = pneg %p36
      %p250 = pneg %p60
      %p251 = pneg %p57
      %p252 = pneg %p81
      %p253 = pneg %p78
      %p254 = pneg %p102
      %p255 = pneg %p99
      %p256 = pneg %p123
      %p257 = pneg %p120
      %p258 = pneg %p144
      %p259 = pneg %p141
      %p260 = pneg %p165
      %p261 = pneg %p162
      %p262 = pneg %p191
      %p263 = pneg %p188
      %p264 = scmp.lt.s32.totalorder %s18, 1
      %s265 = scalar_select %p264, %s18, 1
      %s266 = smul.addr %s265, 32
      %s267 = smul.addr %s266, 8
      %s268 = scalar_lea.vmem %s7, %s267
      %p269 = scmp.lt.s32.totalorder %s18, 1
      %s270 = scalar_select %p269, %s18, 1
      %s271 = smul.addr %s270, 32
      %s272 = smul.addr %s271, 8
      %s273 = scalar_lea.vmem %s0, %s272
      %p274 = scmp.lt.s32.totalorder %s18, 1
      %s275 = scalar_select %p274, %s18, 1
      %s276 = smul.addr %s275, 32
      %s277 = smul.addr %s276, 8
      %s278 = scalar_lea.vmem %s7, %s277
      %v279 = vld [vmem:[%s273] sm:$0xff]
      %v280 = vld [vmem:[%s273 + $0x8] sm:$0xff]
      %v281 = vld [vmem:[%s273 + $0x10] sm:$0xff]
      %v282 = vld [vmem:[%s273 + $0x18] sm:$0xff]
      %v283 = vld [vmem:[%s273 + $0x20] sm:$0xff]
      %v284 = vld [vmem:[%s273 + $0x28] sm:$0xff]
      %v285 = vld [vmem:[%s273 + $0x30] sm:$0xff]
      %v286 = vld [vmem:[%s273 + $0x38] sm:$0xff]
      %v287 = vld [vmem:[%s273 + $0x40] sm:$0xff]
      %v288 = vld [vmem:[%s273 + $0x48] sm:$0xff]
      %v289 = vld [vmem:[%s273 + $0x50] sm:$0xff]
      %v290 = vld [vmem:[%s273 + $0x58] sm:$0xff]
      %v291 = vld [vmem:[%s273 + $0x60] sm:$0xff]
      %v292 = vld [vmem:[%s273 + $0x68] sm:$0xff]
      %v293 = vld [vmem:[%s273 + $0x70] sm:$0xff]
      %v294 = vld [vmem:[%s273 + $0x78] sm:$0xff]
      %v295 = vld [vmem:[%s273 + $0x80] sm:$0xff]
      %v296 = vld [vmem:[%s273 + $0x88] sm:$0xff]
      %v297 = vld [vmem:[%s273 + $0x90] sm:$0xff]
      %v298 = vld [vmem:[%s273 + $0x98] sm:$0xff]
      %v299 = vld [vmem:[%s273 + $0xa0] sm:$0xff]
      %v300 = vld [vmem:[%s273 + $0xa8] sm:$0xff]
      %v301 = vld [vmem:[%s273 + $0xb0] sm:$0xff]
      %v302 = vld [vmem:[%s273 + $0xb8] sm:$0xff]
      %v303 = vld [vmem:[%s273 + $0xc0] sm:$0xff]
      %v304 = vld [vmem:[%s273 + $0xc8] sm:$0xff]
      %v305 = vld [vmem:[%s273 + $0xd0] sm:$0xff]
      %v306 = vld [vmem:[%s273 + $0xd8] sm:$0xff]
      %v307 = vld [vmem:[%s273 + $0xe0] sm:$0xff]
      %v308 = vld [vmem:[%s273 + $0xe8] sm:$0xff]
      %v309 = vld [vmem:[%s273 + $0xf0] sm:$0xff]
      %v310 = vld [vmem:[%s273 + $0xf8] sm:$0xff]
      %vm311 = vcmask 31744
      %312 = vst.msk [vmem:[#allocation2] sm:$0xff] %vm311, 0.0
      %313 = vst.msk [vmem:[#allocation2 + $0x8] sm:$0xff] %vm311, 0.0
      %314 = vst.msk [vmem:[#allocation2 + $0x10] sm:$0xff] %vm311, 0.0
      %315 = vst.msk [vmem:[#allocation2 + $0x18] sm:$0xff] %vm311, 0.0
      %316 = vst.msk [vmem:[#allocation2 + $0x20] sm:$0xff] %vm311, 0.0
      %317 = vst.msk [vmem:[#allocation2 + $0x28] sm:$0xff] %vm311, 0.0
      %318 = vst.msk [vmem:[#allocation2 + $0x30] sm:$0xff] %vm311, 0.0
      %319 = vst.msk [vmem:[#allocation2 + $0x38] sm:$0xff] %vm311, 0.0
      %320 = vst.msk [vmem:[#allocation2 + $0x40] sm:$0xff] %vm311, 0.0
      %321 = vst.msk [vmem:[#allocation2 + $0x48] sm:$0xff] %vm311, 0.0
      %322 = vst.msk [vmem:[#allocation2 + $0x50] sm:$0xff] %vm311, 0.0
      %323 = vst.msk [vmem:[#allocation2 + $0x58] sm:$0xff] %vm311, 0.0
      %324 = vst.msk [vmem:[#allocation2 + $0x60] sm:$0xff] %vm311, 0.0
      %325 = vst.msk [vmem:[#allocation2 + $0x68] sm:$0xff] %vm311, 0.0
      %326 = vst.msk [vmem:[#allocation2 + $0x70] sm:$0xff] %vm311, 0.0
      %327 = vst.msk [vmem:[#allocation2 + $0x78] sm:$0xff] %vm311, 0.0
      %328 = vst.msk [vmem:[#allocation2 + $0x80] sm:$0xff] %vm311, 0.0
      %329 = vst.msk [vmem:[#allocation2 + $0x88] sm:$0xff] %vm311, 0.0
      %330 = vst.msk [vmem:[#allocation2 + $0x90] sm:$0xff] %vm311, 0.0
      %331 = vst.msk [vmem:[#allocation2 + $0x98] sm:$0xff] %vm311, 0.0
      %332 = vst.msk [vmem:[#allocation2 + $0xa0] sm:$0xff] %vm311, 0.0
      %333 = vst.msk [vmem:[#allocation2 + $0xa8] sm:$0xff] %vm311, 0.0
      %334 = vst.msk [vmem:[#allocation2 + $0xb0] sm:$0xff] %vm311, 0.0
      %335 = vst.msk [vmem:[#allocation2 + $0xb8] sm:$0xff] %vm311, 0.0
      %336 = vst.msk [vmem:[#allocation2 + $0xc0] sm:$0xff] %vm311, 0.0
      %337 = vst.msk [vmem:[#allocation2 + $0xc8] sm:$0xff] %vm311, 0.0
      %338 = vst.msk [vmem:[#allocation2 + $0xd0] sm:$0xff] %vm311, 0.0
      %339 = vst.msk [vmem:[#allocation2 + $0xd8] sm:$0xff] %vm311, 0.0
      %340 = vst.msk [vmem:[#allocation2 + $0xe0] sm:$0xff] %vm311, 0.0
      %341 = vst.msk [vmem:[#allocation2 + $0xe8] sm:$0xff] %vm311, 0.0
      %342 = vst.msk [vmem:[#allocation2 + $0xf0] sm:$0xff] %vm311, 0.0
      %343 = vst.msk [vmem:[#allocation2 + $0xf8] sm:$0xff] %vm311, 0.0
      %344 = vst.msk [vmem:[#allocation2 + $0x100] sm:$0xff] %vm311, 0.0
      %345 = vst.msk [vmem:[#allocation2 + $0x108] sm:$0xff] %vm311, 0.0
      %346 = vst.msk [vmem:[#allocation2 + $0x110] sm:$0xff] %vm311, 0.0
      %347 = vst.msk [vmem:[#allocation2 + $0x118] sm:$0xff] %vm311, 0.0
      %348 = vst.msk [vmem:[#allocation2 + $0x120] sm:$0xff] %vm311, 0.0
      %349 = vst.msk [vmem:[#allocation2 + $0x128] sm:$0xff] %vm311, 0.0
      %350 = vst.msk [vmem:[#allocation2 + $0x130] sm:$0xff] %vm311, 0.0
      %351 = vst.msk [vmem:[#allocation2 + $0x138] sm:$0xff] %vm311, 0.0
      %352 = vst.msk [vmem:[#allocation2 + $0x140] sm:$0xff] %vm311, 0.0
      %353 = vst.msk [vmem:[#allocation2 + $0x148] sm:$0xff] %vm311, 0.0
      %354 = vst.msk [vmem:[#allocation2 + $0x150] sm:$0xff] %vm311, 0.0
      %355 = vst.msk [vmem:[#allocation2 + $0x158] sm:$0xff] %vm311, 0.0
      %356 = vst.msk [vmem:[#allocation2 + $0x160] sm:$0xff] %vm311, 0.0
      %357 = vst.msk [vmem:[#allocation2 + $0x168] sm:$0xff] %vm311, 0.0
      %358 = vst.msk [vmem:[#allocation2 + $0x170] sm:$0xff] %vm311, 0.0
      %359 = vst.msk [vmem:[#allocation2 + $0x178] sm:$0xff] %vm311, 0.0
      %360 = vst.msk [vmem:[#allocation2 + $0x180] sm:$0xff] %vm311, 0.0
      %361 = vst.msk [vmem:[#allocation2 + $0x188] sm:$0xff] %vm311, 0.0
      %362 = vst.msk [vmem:[#allocation2 + $0x190] sm:$0xff] %vm311, 0.0
      %363 = vst.msk [vmem:[#allocation2 + $0x198] sm:$0xff] %vm311, 0.0
      %364 = vst.msk [vmem:[#allocation2 + $0x1a0] sm:$0xff] %vm311, 0.0
      %365 = vst.msk [vmem:[#allocation2 + $0x1a8] sm:$0xff] %vm311, 0.0
      %366 = vst.msk [vmem:[#allocation2 + $0x1b0] sm:$0xff] %vm311, 0.0
      %367 = vst.msk [vmem:[#allocation2 + $0x1b8] sm:$0xff] %vm311, 0.0
      %368 = vst.msk [vmem:[#allocation2 + $0x1c0] sm:$0xff] %vm311, 0.0
      %369 = vst.msk [vmem:[#allocation2 + $0x1c8] sm:$0xff] %vm311, 0.0
      %370 = vst.msk [vmem:[#allocation2 + $0x1d0] sm:$0xff] %vm311, 0.0
      %371 = vst.msk [vmem:[#allocation2 + $0x1d8] sm:$0xff] %vm311, 0.0
      %372 = vst.msk [vmem:[#allocation2 + $0x1e0] sm:$0xff] %vm311, 0.0
      %373 = vst.msk [vmem:[#allocation2 + $0x1e8] sm:$0xff] %vm311, 0.0
      %374 = vst.msk [vmem:[#allocation2 + $0x1f0] sm:$0xff] %vm311, 0.0
      %375 = vst.msk [vmem:[#allocation2 + $0x1f8] sm:$0xff] %vm311, 0.0
      %376 = vst.msk [vmem:[#allocation2 + $0x200] sm:$0xff] %vm311, 0.0
      %377 = vst.msk [vmem:[#allocation2 + $0x208] sm:$0xff] %vm311, 0.0
      %378 = vst.msk [vmem:[#allocation2 + $0x210] sm:$0xff] %vm311, 0.0
      %379 = vst.msk [vmem:[#allocation2 + $0x218] sm:$0xff] %vm311, 0.0
      %380 = vst.msk [vmem:[#allocation2 + $0x220] sm:$0xff] %vm311, 0.0
      %381 = vst.msk [vmem:[#allocation2 + $0x228] sm:$0xff] %vm311, 0.0
      %382 = vst.msk [vmem:[#allocation2 + $0x230] sm:$0xff] %vm311, 0.0
      %383 = vst.msk [vmem:[#allocation2 + $0x238] sm:$0xff] %vm311, 0.0
      %s384 = scalar_lea.vmem [#allocation2], 32
      %385 = vst.msk [vmem:[%s384 + $0x8] sm:$0xff] %vm311, %v279
      %386 = vst.msk [vmem:[%s384 + $0x10] sm:$0xff] %vm311, %v280
      %387 = vst.msk [vmem:[%s384 + $0x28] sm:$0xff] %vm311, %v281
      %388 = vst.msk [vmem:[%s384 + $0x30] sm:$0xff] %vm311, %v282
      %389 = vst.msk [vmem:[%s384 + $0x48] sm:$0xff] %vm311, %v283
      %390 = vst.msk [vmem:[%s384 + $0x50] sm:$0xff] %vm311, %v284
      %391 = vst.msk [vmem:[%s384 + $0x68] sm:$0xff] %vm311, %v285
      %392 = vst.msk [vmem:[%s384 + $0x70] sm:$0xff] %vm311, %v286
      %393 = vst.msk [vmem:[%s384 + $0x88] sm:$0xff] %vm311, %v287
      %394 = vst.msk [vmem:[%s384 + $0x90] sm:$0xff] %vm311, %v288
      %395 = vst.msk [vmem:[%s384 + $0xa8] sm:$0xff] %vm311, %v289
      %396 = vst.msk [vmem:[%s384 + $0xb0] sm:$0xff] %vm311, %v290
      %397 = vst.msk [vmem:[%s384 + $0xc8] sm:$0xff] %vm311, %v291
      %398 = vst.msk [vmem:[%s384 + $0xd0] sm:$0xff] %vm311, %v292
      %399 = vst.msk [vmem:[%s384 + $0xe8] sm:$0xff] %vm311, %v293
      %400 = vst.msk [vmem:[%s384 + $0xf0] sm:$0xff] %vm311, %v294
      %401 = vst.msk [vmem:[%s384 + $0x108] sm:$0xff] %vm311, %v295
      %402 = vst.msk [vmem:[%s384 + $0x110] sm:$0xff] %vm311, %v296
      %403 = vst.msk [vmem:[%s384 + $0x128] sm:$0xff] %vm311, %v297
      %404 = vst.msk [vmem:[%s384 + $0x130] sm:$0xff] %vm311, %v298
      %405 = vst.msk [vmem:[%s384 + $0x148] sm:$0xff] %vm311, %v299
      %406 = vst.msk [vmem:[%s384 + $0x150] sm:$0xff] %vm311, %v300
      %407 = vst.msk [vmem:[%s384 + $0x168] sm:$0xff] %vm311, %v301
      %408 = vst.msk [vmem:[%s384 + $0x170] sm:$0xff] %vm311, %v302
      %409 = vst.msk [vmem:[%s384 + $0x188] sm:$0xff] %vm311, %v303
      %410 = vst.msk [vmem:[%s384 + $0x190] sm:$0xff] %vm311, %v304
      %411 = vst.msk [vmem:[%s384 + $0x1a8] sm:$0xff] %vm311, %v305
      %412 = vst.msk [vmem:[%s384 + $0x1b0] sm:$0xff] %vm311, %v306
      %413 = vst.msk [vmem:[%s384 + $0x1c8] sm:$0xff] %vm311, %v307
      %414 = vst.msk [vmem:[%s384 + $0x1d0] sm:$0xff] %vm311, %v308
      %415 = vst.msk [vmem:[%s384 + $0x1e8] sm:$0xff] %vm311, %v309
      %416 = vst.msk [vmem:[%s384 + $0x1f0] sm:$0xff] %vm311, %v310
      %v417 = vld [vmem:[%s3] sm:$0xf]
      %v418 = vld [vmem:[%s4] sm:$0x1]
      %v420 = vperm.slane %v418, 0
      %v423 = vsel %vm311, %v279, 0
      %v426 = vsel %vm311, %v280, 0
      %v429 = vsel %vm311, %v281, 0
      %v432 = vsel %vm311, %v282, 0
      %v435 = vsel %vm311, %v283, 0
      %v438 = vsel %vm311, %v284, 0
      %v441 = vsel %vm311, %v285, 0
      %v444 = vsel %vm311, %v286, 0
      %v447 = vsel %vm311, %v287, 0
      %v450 = vsel %vm311, %v288, 0
      %v453 = vsel %vm311, %v289, 0
      %v456 = vsel %vm311, %v290, 0
      %v459 = vsel %vm311, %v291, 0
      %v462 = vsel %vm311, %v292, 0
      %v465 = vsel %vm311, %v293, 0
      %v468 = vsel %vm311, %v294, 0
      %v471 = vsel %vm311, %v295, 0
      %v474 = vsel %vm311, %v296, 0
      %v477 = vsel %vm311, %v297, 0
      %v480 = vsel %vm311, %v298, 0
      %v483 = vsel %vm311, %v299, 0
      %v486 = vsel %vm311, %v300, 0
      %v489 = vsel %vm311, %v301, 0
      %v492 = vsel %vm311, %v302, 0
      %v495 = vsel %vm311, %v303, 0
      %v498 = vsel %vm311, %v304, 0
      %v501 = vsel %vm311, %v305, 0
      %v504 = vsel %vm311, %v306, 0
      %v507 = vsel %vm311, %v307, 0
      %v510 = vsel %vm311, %v308, 0
      %v513 = vsel %vm311, %v309, 0
      %v516 = vsel %vm311, %v310, 0
      %vm518 = vcmask 1043456
      %v520 = vsel %vm518, %v417, 0
      %522 = vmatpush.msra.mxu0 0.0
      %523 = vmatpush.msra.mxu0 0.0
      %524 = vmatpush.msra.mxu0 0.0
      %525 = vmatpush.msra.mxu0 0.0
      %526 = vmatpush.msra.mxu0 0.0
      %527 = vmatpush.msra.mxu0 0.0
      %528 = vmatpush.msra.mxu0 0.0
      %529 = vmatpush.msra.mxu0 0.0
      %530 = vmatpush.msra.mxu0 0.0
      %531 = vmatpush.msra.mxu0 0.0
      %532 = vmatpush.msra.mxu0 0.0
      %533 = vmatpush.msra.mxu0 0.0
      %534 = vmatpush.msra.mxu0 0.0
      %535 = vmatpush.msra.mxu0 0.0
      %536 = vmatpush.msra.mxu0 0.0
      %537 = vmatpush.msra.mxu0 %v520
      %538 = vmatmul.f32.gmra.mxu0 %v423
      %v539 = vpop.f32.mrf.mxu0
      %v540 = vadd.f32 %v420, %v539
      %541 = vmatmul.f32.gmra.mxu0 %v426
      %v542 = vpop.f32.mrf.mxu0
      %v543 = vadd.f32 %v420, %v542
      %544 = vmatmul.f32.gmra.mxu0 %v429
      %v545 = vpop.f32.mrf.mxu0
      %v546 = vadd.f32 %v420, %v545
      %547 = vmatmul.f32.gmra.mxu0 %v432
      %v548 = vpop.f32.mrf.mxu0
      %v549 = vadd.f32 %v420, %v548
      %550 = vmatmul.f32.gmra.mxu0 %v435
      %v551 = vpop.f32.mrf.mxu0
      %v552 = vadd.f32 %v420, %v551
      %553 = vmatmul.f32.gmra.mxu0 %v438
      %v554 = vpop.f32.mrf.mxu0
      %v555 = vadd.f32 %v420, %v554
      %556 = vmatmul.f32.gmra.mxu0 %v441
      %v557 = vpop.f32.mrf.mxu0
      %v558 = vadd.f32 %v420, %v557
      %559 = vmatmul.f32.gmra.mxu0 %v444
      %v560 = vpop.f32.mrf.mxu0
      %v561 = vadd.f32 %v420, %v560
      %562 = vmatmul.f32.gmra.mxu0 %v447
      %v563 = vpop.f32.mrf.mxu0
      %v564 = vadd.f32 %v420, %v563
      %565 = vmatmul.f32.gmra.mxu0 %v450
      %v566 = vpop.f32.mrf.mxu0
      %v567 = vadd.f32 %v420, %v566
      %568 = vmatmul.f32.gmra.mxu0 %v453
      %v569 = vpop.f32.mrf.mxu0
      %v570 = vadd.f32 %v420, %v569
      %571 = vmatmul.f32.gmra.mxu0 %v456
      %v572 = vpop.f32.mrf.mxu0
      %v573 = vadd.f32 %v420, %v572
      %574 = vmatmul.f32.gmra.mxu0 %v459
      %v575 = vpop.f32.mrf.mxu0
      %v576 = vadd.f32 %v420, %v575
      %577 = vmatmul.f32.gmra.mxu0 %v462
      %v578 = vpop.f32.mrf.mxu0
      %v579 = vadd.f32 %v420, %v578
      %580 = vmatmul.f32.gmra.mxu0 %v465
      %v581 = vpop.f32.mrf.mxu0
      %v582 = vadd.f32 %v420, %v581
      %583 = vmatmul.f32.gmra.mxu0 %v468
      %v584 = vpop.f32.mrf.mxu0
      %v585 = vadd.f32 %v420, %v584
      %586 = vmatmul.f32.gmra.mxu0 %v471
      %v587 = vpop.f32.mrf.mxu0
      %v588 = vadd.f32 %v420, %v587
      %589 = vmatmul.f32.gmra.mxu0 %v474
      %v590 = vpop.f32.mrf.mxu0
      %v591 = vadd.f32 %v420, %v590
      %592 = vmatmul.f32.gmra.mxu0 %v477
      %v593 = vpop.f32.mrf.mxu0
      %v594 = vadd.f32 %v420, %v593
      %595 = vmatmul.f32.gmra.mxu0 %v480
      %v596 = vpop.f32.mrf.mxu0
      %v597 = vadd.f32 %v420, %v596
      %598 = vmatmul.f32.gmra.mxu0 %v483
      %v599 = vpop.f32.mrf.mxu0
      %v600 = vadd.f32 %v420, %v599
      %601 = vmatmul.f32.gmra.mxu0 %v486
      %v602 = vpop.f32.mrf.mxu0
      %v603 = vadd.f32 %v420, %v602
      %604 = vmatmul.f32.gmra.mxu0 %v489
      %v605 = vpop.f32.mrf.mxu0
      %v606 = vadd.f32 %v420, %v605
      %607 = vmatmul.f32.gmra.mxu0 %v492
      %v608 = vpop.f32.mrf.mxu0
      %v609 = vadd.f32 %v420, %v608
      %610 = vmatmul.f32.gmra.mxu0 %v495
      %v611 = vpop.f32.mrf.mxu0
      %v612 = vadd.f32 %v420, %v611
      %613 = vmatmul.f32.gmra.mxu0 %v498
      %v614 = vpop.f32.mrf.mxu0
      %v615 = vadd.f32 %v420, %v614
      %616 = vmatmul.f32.gmra.mxu0 %v501
      %v617 = vpop.f32.mrf.mxu0
      %v618 = vadd.f32 %v420, %v617
      %619 = vmatmul.f32.gmra.mxu0 %v504
      %v620 = vpop.f32.mrf.mxu0
      %v621 = vadd.f32 %v420, %v620
      %622 = vmatmul.f32.gmra.mxu0 %v507
      %v623 = vpop.f32.mrf.mxu0
      %v624 = vadd.f32 %v420, %v623
      %625 = vmatmul.f32.gmra.mxu0 %v510
      %v626 = vpop.f32.mrf.mxu0
      %v627 = vadd.f32 %v420, %v626
      %628 = vmatmul.f32.gmra.mxu0 %v513
      %v629 = vpop.f32.mrf.mxu0
      %v630 = vadd.f32 %v420, %v629
      %631 = vmatmul.f32.gmra.mxu0 %v516
      %v632 = vpop.f32.mrf.mxu0
      %v633 = vadd.f32 %v420, %v632
      %634 = vdwg.mxu0
      %v635 = vld [vmem:[#allocation2] sm:$0xff]
      %v636 = vld [vmem:[#allocation2 + $0x8] sm:$0xff]
      %v637 = vld [vmem:[#allocation2 + $0x10] sm:$0xff]
      %v638 = vld [vmem:[#allocation2 + $0x18] sm:$0xff]
      %v639 = vld [vmem:[#allocation2 + $0x20] sm:$0xff]
      %v640 = vld [vmem:[#allocation2 + $0x28] sm:$0xff]
      %v641 = vld [vmem:[#allocation2 + $0x30] sm:$0xff]
      %v642 = vld [vmem:[#allocation2 + $0x38] sm:$0xff]
      %v643 = vld [vmem:[#allocation2 + $0x40] sm:$0xff]
      %v644 = vld [vmem:[#allocation2 + $0x48] sm:$0xff]
      %v645 = vld [vmem:[#allocation2 + $0x50] sm:$0xff]
      %v646 = vld [vmem:[#allocation2 + $0x58] sm:$0xff]
      %v647 = vld [vmem:[#allocation2 + $0x60] sm:$0xff]
      %v648 = vld [vmem:[#allocation2 + $0x68] sm:$0xff]
      %v649 = vld [vmem:[#allocation2 + $0x70] sm:$0xff]
      %v650 = vld [vmem:[#allocation2 + $0x78] sm:$0xff]
      %v651 = vld [vmem:[#allocation2 + $0x80] sm:$0xff]
      %v652 = vld [vmem:[#allocation2 + $0x88] sm:$0xff]
      %v653 = vld [vmem:[#allocation2 + $0x90] sm:$0xff]
      %v654 = vld [vmem:[#allocation2 + $0x98] sm:$0xff]
      %v655 = vld [vmem:[#allocation2 + $0xa0] sm:$0xff]
      %v656 = vld [vmem:[#allocation2 + $0xa8] sm:$0xff]
      %v657 = vld [vmem:[#allocation2 + $0xb0] sm:$0xff]
      %v658 = vld [vmem:[#allocation2 + $0xb8] sm:$0xff]
      %v659 = vld [vmem:[#allocation2 + $0xc0] sm:$0xff]
      %v660 = vld [vmem:[#allocation2 + $0xc8] sm:$0xff]
      %v661 = vld [vmem:[#allocation2 + $0xd0] sm:$0xff]
      %v662 = vld [vmem:[#allocation2 + $0xd8] sm:$0xff]
      %v663 = vld [vmem:[#allocation2 + $0xe0] sm:$0xff]
      %v664 = vld [vmem:[#allocation2 + $0xe8] sm:$0xff]
      %v665 = vld [vmem:[#allocation2 + $0xf0] sm:$0xff]
      %v666 = vld [vmem:[#allocation2 + $0xf8] sm:$0xff]
      %v667 = vld [vmem:[#allocation2 + $0x100] sm:$0xff]
      %v668 = vld [vmem:[#allocation2 + $0x108] sm:$0xff]
      %v669 = vld [vmem:[#allocation2 + $0x110] sm:$0xff]
      %v670 = vld [vmem:[#allocation2 + $0x118] sm:$0xff]
      %v671 = vld [vmem:[#allocation2 + $0x120] sm:$0xff]
      %v672 = vld [vmem:[#allocation2 + $0x128] sm:$0xff]
      %v673 = vld [vmem:[#allocation2 + $0x130] sm:$0xff]
      %v674 = vld [vmem:[#allocation2 + $0x138] sm:$0xff]
      %v675 = vld [vmem:[#allocation2 + $0x140] sm:$0xff]
      %v676 = vld [vmem:[#allocation2 + $0x148] sm:$0xff]
      %v677 = vld [vmem:[#allocation2 + $0x150] sm:$0xff]
      %v678 = vld [vmem:[#allocation2 + $0x158] sm:$0xff]
      %v679 = vld [vmem:[#allocation2 + $0x160] sm:$0xff]
      %v680 = vld [vmem:[#allocation2 + $0x168] sm:$0xff]
      %v681 = vld [vmem:[#allocation2 + $0x170] sm:$0xff]
      %v682 = vld [vmem:[#allocation2 + $0x178] sm:$0xff]
      %v683 = vld [vmem:[#allocation2 + $0x180] sm:$0xff]
      %v684 = vld [vmem:[#allocation2 + $0x188] sm:$0xff]
      %v685 = vld [vmem:[#allocation2 + $0x190] sm:$0xff]
      %v686 = vld [vmem:[#allocation2 + $0x198] sm:$0xff]
      %v687 = vld [vmem:[#allocation2 + $0x1a0] sm:$0xff]
      %v688 = vld [vmem:[#allocation2 + $0x1a8] sm:$0xff]
      %v689 = vld [vmem:[#allocation2 + $0x1b0] sm:$0xff]
      %v690 = vld [vmem:[#allocation2 + $0x1b8] sm:$0xff]
      %v691 = vld [vmem:[#allocation2 + $0x1c0] sm:$0xff]
      %v692 = vld [vmem:[#allocation2 + $0x1c8] sm:$0xff]
      %v693 = vld [vmem:[#allocation2 + $0x1d0] sm:$0xff]
      %v694 = vld [vmem:[#allocation2 + $0x1d8] sm:$0xff]
      %v695 = vld [vmem:[#allocation2 + $0x1e0] sm:$0xff]
      %v696 = vld [vmem:[#allocation2 + $0x1e8] sm:$0xff]
      %v697 = vld [vmem:[#allocation2 + $0x1f0] sm:$0xff]
      %v698 = vld [vmem:[#allocation2 + $0x1f8] sm:$0xff]
      %v699 = vld [vmem:[#allocation2 + $0x200] sm:$0xff]
      %v700 = vld [vmem:[#allocation2 + $0x208] sm:$0xff]
      %v701 = vld [vmem:[#allocation2 + $0x210] sm:$0xff]
      %v702 = vld [vmem:[#allocation2 + $0x218] sm:$0xff]
      %v703 = vld [vmem:[#allocation2 + $0x220] sm:$0xff]
      %v704 = vld [vmem:[#allocation2 + $0x228] sm:$0xff]
      %v705 = vld [vmem:[#allocation2 + $0x230] sm:$0xff]
      %v706 = vld [vmem:[#allocation2 + $0x238] sm:$0xff]
      %vm755 = vcmask 1040384
      %v756 = vrot.slane %v635, 7
      %v757 = vrot.slane %v636, 7
      %v758 = vsel %vm755, %v756, %v757
      %v759 = vrot.slane %v637, 7
      %v760 = vsel %vm755, %v757, %v759
      %v761 = vrot.slane %v639, 7
      %v762 = vrot.slane %v640, 7
      %v763 = vsel %vm755, %v761, %v762
      %v764 = vrot.slane %v641, 7
      %v765 = vsel %vm755, %v762, %v764
      %v766 = vrot.slane %v643, 7
      %v767 = vrot.slane %v644, 7
      %v768 = vsel %vm755, %v766, %v767
      %v769 = vrot.slane %v645, 7
      %v770 = vsel %vm755, %v767, %v769
      %v771 = vrot.slane %v647, 7
      %v772 = vrot.slane %v648, 7
      %v773 = vsel %vm755, %v771, %v772
      %v774 = vrot.slane %v649, 7
      %v775 = vsel %vm755, %v772, %v774
      %v776 = vrot.slane %v651, 7
      %v777 = vrot.slane %v652, 7
      %v778 = vsel %vm755, %v776, %v777
      %v779 = vrot.slane %v653, 7
      %v780 = vsel %vm755, %v777, %v779
      %v781 = vrot.slane %v655, 7
      %v782 = vrot.slane %v656, 7
      %v783 = vsel %vm755, %v781, %v782
      %v784 = vrot.slane %v657, 7
      %v785 = vsel %vm755, %v782, %v784
      %v786 = vrot.slane %v659, 7
      %v787 = vrot.slane %v660, 7
      %v788 = vsel %vm755, %v786, %v787
      %v789 = vrot.slane %v661, 7
      %v790 = vsel %vm755, %v787, %v789
      %v791 = vrot.slane %v663, 7
      %v792 = vrot.slane %v664, 7
      %v793 = vsel %vm755, %v791, %v792
      %v794 = vrot.slane %v665, 7
      %v795 = vsel %vm755, %v792, %v794
      %v796 = vrot.slane %v667, 7
      %v797 = vrot.slane %v668, 7
      %v798 = vsel %vm755, %v796, %v797
      %v799 = vrot.slane %v669, 7
      %v800 = vsel %vm755, %v797, %v799
      %v801 = vrot.slane %v671, 7
      %v802 = vrot.slane %v672, 7
      %v803 = vsel %vm755, %v801, %v802
      %v804 = vrot.slane %v673, 7
      %v805 = vsel %vm755, %v802, %v804
      %v806 = vrot.slane %v675, 7
      %v807 = vrot.slane %v676, 7
      %v808 = vsel %vm755, %v806, %v807
      %v809 = vrot.slane %v677, 7
      %v810 = vsel %vm755, %v807, %v809
      %v811 = vrot.slane %v679, 7
      %v812 = vrot.slane %v680, 7
      %v813 = vsel %vm755, %v811, %v812
      %v814 = vrot.slane %v681, 7
      %v815 = vsel %vm755, %v812, %v814
      %v816 = vrot.slane %v683, 7
      %v817 = vrot.slane %v684, 7
      %v818 = vsel %vm755, %v816, %v817
      %v819 = vrot.slane %v685, 7
      %v820 = vsel %vm755, %v817, %v819
      %v821 = vrot.slane %v687, 7
      %v822 = vrot.slane %v688, 7
      %v823 = vsel %vm755, %v821, %v822
      %v824 = vrot.slane %v689, 7
      %v825 = vsel %vm755, %v822, %v824
      %v826 = vrot.slane %v691, 7
      %v827 = vrot.slane %v692, 7
      %v828 = vsel %vm755, %v826, %v827
      %v829 = vrot.slane %v693, 7
      %v830 = vsel %vm755, %v827, %v829
      %v831 = vrot.slane %v695, 7
      %v832 = vrot.slane %v696, 7
      %v833 = vsel %vm755, %v831, %v832
      %v834 = vrot.slane %v697, 7
      %v835 = vsel %vm755, %v832, %v834
      %v836 = vld [vmem:[%s1] sm:$0xf]
      %s837 = scalar_lea.vmem %s1, 4
      %v838 = vld [vmem:[%s837] sm:$0xf]
      %v839 = vsel %vm311, %v636, 0
      %v841 = vsel %vm311, %v637, 0
      %v843 = vsel %vm311, %v640, 0
      %v845 = vsel %vm311, %v641, 0
      %v847 = vsel %vm311, %v644, 0
      %v849 = vsel %vm311, %v645, 0
      %v851 = vsel %vm311, %v648, 0
      %v853 = vsel %vm311, %v649, 0
      %v855 = vsel %vm311, %v652, 0
      %v857 = vsel %vm311, %v653, 0
      %v859 = vsel %vm311, %v656, 0
      %v861 = vsel %vm311, %v657, 0
      %v863 = vsel %vm311, %v660, 0
      %v865 = vsel %vm311, %v661, 0
      %v867 = vsel %vm311, %v664, 0
      %v869 = vsel %vm311, %v665, 0
      %v871 = vsel %vm311, %v668, 0
      %v873 = vsel %vm311, %v669, 0
      %v875 = vsel %vm311, %v672, 0
      %v877 = vsel %vm311, %v673, 0
      %v879 = vsel %vm311, %v676, 0
      %v881 = vsel %vm311, %v677, 0
      %v883 = vsel %vm311, %v680, 0
      %v885 = vsel %vm311, %v681, 0
      %v887 = vsel %vm311, %v684, 0
      %v889 = vsel %vm311, %v685, 0
      %v891 = vsel %vm311, %v688, 0
      %v893 = vsel %vm311, %v689, 0
      %v895 = vsel %vm311, %v692, 0
      %v897 = vsel %vm311, %v693, 0
      %v899 = vsel %vm311, %v696, 0
      %v901 = vsel %vm311, %v697, 0
      %v904 = vsel %vm518, %v838, 0
      %906 = vmatpush.msra.mxu0 0.0
      %907 = vmatpush.msra.mxu0 0.0
      %908 = vmatpush.msra.mxu0 0.0
      %909 = vmatpush.msra.mxu0 0.0
      %910 = vmatpush.msra.mxu0 0.0
      %911 = vmatpush.msra.mxu0 0.0
      %912 = vmatpush.msra.mxu0 0.0
      %913 = vmatpush.msra.mxu0 0.0
      %914 = vmatpush.msra.mxu0 0.0
      %915 = vmatpush.msra.mxu0 0.0
      %916 = vmatpush.msra.mxu0 0.0
      %917 = vmatpush.msra.mxu0 0.0
      %918 = vmatpush.msra.mxu0 0.0
      %919 = vmatpush.msra.mxu0 0.0
      %920 = vmatpush.msra.mxu0 0.0
      %921 = vmatpush.msra.mxu0 %v904
      %922 = vmatmul.f32.gmra.mxu0 %v839
      %v923 = vpop.f32.mrf.mxu0
      %v924 = vadd.f32 0.0, %v923
      %925 = vmatmul.f32.gmra.mxu0 %v841
      %v926 = vpop.f32.mrf.mxu0
      %v927 = vadd.f32 0.0, %v926
      %928 = vmatmul.f32.gmra.mxu0 %v843
      %v929 = vpop.f32.mrf.mxu0
      %v930 = vadd.f32 0.0, %v929
      %931 = vmatmul.f32.gmra.mxu0 %v845
      %v932 = vpop.f32.mrf.mxu0
      %v933 = vadd.f32 0.0, %v932
      %934 = vmatmul.f32.gmra.mxu0 %v847
      %v935 = vpop.f32.mrf.mxu0
      %v936 = vadd.f32 0.0, %v935
      %937 = vmatmul.f32.gmra.mxu0 %v849
      %v938 = vpop.f32.mrf.mxu0
      %v939 = vadd.f32 0.0, %v938
      %940 = vmatmul.f32.gmra.mxu0 %v851
      %v941 = vpop.f32.mrf.mxu0
      %v942 = vadd.f32 0.0, %v941
      %943 = vmatmul.f32.gmra.mxu0 %v853
      %v944 = vpop.f32.mrf.mxu0
      %v945 = vadd.f32 0.0, %v944
      %946 = vmatmul.f32.gmra.mxu0 %v855
      %v947 = vpop.f32.mrf.mxu0
      %v948 = vadd.f32 0.0, %v947
      %949 = vmatmul.f32.gmra.mxu0 %v857
      %v950 = vpop.f32.mrf.mxu0
      %v951 = vadd.f32 0.0, %v950
      %952 = vmatmul.f32.gmra.mxu0 %v859
      %v953 = vpop.f32.mrf.mxu0
      %v954 = vadd.f32 0.0, %v953
      %955 = vmatmul.f32.gmra.mxu0 %v861
      %v956 = vpop.f32.mrf.mxu0
      %v957 = vadd.f32 0.0, %v956
      %958 = vmatmul.f32.gmra.mxu0 %v863
      %v959 = vpop.f32.mrf.mxu0
      %v960 = vadd.f32 0.0, %v959
      %961 = vmatmul.f32.gmra.mxu0 %v865
      %v962 = vpop.f32.mrf.mxu0
      %v963 = vadd.f32 0.0, %v962
      %964 = vmatmul.f32.gmra.mxu0 %v867
      %v965 = vpop.f32.mrf.mxu0
      %v966 = vadd.f32 0.0, %v965
      %967 = vmatmul.f32.gmra.mxu0 %v869
      %v968 = vpop.f32.mrf.mxu0
      %v969 = vadd.f32 0.0, %v968
      %970 = vmatmul.f32.gmra.mxu0 %v871
      %v971 = vpop.f32.mrf.mxu0
      %v972 = vadd.f32 0.0, %v971
      %973 = vmatmul.f32.gmra.mxu0 %v873
      %v974 = vpop.f32.mrf.mxu0
      %v975 = vadd.f32 0.0, %v974
      %976 = vmatmul.f32.gmra.mxu0 %v875
      %v977 = vpop.f32.mrf.mxu0
      %v978 = vadd.f32 0.0, %v977
      %979 = vmatmul.f32.gmra.mxu0 %v877
      %v980 = vpop.f32.mrf.mxu0
      %v981 = vadd.f32 0.0, %v980
      %982 = vmatmul.f32.gmra.mxu0 %v879
      %v983 = vpop.f32.mrf.mxu0
      %v984 = vadd.f32 0.0, %v983
      %985 = vmatmul.f32.gmra.mxu0 %v881
      %v986 = vpop.f32.mrf.mxu0
      %v987 = vadd.f32 0.0, %v986
      %988 = vmatmul.f32.gmra.mxu0 %v883
      %v989 = vpop.f32.mrf.mxu0
      %v990 = vadd.f32 0.0, %v989
      %991 = vmatmul.f32.gmra.mxu0 %v885
      %v992 = vpop.f32.mrf.mxu0
      %v993 = vadd.f32 0.0, %v992
      %994 = vmatmul.f32.gmra.mxu0 %v887
      %v995 = vpop.f32.mrf.mxu0
      %v996 = vadd.f32 0.0, %v995
      %997 = vmatmul.f32.gmra.mxu0 %v889
      %v998 = vpop.f32.mrf.mxu0
      %v999 = vadd.f32 0.0, %v998
      %1000 = vmatmul.f32.gmra.mxu0 %v891
      %v1001 = vpop.f32.mrf.mxu0
      %v1002 = vadd.f32 0.0, %v1001
      %1003 = vmatmul.f32.gmra.mxu0 %v893
      %v1004 = vpop.f32.mrf.mxu0
      %v1005 = vadd.f32 0.0, %v1004
      %1006 = vmatmul.f32.gmra.mxu0 %v895
      %v1007 = vpop.f32.mrf.mxu0
      %v1008 = vadd.f32 0.0, %v1007
      %1009 = vmatmul.f32.gmra.mxu0 %v897
      %v1010 = vpop.f32.mrf.mxu0
      %v1011 = vadd.f32 0.0, %v1010
      %1012 = vmatmul.f32.gmra.mxu0 %v899
      %v1013 = vpop.f32.mrf.mxu0
      %v1014 = vadd.f32 0.0, %v1013
      %1015 = vmatmul.f32.gmra.mxu0 %v901
      %v1016 = vpop.f32.mrf.mxu0
      %v1017 = vadd.f32 0.0, %v1016
      %1018 = vdwg.mxu0
      %v1019 = vsel %vm311, %v758, 0
      %v1021 = vsel %vm311, %v760, 0
      %v1023 = vsel %vm311, %v763, 0
      %v1025 = vsel %vm311, %v765, 0
      %v1027 = vsel %vm311, %v768, 0
      %v1029 = vsel %vm311, %v770, 0
      %v1031 = vsel %vm311, %v773, 0
      %v1033 = vsel %vm311, %v775, 0
      %v1035 = vsel %vm311, %v778, 0
      %v1037 = vsel %vm311, %v780, 0
      %v1039 = vsel %vm311, %v783, 0
      %v1041 = vsel %vm311, %v785, 0
      %v1043 = vsel %vm311, %v788, 0
      %v1045 = vsel %vm311, %v790, 0
      %v1047 = vsel %vm311, %v793, 0
      %v1049 = vsel %vm311, %v795, 0
      %v1051 = vsel %vm311, %v798, 0
      %v1053 = vsel %vm311, %v800, 0
      %v1055 = vsel %vm311, %v803, 0
      %v1057 = vsel %vm311, %v805, 0
      %v1059 = vsel %vm311, %v808, 0
      %v1061 = vsel %vm311, %v810, 0
      %v1063 = vsel %vm311, %v813, 0
      %v1065 = vsel %vm311, %v815, 0
      %v1067 = vsel %vm311, %v818, 0
      %v1069 = vsel %vm311, %v820, 0
      %v1071 = vsel %vm311, %v823, 0
      %v1073 = vsel %vm311, %v825, 0
      %v1075 = vsel %vm311, %v828, 0
      %v1077 = vsel %vm311, %v830, 0
      %v1079 = vsel %vm311, %v833, 0
      %v1081 = vsel %vm311, %v835, 0
      %v1084 = vsel %vm518, %v836, 0
      %1086 = vmatpush.msra.mxu0 0.0
      %1087 = vmatpush.msra.mxu0 0.0
      %1088 = vmatpush.msra.mxu0 0.0
      %1089 = vmatpush.msra.mxu0 0.0
      %1090 = vmatpush.msra.mxu0 0.0
      %1091 = vmatpush.msra.mxu0 0.0
      %1092 = vmatpush.msra.mxu0 0.0
      %1093 = vmatpush.msra.mxu0 0.0
      %1094 = vmatpush.msra.mxu0 0.0
      %1095 = vmatpush.msra.mxu0 0.0
      %1096 = vmatpush.msra.mxu0 0.0
      %1097 = vmatpush.msra.mxu0 0.0
      %1098 = vmatpush.msra.mxu0 0.0
      %1099 = vmatpush.msra.mxu0 0.0
      %1100 = vmatpush.msra.mxu0 0.0
      %1101 = vmatpush.msra.mxu0 %v1084
      %1102 = vmatmul.f32.gmra.mxu0 %v1019
      %v1103 = vpop.f32.mrf.mxu0
      %v1104 = vadd.f32 %v924, %v1103
      %1105 = vmatmul.f32.gmra.mxu0 %v1021
      %v1106 = vpop.f32.mrf.mxu0
      %v1107 = vadd.f32 %v927, %v1106
      %1108 = vmatmul.f32.gmra.mxu0 %v1023
      %v1109 = vpop.f32.mrf.mxu0
      %v1110 = vadd.f32 %v930, %v1109
      %1111 = vmatmul.f32.gmra.mxu0 %v1025
      %v1112 = vpop.f32.mrf.mxu0
      %v1113 = vadd.f32 %v933, %v1112
      %1114 = vmatmul.f32.gmra.mxu0 %v1027
      %v1115 = vpop.f32.mrf.mxu0
      %v1116 = vadd.f32 %v936, %v1115
      %1117 = vmatmul.f32.gmra.mxu0 %v1029
      %v1118 = vpop.f32.mrf.mxu0
      %v1119 = vadd.f32 %v939, %v1118
      %1120 = vmatmul.f32.gmra.mxu0 %v1031
      %v1121 = vpop.f32.mrf.mxu0
      %v1122 = vadd.f32 %v942, %v1121
      %1123 = vmatmul.f32.gmra.mxu0 %v1033
      %v1124 = vpop.f32.mrf.mxu0
      %v1125 = vadd.f32 %v945, %v1124
      %1126 = vmatmul.f32.gmra.mxu0 %v1035
      %v1127 = vpop.f32.mrf.mxu0
      %v1128 = vadd.f32 %v948, %v1127
      %1129 = vmatmul.f32.gmra.mxu0 %v1037
      %v1130 = vpop.f32.mrf.mxu0
      %v1131 = vadd.f32 %v951, %v1130
      %1132 = vmatmul.f32.gmra.mxu0 %v1039
      %v1133 = vpop.f32.mrf.mxu0
      %v1134 = vadd.f32 %v954, %v1133
      %1135 = vmatmul.f32.gmra.mxu0 %v1041
      %v1136 = vpop.f32.mrf.mxu0
      %v1137 = vadd.f32 %v957, %v1136
      %1138 = vmatmul.f32.gmra.mxu0 %v1043
      %v1139 = vpop.f32.mrf.mxu0
      %v1140 = vadd.f32 %v960, %v1139
      %1141 = vmatmul.f32.gmra.mxu0 %v1045
      %v1142 = vpop.f32.mrf.mxu0
      %v1143 = vadd.f32 %v963, %v1142
      %1144 = vmatmul.f32.gmra.mxu0 %v1047
      %v1145 = vpop.f32.mrf.mxu0
      %v1146 = vadd.f32 %v966, %v1145
      %1147 = vmatmul.f32.gmra.mxu0 %v1049
      %v1148 = vpop.f32.mrf.mxu0
      %v1149 = vadd.f32 %v969, %v1148
      %1150 = vmatmul.f32.gmra.mxu0 %v1051
      %v1151 = vpop.f32.mrf.mxu0
      %v1152 = vadd.f32 %v972, %v1151
      %1153 = vmatmul.f32.gmra.mxu0 %v1053
      %v1154 = vpop.f32.mrf.mxu0
      %v1155 = vadd.f32 %v975, %v1154
      %1156 = vmatmul.f32.gmra.mxu0 %v1055
      %v1157 = vpop.f32.mrf.mxu0
      %v1158 = vadd.f32 %v978, %v1157
      %1159 = vmatmul.f32.gmra.mxu0 %v1057
      %v1160 = vpop.f32.mrf.mxu0
      %v1161 = vadd.f32 %v981, %v1160
      %1162 = vmatmul.f32.gmra.mxu0 %v1059
      %v1163 = vpop.f32.mrf.mxu0
      %v1164 = vadd.f32 %v984, %v1163
      %1165 = vmatmul.f32.gmra.mxu0 %v1061
      %v1166 = vpop.f32.mrf.mxu0
      %v1167 = vadd.f32 %v987, %v1166
      %1168 = vmatmul.f32.gmra.mxu0 %v1063
      %v1169 = vpop.f32.mrf.mxu0
      %v1170 = vadd.f32 %v990, %v1169
      %1171 = vmatmul.f32.gmra.mxu0 %v1065
      %v1172 = vpop.f32.mrf.mxu0
      %v1173 = vadd.f32 %v993, %v1172
      %1174 = vmatmul.f32.gmra.mxu0 %v1067
      %v1175 = vpop.f32.mrf.mxu0
      %v1176 = vadd.f32 %v996, %v1175
      %1177 = vmatmul.f32.gmra.mxu0 %v1069
      %v1178 = vpop.f32.mrf.mxu0
      %v1179 = vadd.f32 %v999, %v1178
      %1180 = vmatmul.f32.gmra.mxu0 %v1071
      %v1181 = vpop.f32.mrf.mxu0
      %v1182 = vadd.f32 %v1002, %v1181
      %1183 = vmatmul.f32.gmra.mxu0 %v1073
      %v1184 = vpop.f32.mrf.mxu0
      %v1185 = vadd.f32 %v1005, %v1184
      %1186 = vmatmul.f32.gmra.mxu0 %v1075
      %v1187 = vpop.f32.mrf.mxu0
      %v1188 = vadd.f32 %v1008, %v1187
      %1189 = vmatmul.f32.gmra.mxu0 %v1077
      %v1190 = vpop.f32.mrf.mxu0
      %v1191 = vadd.f32 %v1011, %v1190
      %1192 = vmatmul.f32.gmra.mxu0 %v1079
      %v1193 = vpop.f32.mrf.mxu0
      %v1194 = vadd.f32 %v1014, %v1193
      %1195 = vmatmul.f32.gmra.mxu0 %v1081
      %v1196 = vpop.f32.mrf.mxu0
      %v1197 = vadd.f32 %v1017, %v1196
      %1198 = vdwg.mxu0
      %vm1215 = vcmask 1046528
      %v1216 = vrot.slane %v636, 1
      %v1217 = vrot.slane %v637, 1
      %v1218 = vsel %vm1215, %v1216, %v1217
      %v1219 = vrot.slane %v638, 1
      %v1220 = vsel %vm1215, %v1217, %v1219
      %v1221 = vrot.slane %v640, 1
      %v1222 = vrot.slane %v641, 1
      %v1223 = vsel %vm1215, %v1221, %v1222
      %v1224 = vrot.slane %v642, 1
      %v1225 = vsel %vm1215, %v1222, %v1224
      %v1226 = vrot.slane %v644, 1
      %v1227 = vrot.slane %v645, 1
      %v1228 = vsel %vm1215, %v1226, %v1227
      %v1229 = vrot.slane %v646, 1
      %v1230 = vsel %vm1215, %v1227, %v1229
      %v1231 = vrot.slane %v648, 1
      %v1232 = vrot.slane %v649, 1
      %v1233 = vsel %vm1215, %v1231, %v1232
      %v1234 = vrot.slane %v650, 1
      %v1235 = vsel %vm1215, %v1232, %v1234
      %v1236 = vrot.slane %v652, 1
      %v1237 = vrot.slane %v653, 1
      %v1238 = vsel %vm1215, %v1236, %v1237
      %v1239 = vrot.slane %v654, 1
      %v1240 = vsel %vm1215, %v1237, %v1239
      %v1241 = vrot.slane %v656, 1
      %v1242 = vrot.slane %v657, 1
      %v1243 = vsel %vm1215, %v1241, %v1242
      %v1244 = vrot.slane %v658, 1
      %v1245 = vsel %vm1215, %v1242, %v1244
      %v1246 = vrot.slane %v660, 1
      %v1247 = vrot.slane %v661, 1
      %v1248 = vsel %vm1215, %v1246, %v1247
      %v1249 = vrot.slane %v662, 1
      %v1250 = vsel %vm1215, %v1247, %v1249
      %v1251 = vrot.slane %v664, 1
      %v1252 = vrot.slane %v665, 1
      %v1253 = vsel %vm1215, %v1251, %v1252
      %v1254 = vrot.slane %v666, 1
      %v1255 = vsel %vm1215, %v1252, %v1254
      %v1256 = vrot.slane %v668, 1
      %v1257 = vrot.slane %v669, 1
      %v1258 = vsel %vm1215, %v1256, %v1257
      %v1259 = vrot.slane %v670, 1
      %v1260 = vsel %vm1215, %v1257, %v1259
      %v1261 = vrot.slane %v672, 1
      %v1262 = vrot.slane %v673, 1
      %v1263 = vsel %vm1215, %v1261, %v1262
      %v1264 = vrot.slane %v674, 1
      %v1265 = vsel %vm1215, %v1262, %v1264
      %v1266 = vrot.slane %v676, 1
      %v1267 = vrot.slane %v677, 1
      %v1268 = vsel %vm1215, %v1266, %v1267
      %v1269 = vrot.slane %v678, 1
      %v1270 = vsel %vm1215, %v1267, %v1269
      %v1271 = vrot.slane %v680, 1
      %v1272 = vrot.slane %v681, 1
      %v1273 = vsel %vm1215, %v1271, %v1272
      %v1274 = vrot.slane %v682, 1
      %v1275 = vsel %vm1215, %v1272, %v1274
      %v1276 = vrot.slane %v684, 1
      %v1277 = vrot.slane %v685, 1
      %v1278 = vsel %vm1215, %v1276, %v1277
      %v1279 = vrot.slane %v686, 1
      %v1280 = vsel %vm1215, %v1277, %v1279
      %v1281 = vrot.slane %v688, 1
      %v1282 = vrot.slane %v689, 1
      %v1283 = vsel %vm1215, %v1281, %v1282
      %v1284 = vrot.slane %v690, 1
      %v1285 = vsel %vm1215, %v1282, %v1284
      %v1286 = vrot.slane %v692, 1
      %v1287 = vrot.slane %v693, 1
      %v1288 = vsel %vm1215, %v1286, %v1287
      %v1289 = vrot.slane %v694, 1
      %v1290 = vsel %vm1215, %v1287, %v1289
      %v1291 = vrot.slane %v696, 1
      %v1292 = vrot.slane %v697, 1
      %v1293 = vsel %vm1215, %v1291, %v1292
      %v1294 = vrot.slane %v698, 1
      %v1295 = vsel %vm1215, %v1292, %v1294
      %s1296 = scalar_lea.vmem %s1, 8
      %v1297 = vld [vmem:[%s1296] sm:$0xf]
      %v1298 = vsel %vm311, %v1218, 0
      %v1300 = vsel %vm311, %v1220, 0
      %v1302 = vsel %vm311, %v1223, 0
      %v1304 = vsel %vm311, %v1225, 0
      %v1306 = vsel %vm311, %v1228, 0
      %v1308 = vsel %vm311, %v1230, 0
      %v1310 = vsel %vm311, %v1233, 0
      %v1312 = vsel %vm311, %v1235, 0
      %v1314 = vsel %vm311, %v1238, 0
      %v1316 = vsel %vm311, %v1240, 0
      %v1318 = vsel %vm311, %v1243, 0
      %v1320 = vsel %vm311, %v1245, 0
      %v1322 = vsel %vm311, %v1248, 0
      %v1324 = vsel %vm311, %v1250, 0
      %v1326 = vsel %vm311, %v1253, 0
      %v1328 = vsel %vm311, %v1255, 0
      %v1330 = vsel %vm311, %v1258, 0
      %v1332 = vsel %vm311, %v1260, 0
      %v1334 = vsel %vm311, %v1263, 0
      %v1336 = vsel %vm311, %v1265, 0
      %v1338 = vsel %vm311, %v1268, 0
      %v1340 = vsel %vm311, %v1270, 0
      %v1342 = vsel %vm311, %v1273, 0
      %v1344 = vsel %vm311, %v1275, 0
      %v1346 = vsel %vm311, %v1278, 0
      %v1348 = vsel %vm311, %v1280, 0
      %v1350 = vsel %vm311, %v1283, 0
      %v1352 = vsel %vm311, %v1285, 0
      %v1354 = vsel %vm311, %v1288, 0
      %v1356 = vsel %vm311, %v1290, 0
      %v1358 = vsel %vm311, %v1293, 0
      %v1360 = vsel %vm311, %v1295, 0
      %v1363 = vsel %vm518, %v1297, 0
      %1365 = vmatpush.msra.mxu0 0.0
      %1366 = vmatpush.msra.mxu0 0.0
      %1367 = vmatpush.msra.mxu0 0.0
      %1368 = vmatpush.msra.mxu0 0.0
      %1369 = vmatpush.msra.mxu0 0.0
      %1370 = vmatpush.msra.mxu0 0.0
      %1371 = vmatpush.msra.mxu0 0.0
      %1372 = vmatpush.msra.mxu0 0.0
      %1373 = vmatpush.msra.mxu0 0.0
      %1374 = vmatpush.msra.mxu0 0.0
      %1375 = vmatpush.msra.mxu0 0.0
      %1376 = vmatpush.msra.mxu0 0.0
      %1377 = vmatpush.msra.mxu0 0.0
      %1378 = vmatpush.msra.mxu0 0.0
      %1379 = vmatpush.msra.mxu0 0.0
      %1380 = vmatpush.msra.mxu0 %v1363
      %1381 = vmatmul.f32.gmra.mxu0 %v1298
      %v1382 = vpop.f32.mrf.mxu0
      %v1383 = vadd.f32 0.0, %v1382
      %1384 = vmatmul.f32.gmra.mxu0 %v1300
      %v1385 = vpop.f32.mrf.mxu0
      %v1386 = vadd.f32 0.0, %v1385
      %1387 = vmatmul.f32.gmra.mxu0 %v1302
      %v1388 = vpop.f32.mrf.mxu0
      %v1389 = vadd.f32 0.0, %v1388
      %1390 = vmatmul.f32.gmra.mxu0 %v1304
      %v1391 = vpop.f32.mrf.mxu0
      %v1392 = vadd.f32 0.0, %v1391
      %1393 = vmatmul.f32.gmra.mxu0 %v1306
      %v1394 = vpop.f32.mrf.mxu0
      %v1395 = vadd.f32 0.0, %v1394
      %1396 = vmatmul.f32.gmra.mxu0 %v1308
      %v1397 = vpop.f32.mrf.mxu0
      %v1398 = vadd.f32 0.0, %v1397
      %1399 = vmatmul.f32.gmra.mxu0 %v1310
      %v1400 = vpop.f32.mrf.mxu0
      %v1401 = vadd.f32 0.0, %v1400
      %1402 = vmatmul.f32.gmra.mxu0 %v1312
      %v1403 = vpop.f32.mrf.mxu0
      %v1404 = vadd.f32 0.0, %v1403
      %1405 = vmatmul.f32.gmra.mxu0 %v1314
      %v1406 = vpop.f32.mrf.mxu0
      %v1407 = vadd.f32 0.0, %v1406
      %1408 = vmatmul.f32.gmra.mxu0 %v1316
      %v1409 = vpop.f32.mrf.mxu0
      %v1410 = vadd.f32 0.0, %v1409
      %1411 = vmatmul.f32.gmra.mxu0 %v1318
      %v1412 = vpop.f32.mrf.mxu0
      %v1413 = vadd.f32 0.0, %v1412
      %1414 = vmatmul.f32.gmra.mxu0 %v1320
      %v1415 = vpop.f32.mrf.mxu0
      %v1416 = vadd.f32 0.0, %v1415
      %1417 = vmatmul.f32.gmra.mxu0 %v1322
      %v1418 = vpop.f32.mrf.mxu0
      %v1419 = vadd.f32 0.0, %v1418
      %1420 = vmatmul.f32.gmra.mxu0 %v1324
      %v1421 = vpop.f32.mrf.mxu0
      %v1422 = vadd.f32 0.0, %v1421
      %1423 = vmatmul.f32.gmra.mxu0 %v1326
      %v1424 = vpop.f32.mrf.mxu0
      %v1425 = vadd.f32 0.0, %v1424
      %1426 = vmatmul.f32.gmra.mxu0 %v1328
      %v1427 = vpop.f32.mrf.mxu0
      %v1428 = vadd.f32 0.0, %v1427
      %1429 = vmatmul.f32.gmra.mxu0 %v1330
      %v1430 = vpop.f32.mrf.mxu0
      %v1431 = vadd.f32 0.0, %v1430
      %1432 = vmatmul.f32.gmra.mxu0 %v1332
      %v1433 = vpop.f32.mrf.mxu0
      %v1434 = vadd.f32 0.0, %v1433
      %1435 = vmatmul.f32.gmra.mxu0 %v1334
      %v1436 = vpop.f32.mrf.mxu0
      %v1437 = vadd.f32 0.0, %v1436
      %1438 = vmatmul.f32.gmra.mxu0 %v1336
      %v1439 = vpop.f32.mrf.mxu0
      %v1440 = vadd.f32 0.0, %v1439
      %1441 = vmatmul.f32.gmra.mxu0 %v1338
      %v1442 = vpop.f32.mrf.mxu0
      %v1443 = vadd.f32 0.0, %v1442
      %1444 = vmatmul.f32.gmra.mxu0 %v1340
      %v1445 = vpop.f32.mrf.mxu0
      %v1446 = vadd.f32 0.0, %v1445
      %1447 = vmatmul.f32.gmra.mxu0 %v1342
      %v1448 = vpop.f32.mrf.mxu0
      %v1449 = vadd.f32 0.0, %v1448
      %1450 = vmatmul.f32.gmra.mxu0 %v1344
      %v1451 = vpop.f32.mrf.mxu0
      %v1452 = vadd.f32 0.0, %v1451
      %1453 = vmatmul.f32.gmra.mxu0 %v1346
      %v1454 = vpop.f32.mrf.mxu0
      %v1455 = vadd.f32 0.0, %v1454
      %1456 = vmatmul.f32.gmra.mxu0 %v1348
      %v1457 = vpop.f32.mrf.mxu0
      %v1458 = vadd.f32 0.0, %v1457
      %1459 = vmatmul.f32.gmra.mxu0 %v1350
      %v1460 = vpop.f32.mrf.mxu0
      %v1461 = vadd.f32 0.0, %v1460
      %1462 = vmatmul.f32.gmra.mxu0 %v1352
      %v1463 = vpop.f32.mrf.mxu0
      %v1464 = vadd.f32 0.0, %v1463
      %1465 = vmatmul.f32.gmra.mxu0 %v1354
      %v1466 = vpop.f32.mrf.mxu0
      %v1467 = vadd.f32 0.0, %v1466
      %1468 = vmatmul.f32.gmra.mxu0 %v1356
      %v1469 = vpop.f32.mrf.mxu0
      %v1470 = vadd.f32 0.0, %v1469
      %1471 = vmatmul.f32.gmra.mxu0 %v1358
      %v1472 = vpop.f32.mrf.mxu0
      %v1473 = vadd.f32 0.0, %v1472
      %1474 = vmatmul.f32.gmra.mxu0 %v1360
      %v1475 = vpop.f32.mrf.mxu0
      %v1476 = vadd.f32 0.0, %v1475
      %1477 = vdwg.mxu0
      %v1478 = vadd.f32 %v1104, %v1383
      %v1479 = vadd.f32 %v1107, %v1386
      %v1480 = vadd.f32 %v1110, %v1389
      %v1481 = vadd.f32 %v1113, %v1392
      %v1482 = vadd.f32 %v1116, %v1395
      %v1483 = vadd.f32 %v1119, %v1398
      %v1484 = vadd.f32 %v1122, %v1401
      %v1485 = vadd.f32 %v1125, %v1404
      %v1486 = vadd.f32 %v1128, %v1407
      %v1487 = vadd.f32 %v1131, %v1410
      %v1488 = vadd.f32 %v1134, %v1413
      %v1489 = vadd.f32 %v1137, %v1416
      %v1490 = vadd.f32 %v1140, %v1419
      %v1491 = vadd.f32 %v1143, %v1422
      %v1492 = vadd.f32 %v1146, %v1425
      %v1493 = vadd.f32 %v1149, %v1428
      %v1494 = vadd.f32 %v1152, %v1431
      %v1495 = vadd.f32 %v1155, %v1434
      %v1496 = vadd.f32 %v1158, %v1437
      %v1497 = vadd.f32 %v1161, %v1440
      %v1498 = vadd.f32 %v1164, %v1443
      %v1499 = vadd.f32 %v1167, %v1446
      %v1500 = vadd.f32 %v1170, %v1449
      %v1501 = vadd.f32 %v1173, %v1452
      %v1502 = vadd.f32 %v1176, %v1455
      %v1503 = vadd.f32 %v1179, %v1458
      %v1504 = vadd.f32 %v1182, %v1461
      %v1505 = vadd.f32 %v1185, %v1464
      %v1506 = vadd.f32 %v1188, %v1467
      %v1507 = vadd.f32 %v1191, %v1470
      %v1508 = vadd.f32 %v1194, %v1473
      %v1509 = vadd.f32 %v1197, %v1476
      %v1513 = vrot.slane %v699, 7
      %v1514 = vrot.slane %v700, 7
      %v1515 = vsel %vm755, %v1513, %v1514
      %v1516 = vrot.slane %v701, 7
      %v1517 = vsel %vm755, %v1514, %v1516
      %s1518 = scalar_lea.vmem %s1, 12
      %v1519 = vld [vmem:[%s1518] sm:$0xf]
      %v1520 = vsel %vm311, %v1515, 0
      %v1522 = vsel %vm311, %v1517, 0
      %v1525 = vsel %vm518, %v1519, 0
      %1527 = vmatpush.msra.mxu0 0.0
      %1528 = vmatpush.msra.mxu0 0.0
      %1529 = vmatpush.msra.mxu0 0.0
      %1530 = vmatpush.msra.mxu0 0.0
      %1531 = vmatpush.msra.mxu0 0.0
      %1532 = vmatpush.msra.mxu0 0.0
      %1533 = vmatpush.msra.mxu0 0.0
      %1534 = vmatpush.msra.mxu0 0.0
      %1535 = vmatpush.msra.mxu0 0.0
      %1536 = vmatpush.msra.mxu0 0.0
      %1537 = vmatpush.msra.mxu0 0.0
      %1538 = vmatpush.msra.mxu0 0.0
      %1539 = vmatpush.msra.mxu0 0.0
      %1540 = vmatpush.msra.mxu0 0.0
      %1541 = vmatpush.msra.mxu0 0.0
      %1542 = vmatpush.msra.mxu0 %v1525
      %1543 = vmatmul.f32.gmra.mxu0 %v1023
      %v1544 = vpop.f32.mrf.mxu0
      %v1545 = vadd.f32 0.0, %v1544
      %1546 = vmatmul.f32.gmra.mxu0 %v1025
      %v1547 = vpop.f32.mrf.mxu0
      %v1548 = vadd.f32 0.0, %v1547
      %1549 = vmatmul.f32.gmra.mxu0 %v1027
      %v1550 = vpop.f32.mrf.mxu0
      %v1551 = vadd.f32 0.0, %v1550
      %1552 = vmatmul.f32.gmra.mxu0 %v1029
      %v1553 = vpop.f32.mrf.mxu0
      %v1554 = vadd.f32 0.0, %v1553
      %1555 = vmatmul.f32.gmra.mxu0 %v1031
      %v1556 = vpop.f32.mrf.mxu0
      %v1557 = vadd.f32 0.0, %v1556
      %1558 = vmatmul.f32.gmra.mxu0 %v1033
      %v1559 = vpop.f32.mrf.mxu0
      %v1560 = vadd.f32 0.0, %v1559
      %1561 = vmatmul.f32.gmra.mxu0 %v1035
      %v1562 = vpop.f32.mrf.mxu0
      %v1563 = vadd.f32 0.0, %v1562
      %1564 = vmatmul.f32.gmra.mxu0 %v1037
      %v1565 = vpop.f32.mrf.mxu0
      %v1566 = vadd.f32 0.0, %v1565
      %1567 = vmatmul.f32.gmra.mxu0 %v1039
      %v1568 = vpop.f32.mrf.mxu0
      %v1569 = vadd.f32 0.0, %v1568
      %1570 = vmatmul.f32.gmra.mxu0 %v1041
      %v1571 = vpop.f32.mrf.mxu0
      %v1572 = vadd.f32 0.0, %v1571
      %1573 = vmatmul.f32.gmra.mxu0 %v1043
      %v1574 = vpop.f32.mrf.mxu0
      %v1575 = vadd.f32 0.0, %v1574
      %1576 = vmatmul.f32.gmra.mxu0 %v1045
      %v1577 = vpop.f32.mrf.mxu0
      %v1578 = vadd.f32 0.0, %v1577
      %1579 = vmatmul.f32.gmra.mxu0 %v1047
      %v1580 = vpop.f32.mrf.mxu0
      %v1581 = vadd.f32 0.0, %v1580
      %1582 = vmatmul.f32.gmra.mxu0 %v1049
      %v1583 = vpop.f32.mrf.mxu0
      %v1584 = vadd.f32 0.0, %v1583
      %1585 = vmatmul.f32.gmra.mxu0 %v1051
      %v1586 = vpop.f32.mrf.mxu0
      %v1587 = vadd.f32 0.0, %v1586
      %1588 = vmatmul.f32.gmra.mxu0 %v1053
      %v1589 = vpop.f32.mrf.mxu0
      %v1590 = vadd.f32 0.0, %v1589
      %1591 = vmatmul.f32.gmra.mxu0 %v1055
      %v1592 = vpop.f32.mrf.mxu0
      %v1593 = vadd.f32 0.0, %v1592
      %1594 = vmatmul.f32.gmra.mxu0 %v1057
      %v1595 = vpop.f32.mrf.mxu0
      %v1596 = vadd.f32 0.0, %v1595
      %1597 = vmatmul.f32.gmra.mxu0 %v1059
      %v1598 = vpop.f32.mrf.mxu0
      %v1599 = vadd.f32 0.0, %v1598
      %1600 = vmatmul.f32.gmra.mxu0 %v1061
      %v1601 = vpop.f32.mrf.mxu0
      %v1602 = vadd.f32 0.0, %v1601
      %1603 = vmatmul.f32.gmra.mxu0 %v1063
      %v1604 = vpop.f32.mrf.mxu0
      %v1605 = vadd.f32 0.0, %v1604
      %1606 = vmatmul.f32.gmra.mxu0 %v1065
      %v1607 = vpop.f32.mrf.mxu0
      %v1608 = vadd.f32 0.0, %v1607
      %1609 = vmatmul.f32.gmra.mxu0 %v1067
      %v1610 = vpop.f32.mrf.mxu0
      %v1611 = vadd.f32 0.0, %v1610
      %1612 = vmatmul.f32.gmra.mxu0 %v1069
      %v1613 = vpop.f32.mrf.mxu0
      %v1614 = vadd.f32 0.0, %v1613
      %1615 = vmatmul.f32.gmra.mxu0 %v1071
      %v1616 = vpop.f32.mrf.mxu0
      %v1617 = vadd.f32 0.0, %v1616
      %1618 = vmatmul.f32.gmra.mxu0 %v1073
      %v1619 = vpop.f32.mrf.mxu0
      %v1620 = vadd.f32 0.0, %v1619
      %1621 = vmatmul.f32.gmra.mxu0 %v1075
      %v1622 = vpop.f32.mrf.mxu0
      %v1623 = vadd.f32 0.0, %v1622
      %1624 = vmatmul.f32.gmra.mxu0 %v1077
      %v1625 = vpop.f32.mrf.mxu0
      %v1626 = vadd.f32 0.0, %v1625
      %1627 = vmatmul.f32.gmra.mxu0 %v1079
      %v1628 = vpop.f32.mrf.mxu0
      %v1629 = vadd.f32 0.0, %v1628
      %1630 = vmatmul.f32.gmra.mxu0 %v1081
      %v1631 = vpop.f32.mrf.mxu0
      %v1632 = vadd.f32 0.0, %v1631
      %1633 = vmatmul.f32.gmra.mxu0 %v1520
      %v1634 = vpop.f32.mrf.mxu0
      %v1635 = vadd.f32 0.0, %v1634
      %1636 = vmatmul.f32.gmra.mxu0 %v1522
      %v1637 = vpop.f32.mrf.mxu0
      %v1638 = vadd.f32 0.0, %v1637
      %1639 = vdwg.mxu0
      %v1640 = vadd.f32 %v1478, %v1545
      %v1641 = vadd.f32 %v1479, %v1548
      %v1642 = vadd.f32 %v1480, %v1551
      %v1643 = vadd.f32 %v1481, %v1554
      %v1644 = vadd.f32 %v1482, %v1557
      %v1645 = vadd.f32 %v1483, %v1560
      %v1646 = vadd.f32 %v1484, %v1563
      %v1647 = vadd.f32 %v1485, %v1566
      %v1648 = vadd.f32 %v1486, %v1569
      %v1649 = vadd.f32 %v1487, %v1572
      %v1650 = vadd.f32 %v1488, %v1575
      %v1651 = vadd.f32 %v1489, %v1578
      %v1652 = vadd.f32 %v1490, %v1581
      %v1653 = vadd.f32 %v1491, %v1584
      %v1654 = vadd.f32 %v1492, %v1587
      %v1655 = vadd.f32 %v1493, %v1590
      %v1656 = vadd.f32 %v1494, %v1593
      %v1657 = vadd.f32 %v1495, %v1596
      %v1658 = vadd.f32 %v1496, %v1599
      %v1659 = vadd.f32 %v1497, %v1602
      %v1660 = vadd.f32 %v1498, %v1605
      %v1661 = vadd.f32 %v1499, %v1608
      %v1662 = vadd.f32 %v1500, %v1611
      %v1663 = vadd.f32 %v1501, %v1614
      %v1664 = vadd.f32 %v1502, %v1617
      %v1665 = vadd.f32 %v1503, %v1620
      %v1666 = vadd.f32 %v1504, %v1623
      %v1667 = vadd.f32 %v1505, %v1626
      %v1668 = vadd.f32 %v1506, %v1629
      %v1669 = vadd.f32 %v1507, %v1632
      %v1670 = vadd.f32 %v1508, %v1635
      %v1671 = vadd.f32 %v1509, %v1638
      %s1672 = scalar_lea.vmem %s1, 16
      %v1673 = vld [vmem:[%s1672] sm:$0xf]
      %v1674 = vsel %vm311, %v700, 0
      %v1676 = vsel %vm311, %v701, 0
      %v1679 = vsel %vm518, %v1673, 0
      %1681 = vmatpush.msra.mxu0 0.0
      %1682 = vmatpush.msra.mxu0 0.0
      %1683 = vmatpush.msra.mxu0 0.0
      %1684 = vmatpush.msra.mxu0 0.0
      %1685 = vmatpush.msra.mxu0 0.0
      %1686 = vmatpush.msra.mxu0 0.0
      %1687 = vmatpush.msra.mxu0 0.0
      %1688 = vmatpush.msra.mxu0 0.0
      %1689 = vmatpush.msra.mxu0 0.0
      %1690 = vmatpush.msra.mxu0 0.0
      %1691 = vmatpush.msra.mxu0 0.0
      %1692 = vmatpush.msra.mxu0 0.0
      %1693 = vmatpush.msra.mxu0 0.0
      %1694 = vmatpush.msra.mxu0 0.0
      %1695 = vmatpush.msra.mxu0 0.0
      %1696 = vmatpush.msra.mxu0 %v1679
      %1697 = vmatmul.f32.gmra.mxu0 %v843
      %v1698 = vpop.f32.mrf.mxu0
      %v1699 = vadd.f32 0.0, %v1698
      %1700 = vmatmul.f32.gmra.mxu0 %v845
      %v1701 = vpop.f32.mrf.mxu0
      %v1702 = vadd.f32 0.0, %v1701
      %1703 = vmatmul.f32.gmra.mxu0 %v847
      %v1704 = vpop.f32.mrf.mxu0
      %v1705 = vadd.f32 0.0, %v1704
      %1706 = vmatmul.f32.gmra.mxu0 %v849
      %v1707 = vpop.f32.mrf.mxu0
      %v1708 = vadd.f32 0.0, %v1707
      %1709 = vmatmul.f32.gmra.mxu0 %v851
      %v1710 = vpop.f32.mrf.mxu0
      %v1711 = vadd.f32 0.0, %v1710
      %1712 = vmatmul.f32.gmra.mxu0 %v853
      %v1713 = vpop.f32.mrf.mxu0
      %v1714 = vadd.f32 0.0, %v1713
      %1715 = vmatmul.f32.gmra.mxu0 %v855
      %v1716 = vpop.f32.mrf.mxu0
      %v1717 = vadd.f32 0.0, %v1716
      %1718 = vmatmul.f32.gmra.mxu0 %v857
      %v1719 = vpop.f32.mrf.mxu0
      %v1720 = vadd.f32 0.0, %v1719
      %1721 = vmatmul.f32.gmra.mxu0 %v859
      %v1722 = vpop.f32.mrf.mxu0
      %v1723 = vadd.f32 0.0, %v1722
      %1724 = vmatmul.f32.gmra.mxu0 %v861
      %v1725 = vpop.f32.mrf.mxu0
      %v1726 = vadd.f32 0.0, %v1725
      %1727 = vmatmul.f32.gmra.mxu0 %v863
      %v1728 = vpop.f32.mrf.mxu0
      %v1729 = vadd.f32 0.0, %v1728
      %1730 = vmatmul.f32.gmra.mxu0 %v865
      %v1731 = vpop.f32.mrf.mxu0
      %v1732 = vadd.f32 0.0, %v1731
      %1733 = vmatmul.f32.gmra.mxu0 %v867
      %v1734 = vpop.f32.mrf.mxu0
      %v1735 = vadd.f32 0.0, %v1734
      %1736 = vmatmul.f32.gmra.mxu0 %v869
      %v1737 = vpop.f32.mrf.mxu0
      %v1738 = vadd.f32 0.0, %v1737
      %1739 = vmatmul.f32.gmra.mxu0 %v871
      %v1740 = vpop.f32.mrf.mxu0
      %v1741 = vadd.f32 0.0, %v1740
      %1742 = vmatmul.f32.gmra.mxu0 %v873
      %v1743 = vpop.f32.mrf.mxu0
      %v1744 = vadd.f32 0.0, %v1743
      %1745 = vmatmul.f32.gmra.mxu0 %v875
      %v1746 = vpop.f32.mrf.mxu0
      %v1747 = vadd.f32 0.0, %v1746
      %1748 = vmatmul.f32.gmra.mxu0 %v877
      %v1749 = vpop.f32.mrf.mxu0
      %v1750 = vadd.f32 0.0, %v1749
      %1751 = vmatmul.f32.gmra.mxu0 %v879
      %v1752 = vpop.f32.mrf.mxu0
      %v1753 = vadd.f32 0.0, %v1752
      %1754 = vmatmul.f32.gmra.mxu0 %v881
      %v1755 = vpop.f32.mrf.mxu0
      %v1756 = vadd.f32 0.0, %v1755
      %1757 = vmatmul.f32.gmra.mxu0 %v883
      %v1758 = vpop.f32.mrf.mxu0
      %v1759 = vadd.f32 0.0, %v1758
      %1760 = vmatmul.f32.gmra.mxu0 %v885
      %v1761 = vpop.f32.mrf.mxu0
      %v1762 = vadd.f32 0.0, %v1761
      %1763 = vmatmul.f32.gmra.mxu0 %v887
      %v1764 = vpop.f32.mrf.mxu0
      %v1765 = vadd.f32 0.0, %v1764
      %1766 = vmatmul.f32.gmra.mxu0 %v889
      %v1767 = vpop.f32.mrf.mxu0
      %v1768 = vadd.f32 0.0, %v1767
      %1769 = vmatmul.f32.gmra.mxu0 %v891
      %v1770 = vpop.f32.mrf.mxu0
      %v1771 = vadd.f32 0.0, %v1770
      %1772 = vmatmul.f32.gmra.mxu0 %v893
      %v1773 = vpop.f32.mrf.mxu0
      %v1774 = vadd.f32 0.0, %v1773
      %1775 = vmatmul.f32.gmra.mxu0 %v895
      %v1776 = vpop.f32.mrf.mxu0
      %v1777 = vadd.f32 0.0, %v1776
      %1778 = vmatmul.f32.gmra.mxu0 %v897
      %v1779 = vpop.f32.mrf.mxu0
      %v1780 = vadd.f32 0.0, %v1779
      %1781 = vmatmul.f32.gmra.mxu0 %v899
      %v1782 = vpop.f32.mrf.mxu0
      %v1783 = vadd.f32 0.0, %v1782
      %1784 = vmatmul.f32.gmra.mxu0 %v901
      %v1785 = vpop.f32.mrf.mxu0
      %v1786 = vadd.f32 0.0, %v1785
      %1787 = vmatmul.f32.gmra.mxu0 %v1674
      %v1788 = vpop.f32.mrf.mxu0
      %v1789 = vadd.f32 0.0, %v1788
      %1790 = vmatmul.f32.gmra.mxu0 %v1676
      %v1791 = vpop.f32.mrf.mxu0
      %v1792 = vadd.f32 0.0, %v1791
      %1793 = vdwg.mxu0
      %v1794 = vadd.f32 %v1640, %v1699
      %v1795 = vadd.f32 %v1641, %v1702
      %v1796 = vadd.f32 %v1642, %v1705
      %v1797 = vadd.f32 %v1643, %v1708
      %v1798 = vadd.f32 %v1644, %v1711
      %v1799 = vadd.f32 %v1645, %v1714
      %v1800 = vadd.f32 %v1646, %v1717
      %v1801 = vadd.f32 %v1647, %v1720
      %v1802 = vadd.f32 %v1648, %v1723
      %v1803 = vadd.f32 %v1649, %v1726
      %v1804 = vadd.f32 %v1650, %v1729
      %v1805 = vadd.f32 %v1651, %v1732
      %v1806 = vadd.f32 %v1652, %v1735
      %v1807 = vadd.f32 %v1653, %v1738
      %v1808 = vadd.f32 %v1654, %v1741
      %v1809 = vadd.f32 %v1655, %v1744
      %v1810 = vadd.f32 %v1656, %v1747
      %v1811 = vadd.f32 %v1657, %v1750
      %v1812 = vadd.f32 %v1658, %v1753
      %v1813 = vadd.f32 %v1659, %v1756
      %v1814 = vadd.f32 %v1660, %v1759
      %v1815 = vadd.f32 %v1661, %v1762
      %v1816 = vadd.f32 %v1662, %v1765
      %v1817 = vadd.f32 %v1663, %v1768
      %v1818 = vadd.f32 %v1664, %v1771
      %v1819 = vadd.f32 %v1665, %v1774
      %v1820 = vadd.f32 %v1666, %v1777
      %v1821 = vadd.f32 %v1667, %v1780
      %v1822 = vadd.f32 %v1668, %v1783
      %v1823 = vadd.f32 %v1669, %v1786
      %v1824 = vadd.f32 %v1670, %v1789
      %v1825 = vadd.f32 %v1671, %v1792
      %v1827 = vrot.slane %v700, 1
      %v1828 = vrot.slane %v701, 1
      %v1829 = vsel %vm1215, %v1827, %v1828
      %v1830 = vrot.slane %v702, 1
      %v1831 = vsel %vm1215, %v1828, %v1830
      %s1832 = scalar_lea.vmem %s1, 20
      %v1833 = vld [vmem:[%s1832] sm:$0xf]
      %v1834 = vsel %vm311, %v1829, 0
      %v1836 = vsel %vm311, %v1831, 0
      %v1839 = vsel %vm518, %v1833, 0
      %1841 = vmatpush.msra.mxu0 0.0
      %1842 = vmatpush.msra.mxu0 0.0
      %1843 = vmatpush.msra.mxu0 0.0
      %1844 = vmatpush.msra.mxu0 0.0
      %1845 = vmatpush.msra.mxu0 0.0
      %1846 = vmatpush.msra.mxu0 0.0
      %1847 = vmatpush.msra.mxu0 0.0
      %1848 = vmatpush.msra.mxu0 0.0
      %1849 = vmatpush.msra.mxu0 0.0
      %1850 = vmatpush.msra.mxu0 0.0
      %1851 = vmatpush.msra.mxu0 0.0
      %1852 = vmatpush.msra.mxu0 0.0
      %1853 = vmatpush.msra.mxu0 0.0
      %1854 = vmatpush.msra.mxu0 0.0
      %1855 = vmatpush.msra.mxu0 0.0
      %1856 = vmatpush.msra.mxu0 %v1839
      %1857 = vmatmul.f32.gmra.mxu0 %v1302
      %v1858 = vpop.f32.mrf.mxu0
      %v1859 = vadd.f32 0.0, %v1858
      %1860 = vmatmul.f32.gmra.mxu0 %v1304
      %v1861 = vpop.f32.mrf.mxu0
      %v1862 = vadd.f32 0.0, %v1861
      %1863 = vmatmul.f32.gmra.mxu0 %v1306
      %v1864 = vpop.f32.mrf.mxu0
      %v1865 = vadd.f32 0.0, %v1864
      %1866 = vmatmul.f32.gmra.mxu0 %v1308
      %v1867 = vpop.f32.mrf.mxu0
      %v1868 = vadd.f32 0.0, %v1867
      %1869 = vmatmul.f32.gmra.mxu0 %v1310
      %v1870 = vpop.f32.mrf.mxu0
      %v1871 = vadd.f32 0.0, %v1870
      %1872 = vmatmul.f32.gmra.mxu0 %v1312
      %v1873 = vpop.f32.mrf.mxu0
      %v1874 = vadd.f32 0.0, %v1873
      %1875 = vmatmul.f32.gmra.mxu0 %v1314
      %v1876 = vpop.f32.mrf.mxu0
      %v1877 = vadd.f32 0.0, %v1876
      %1878 = vmatmul.f32.gmra.mxu0 %v1316
      %v1879 = vpop.f32.mrf.mxu0
      %v1880 = vadd.f32 0.0, %v1879
      %1881 = vmatmul.f32.gmra.mxu0 %v1318
      %v1882 = vpop.f32.mrf.mxu0
      %v1883 = vadd.f32 0.0, %v1882
      %1884 = vmatmul.f32.gmra.mxu0 %v1320
      %v1885 = vpop.f32.mrf.mxu0
      %v1886 = vadd.f32 0.0, %v1885
      %1887 = vmatmul.f32.gmra.mxu0 %v1322
      %v1888 = vpop.f32.mrf.mxu0
      %v1889 = vadd.f32 0.0, %v1888
      %1890 = vmatmul.f32.gmra.mxu0 %v1324
      %v1891 = vpop.f32.mrf.mxu0
      %v1892 = vadd.f32 0.0, %v1891
      %1893 = vmatmul.f32.gmra.mxu0 %v1326
      %v1894 = vpop.f32.mrf.mxu0
      %v1895 = vadd.f32 0.0, %v1894
      %1896 = vmatmul.f32.gmra.mxu0 %v1328
      %v1897 = vpop.f32.mrf.mxu0
      %v1898 = vadd.f32 0.0, %v1897
      %1899 = vmatmul.f32.gmra.mxu0 %v1330
      %v1900 = vpop.f32.mrf.mxu0
      %v1901 = vadd.f32 0.0, %v1900
      %1902 = vmatmul.f32.gmra.mxu0 %v1332
      %v1903 = vpop.f32.mrf.mxu0
      %v1904 = vadd.f32 0.0, %v1903
      %1905 = vmatmul.f32.gmra.mxu0 %v1334
      %v1906 = vpop.f32.mrf.mxu0
      %v1907 = vadd.f32 0.0, %v1906
      %1908 = vmatmul.f32.gmra.mxu0 %v1336
      %v1909 = vpop.f32.mrf.mxu0
      %v1910 = vadd.f32 0.0, %v1909
      %1911 = vmatmul.f32.gmra.mxu0 %v1338
      %v1912 = vpop.f32.mrf.mxu0
      %v1913 = vadd.f32 0.0, %v1912
      %1914 = vmatmul.f32.gmra.mxu0 %v1340
      %v1915 = vpop.f32.mrf.mxu0
      %v1916 = vadd.f32 0.0, %v1915
      %1917 = vmatmul.f32.gmra.mxu0 %v1342
      %v1918 = vpop.f32.mrf.mxu0
      %v1919 = vadd.f32 0.0, %v1918
      %1920 = vmatmul.f32.gmra.mxu0 %v1344
      %v1921 = vpop.f32.mrf.mxu0
      %v1922 = vadd.f32 0.0, %v1921
      %1923 = vmatmul.f32.gmra.mxu0 %v1346
      %v1924 = vpop.f32.mrf.mxu0
      %v1925 = vadd.f32 0.0, %v1924
      %1926 = vmatmul.f32.gmra.mxu0 %v1348
      %v1927 = vpop.f32.mrf.mxu0
      %v1928 = vadd.f32 0.0, %v1927
      %1929 = vmatmul.f32.gmra.mxu0 %v1350
      %v1930 = vpop.f32.mrf.mxu0
      %v1931 = vadd.f32 0.0, %v1930
      %1932 = vmatmul.f32.gmra.mxu0 %v1352
      %v1933 = vpop.f32.mrf.mxu0
      %v1934 = vadd.f32 0.0, %v1933
      %1935 = vmatmul.f32.gmra.mxu0 %v1354
      %v1936 = vpop.f32.mrf.mxu0
      %v1937 = vadd.f32 0.0, %v1936
      %1938 = vmatmul.f32.gmra.mxu0 %v1356
      %v1939 = vpop.f32.mrf.mxu0
      %v1940 = vadd.f32 0.0, %v1939
      %1941 = vmatmul.f32.gmra.mxu0 %v1358
      %v1942 = vpop.f32.mrf.mxu0
      %v1943 = vadd.f32 0.0, %v1942
      %1944 = vmatmul.f32.gmra.mxu0 %v1360
      %v1945 = vpop.f32.mrf.mxu0
      %v1946 = vadd.f32 0.0, %v1945
      %1947 = vmatmul.f32.gmra.mxu0 %v1834
      %v1948 = vpop.f32.mrf.mxu0
      %v1949 = vadd.f32 0.0, %v1948
      %1950 = vmatmul.f32.gmra.mxu0 %v1836
      %v1951 = vpop.f32.mrf.mxu0
      %v1952 = vadd.f32 0.0, %v1951
      %1953 = vdwg.mxu0
      %v1954 = vadd.f32 %v1794, %v1859
      %v1955 = vadd.f32 %v1795, %v1862
      %v1956 = vadd.f32 %v1796, %v1865
      %v1957 = vadd.f32 %v1797, %v1868
      %v1958 = vadd.f32 %v1798, %v1871
      %v1959 = vadd.f32 %v1799, %v1874
      %v1960 = vadd.f32 %v1800, %v1877
      %v1961 = vadd.f32 %v1801, %v1880
      %v1962 = vadd.f32 %v1802, %v1883
      %v1963 = vadd.f32 %v1803, %v1886
      %v1964 = vadd.f32 %v1804, %v1889
      %v1965 = vadd.f32 %v1805, %v1892
      %v1966 = vadd.f32 %v1806, %v1895
      %v1967 = vadd.f32 %v1807, %v1898
      %v1968 = vadd.f32 %v1808, %v1901
      %v1969 = vadd.f32 %v1809, %v1904
      %v1970 = vadd.f32 %v1810, %v1907
      %v1971 = vadd.f32 %v1811, %v1910
      %v1972 = vadd.f32 %v1812, %v1913
      %v1973 = vadd.f32 %v1813, %v1916
      %v1974 = vadd.f32 %v1814, %v1919
      %v1975 = vadd.f32 %v1815, %v1922
      %v1976 = vadd.f32 %v1816, %v1925
      %v1977 = vadd.f32 %v1817, %v1928
      %v1978 = vadd.f32 %v1818, %v1931
      %v1979 = vadd.f32 %v1819, %v1934
      %v1980 = vadd.f32 %v1820, %v1937
      %v1981 = vadd.f32 %v1821, %v1940
      %v1982 = vadd.f32 %v1822, %v1943
      %v1983 = vadd.f32 %v1823, %v1946
      %v1984 = vadd.f32 %v1824, %v1949
      %v1985 = vadd.f32 %v1825, %v1952
      %v1989 = vrot.slane %v703, 7
      %v1990 = vrot.slane %v704, 7
      %v1991 = vsel %vm755, %v1989, %v1990
      %v1992 = vrot.slane %v705, 7
      %v1993 = vsel %vm755, %v1990, %v1992
      %s1994 = scalar_lea.vmem %s1, 24
      %v1995 = vld [vmem:[%s1994] sm:$0xf]
      %v1996 = vsel %vm311, %v1991, 0
      %v1998 = vsel %vm311, %v1993, 0
      %v2001 = vsel %vm518, %v1995, 0
      %2003 = vmatpush.msra.mxu0 0.0
      %2004 = vmatpush.msra.mxu0 0.0
      %2005 = vmatpush.msra.mxu0 0.0
      %2006 = vmatpush.msra.mxu0 0.0
      %2007 = vmatpush.msra.mxu0 0.0
      %2008 = vmatpush.msra.mxu0 0.0
      %2009 = vmatpush.msra.mxu0 0.0
      %2010 = vmatpush.msra.mxu0 0.0
      %2011 = vmatpush.msra.mxu0 0.0
      %2012 = vmatpush.msra.mxu0 0.0
      %2013 = vmatpush.msra.mxu0 0.0
      %2014 = vmatpush.msra.mxu0 0.0
      %2015 = vmatpush.msra.mxu0 0.0
      %2016 = vmatpush.msra.mxu0 0.0
      %2017 = vmatpush.msra.mxu0 0.0
      %2018 = vmatpush.msra.mxu0 %v2001
      %2019 = vmatmul.f32.gmra.mxu0 %v1027
      %v2020 = vpop.f32.mrf.mxu0
      %v2021 = vadd.f32 0.0, %v2020
      %2022 = vmatmul.f32.gmra.mxu0 %v1029
      %v2023 = vpop.f32.mrf.mxu0
      %v2024 = vadd.f32 0.0, %v2023
      %2025 = vmatmul.f32.gmra.mxu0 %v1031
      %v2026 = vpop.f32.mrf.mxu0
      %v2027 = vadd.f32 0.0, %v2026
      %2028 = vmatmul.f32.gmra.mxu0 %v1033
      %v2029 = vpop.f32.mrf.mxu0
      %v2030 = vadd.f32 0.0, %v2029
      %2031 = vmatmul.f32.gmra.mxu0 %v1035
      %v2032 = vpop.f32.mrf.mxu0
      %v2033 = vadd.f32 0.0, %v2032
      %2034 = vmatmul.f32.gmra.mxu0 %v1037
      %v2035 = vpop.f32.mrf.mxu0
      %v2036 = vadd.f32 0.0, %v2035
      %2037 = vmatmul.f32.gmra.mxu0 %v1039
      %v2038 = vpop.f32.mrf.mxu0
      %v2039 = vadd.f32 0.0, %v2038
      %2040 = vmatmul.f32.gmra.mxu0 %v1041
      %v2041 = vpop.f32.mrf.mxu0
      %v2042 = vadd.f32 0.0, %v2041
      %2043 = vmatmul.f32.gmra.mxu0 %v1043
      %v2044 = vpop.f32.mrf.mxu0
      %v2045 = vadd.f32 0.0, %v2044
      %2046 = vmatmul.f32.gmra.mxu0 %v1045
      %v2047 = vpop.f32.mrf.mxu0
      %v2048 = vadd.f32 0.0, %v2047
      %2049 = vmatmul.f32.gmra.mxu0 %v1047
      %v2050 = vpop.f32.mrf.mxu0
      %v2051 = vadd.f32 0.0, %v2050
      %2052 = vmatmul.f32.gmra.mxu0 %v1049
      %v2053 = vpop.f32.mrf.mxu0
      %v2054 = vadd.f32 0.0, %v2053
      %2055 = vmatmul.f32.gmra.mxu0 %v1051
      %v2056 = vpop.f32.mrf.mxu0
      %v2057 = vadd.f32 0.0, %v2056
      %2058 = vmatmul.f32.gmra.mxu0 %v1053
      %v2059 = vpop.f32.mrf.mxu0
      %v2060 = vadd.f32 0.0, %v2059
      %2061 = vmatmul.f32.gmra.mxu0 %v1055
      %v2062 = vpop.f32.mrf.mxu0
      %v2063 = vadd.f32 0.0, %v2062
      %2064 = vmatmul.f32.gmra.mxu0 %v1057
      %v2065 = vpop.f32.mrf.mxu0
      %v2066 = vadd.f32 0.0, %v2065
      %2067 = vmatmul.f32.gmra.mxu0 %v1059
      %v2068 = vpop.f32.mrf.mxu0
      %v2069 = vadd.f32 0.0, %v2068
      %2070 = vmatmul.f32.gmra.mxu0 %v1061
      %v2071 = vpop.f32.mrf.mxu0
      %v2072 = vadd.f32 0.0, %v2071
      %2073 = vmatmul.f32.gmra.mxu0 %v1063
      %v2074 = vpop.f32.mrf.mxu0
      %v2075 = vadd.f32 0.0, %v2074
      %2076 = vmatmul.f32.gmra.mxu0 %v1065
      %v2077 = vpop.f32.mrf.mxu0
      %v2078 = vadd.f32 0.0, %v2077
      %2079 = vmatmul.f32.gmra.mxu0 %v1067
      %v2080 = vpop.f32.mrf.mxu0
      %v2081 = vadd.f32 0.0, %v2080
      %2082 = vmatmul.f32.gmra.mxu0 %v1069
      %v2083 = vpop.f32.mrf.mxu0
      %v2084 = vadd.f32 0.0, %v2083
      %2085 = vmatmul.f32.gmra.mxu0 %v1071
      %v2086 = vpop.f32.mrf.mxu0
      %v2087 = vadd.f32 0.0, %v2086
      %2088 = vmatmul.f32.gmra.mxu0 %v1073
      %v2089 = vpop.f32.mrf.mxu0
      %v2090 = vadd.f32 0.0, %v2089
      %2091 = vmatmul.f32.gmra.mxu0 %v1075
      %v2092 = vpop.f32.mrf.mxu0
      %v2093 = vadd.f32 0.0, %v2092
      %2094 = vmatmul.f32.gmra.mxu0 %v1077
      %v2095 = vpop.f32.mrf.mxu0
      %v2096 = vadd.f32 0.0, %v2095
      %2097 = vmatmul.f32.gmra.mxu0 %v1079
      %v2098 = vpop.f32.mrf.mxu0
      %v2099 = vadd.f32 0.0, %v2098
      %2100 = vmatmul.f32.gmra.mxu0 %v1081
      %v2101 = vpop.f32.mrf.mxu0
      %v2102 = vadd.f32 0.0, %v2101
      %2103 = vmatmul.f32.gmra.mxu0 %v1520
      %v2104 = vpop.f32.mrf.mxu0
      %v2105 = vadd.f32 0.0, %v2104
      %2106 = vmatmul.f32.gmra.mxu0 %v1522
      %v2107 = vpop.f32.mrf.mxu0
      %v2108 = vadd.f32 0.0, %v2107
      %2109 = vmatmul.f32.gmra.mxu0 %v1996
      %v2110 = vpop.f32.mrf.mxu0
      %v2111 = vadd.f32 0.0, %v2110
      %2112 = vmatmul.f32.gmra.mxu0 %v1998
      %v2113 = vpop.f32.mrf.mxu0
      %v2114 = vadd.f32 0.0, %v2113
      %2115 = vdwg.mxu0
      %v2116 = vadd.f32 %v1954, %v2021
      %v2117 = vadd.f32 %v1955, %v2024
      %v2118 = vadd.f32 %v1956, %v2027
      %v2119 = vadd.f32 %v1957, %v2030
      %v2120 = vadd.f32 %v1958, %v2033
      %v2121 = vadd.f32 %v1959, %v2036
      %v2122 = vadd.f32 %v1960, %v2039
      %v2123 = vadd.f32 %v1961, %v2042
      %v2124 = vadd.f32 %v1962, %v2045
      %v2125 = vadd.f32 %v1963, %v2048
      %v2126 = vadd.f32 %v1964, %v2051
      %v2127 = vadd.f32 %v1965, %v2054
      %v2128 = vadd.f32 %v1966, %v2057
      %v2129 = vadd.f32 %v1967, %v2060
      %v2130 = vadd.f32 %v1968, %v2063
      %v2131 = vadd.f32 %v1969, %v2066
      %v2132 = vadd.f32 %v1970, %v2069
      %v2133 = vadd.f32 %v1971, %v2072
      %v2134 = vadd.f32 %v1972, %v2075
      %v2135 = vadd.f32 %v1973, %v2078
      %v2136 = vadd.f32 %v1974, %v2081
      %v2137 = vadd.f32 %v1975, %v2084
      %v2138 = vadd.f32 %v1976, %v2087
      %v2139 = vadd.f32 %v1977, %v2090
      %v2140 = vadd.f32 %v1978, %v2093
      %v2141 = vadd.f32 %v1979, %v2096
      %v2142 = vadd.f32 %v1980, %v2099
      %v2143 = vadd.f32 %v1981, %v2102
      %v2144 = vadd.f32 %v1982, %v2105
      %v2145 = vadd.f32 %v1983, %v2108
      %v2146 = vadd.f32 %v1984, %v2111
      %v2147 = vadd.f32 %v1985, %v2114
      %s2148 = scalar_lea.vmem %s1, 28
      %v2149 = vld [vmem:[%s2148] sm:$0xf]
      %v2150 = vsel %vm311, %v704, 0
      %v2152 = vsel %vm311, %v705, 0
      %v2155 = vsel %vm518, %v2149, 0
      %2157 = vmatpush.msra.mxu0 0.0
      %2158 = vmatpush.msra.mxu0 0.0
      %2159 = vmatpush.msra.mxu0 0.0
      %2160 = vmatpush.msra.mxu0 0.0
      %2161 = vmatpush.msra.mxu0 0.0
      %2162 = vmatpush.msra.mxu0 0.0
      %2163 = vmatpush.msra.mxu0 0.0
      %2164 = vmatpush.msra.mxu0 0.0
      %2165 = vmatpush.msra.mxu0 0.0
      %2166 = vmatpush.msra.mxu0 0.0
      %2167 = vmatpush.msra.mxu0 0.0
      %2168 = vmatpush.msra.mxu0 0.0
      %2169 = vmatpush.msra.mxu0 0.0
      %2170 = vmatpush.msra.mxu0 0.0
      %2171 = vmatpush.msra.mxu0 0.0
      %2172 = vmatpush.msra.mxu0 %v2155
      %2173 = vmatmul.f32.gmra.mxu0 %v847
      %v2174 = vpop.f32.mrf.mxu0
      %v2175 = vadd.f32 0.0, %v2174
      %2176 = vmatmul.f32.gmra.mxu0 %v849
      %v2177 = vpop.f32.mrf.mxu0
      %v2178 = vadd.f32 0.0, %v2177
      %2179 = vmatmul.f32.gmra.mxu0 %v851
      %v2180 = vpop.f32.mrf.mxu0
      %v2181 = vadd.f32 0.0, %v2180
      %2182 = vmatmul.f32.gmra.mxu0 %v853
      %v2183 = vpop.f32.mrf.mxu0
      %v2184 = vadd.f32 0.0, %v2183
      %2185 = vmatmul.f32.gmra.mxu0 %v855
      %v2186 = vpop.f32.mrf.mxu0
      %v2187 = vadd.f32 0.0, %v2186
      %2188 = vmatmul.f32.gmra.mxu0 %v857
      %v2189 = vpop.f32.mrf.mxu0
      %v2190 = vadd.f32 0.0, %v2189
      %2191 = vmatmul.f32.gmra.mxu0 %v859
      %v2192 = vpop.f32.mrf.mxu0
      %v2193 = vadd.f32 0.0, %v2192
      %2194 = vmatmul.f32.gmra.mxu0 %v861
      %v2195 = vpop.f32.mrf.mxu0
      %v2196 = vadd.f32 0.0, %v2195
      %2197 = vmatmul.f32.gmra.mxu0 %v863
      %v2198 = vpop.f32.mrf.mxu0
      %v2199 = vadd.f32 0.0, %v2198
      %2200 = vmatmul.f32.gmra.mxu0 %v865
      %v2201 = vpop.f32.mrf.mxu0
      %v2202 = vadd.f32 0.0, %v2201
      %2203 = vmatmul.f32.gmra.mxu0 %v867
      %v2204 = vpop.f32.mrf.mxu0
      %v2205 = vadd.f32 0.0, %v2204
      %2206 = vmatmul.f32.gmra.mxu0 %v869
      %v2207 = vpop.f32.mrf.mxu0
      %v2208 = vadd.f32 0.0, %v2207
      %2209 = vmatmul.f32.gmra.mxu0 %v871
      %v2210 = vpop.f32.mrf.mxu0
      %v2211 = vadd.f32 0.0, %v2210
      %2212 = vmatmul.f32.gmra.mxu0 %v873
      %v2213 = vpop.f32.mrf.mxu0
      %v2214 = vadd.f32 0.0, %v2213
      %2215 = vmatmul.f32.gmra.mxu0 %v875
      %v2216 = vpop.f32.mrf.mxu0
      %v2217 = vadd.f32 0.0, %v2216
      %2218 = vmatmul.f32.gmra.mxu0 %v877
      %v2219 = vpop.f32.mrf.mxu0
      %v2220 = vadd.f32 0.0, %v2219
      %2221 = vmatmul.f32.gmra.mxu0 %v879
      %v2222 = vpop.f32.mrf.mxu0
      %v2223 = vadd.f32 0.0, %v2222
      %2224 = vmatmul.f32.gmra.mxu0 %v881
      %v2225 = vpop.f32.mrf.mxu0
      %v2226 = vadd.f32 0.0, %v2225
      %2227 = vmatmul.f32.gmra.mxu0 %v883
      %v2228 = vpop.f32.mrf.mxu0
      %v2229 = vadd.f32 0.0, %v2228
      %2230 = vmatmul.f32.gmra.mxu0 %v885
      %v2231 = vpop.f32.mrf.mxu0
      %v2232 = vadd.f32 0.0, %v2231
      %2233 = vmatmul.f32.gmra.mxu0 %v887
      %v2234 = vpop.f32.mrf.mxu0
      %v2235 = vadd.f32 0.0, %v2234
      %2236 = vmatmul.f32.gmra.mxu0 %v889
      %v2237 = vpop.f32.mrf.mxu0
      %v2238 = vadd.f32 0.0, %v2237
      %2239 = vmatmul.f32.gmra.mxu0 %v891
      %v2240 = vpop.f32.mrf.mxu0
      %v2241 = vadd.f32 0.0, %v2240
      %2242 = vmatmul.f32.gmra.mxu0 %v893
      %v2243 = vpop.f32.mrf.mxu0
      %v2244 = vadd.f32 0.0, %v2243
      %2245 = vmatmul.f32.gmra.mxu0 %v895
      %v2246 = vpop.f32.mrf.mxu0
      %v2247 = vadd.f32 0.0, %v2246
      %2248 = vmatmul.f32.gmra.mxu0 %v897
      %v2249 = vpop.f32.mrf.mxu0
      %v2250 = vadd.f32 0.0, %v2249
      %2251 = vmatmul.f32.gmra.mxu0 %v899
      %v2252 = vpop.f32.mrf.mxu0
      %v2253 = vadd.f32 0.0, %v2252
      %2254 = vmatmul.f32.gmra.mxu0 %v901
      %v2255 = vpop.f32.mrf.mxu0
      %v2256 = vadd.f32 0.0, %v2255
      %2257 = vmatmul.f32.gmra.mxu0 %v1674
      %v2258 = vpop.f32.mrf.mxu0
      %v2259 = vadd.f32 0.0, %v2258
      %2260 = vmatmul.f32.gmra.mxu0 %v1676
      %v2261 = vpop.f32.mrf.mxu0
      %v2262 = vadd.f32 0.0, %v2261
      %2263 = vmatmul.f32.gmra.mxu0 %v2150
      %v2264 = vpop.f32.mrf.mxu0
      %v2265 = vadd.f32 0.0, %v2264
      %2266 = vmatmul.f32.gmra.mxu0 %v2152
      %v2267 = vpop.f32.mrf.mxu0
      %v2268 = vadd.f32 0.0, %v2267
      %2269 = vdwg.mxu0
      %v2270 = vadd.f32 %v2116, %v2175
      %v2271 = vadd.f32 %v2117, %v2178
      %v2272 = vadd.f32 %v2118, %v2181
      %v2273 = vadd.f32 %v2119, %v2184
      %v2274 = vadd.f32 %v2120, %v2187
      %v2275 = vadd.f32 %v2121, %v2190
      %v2276 = vadd.f32 %v2122, %v2193
      %v2277 = vadd.f32 %v2123, %v2196
      %v2278 = vadd.f32 %v2124, %v2199
      %v2279 = vadd.f32 %v2125, %v2202
      %v2280 = vadd.f32 %v2126, %v2205
      %v2281 = vadd.f32 %v2127, %v2208
      %v2282 = vadd.f32 %v2128, %v2211
      %v2283 = vadd.f32 %v2129, %v2214
      %v2284 = vadd.f32 %v2130, %v2217
      %v2285 = vadd.f32 %v2131, %v2220
      %v2286 = vadd.f32 %v2132, %v2223
      %v2287 = vadd.f32 %v2133, %v2226
      %v2288 = vadd.f32 %v2134, %v2229
      %v2289 = vadd.f32 %v2135, %v2232
      %v2290 = vadd.f32 %v2136, %v2235
      %v2291 = vadd.f32 %v2137, %v2238
      %v2292 = vadd.f32 %v2138, %v2241
      %v2293 = vadd.f32 %v2139, %v2244
      %v2294 = vadd.f32 %v2140, %v2247
      %v2295 = vadd.f32 %v2141, %v2250
      %v2296 = vadd.f32 %v2142, %v2253
      %v2297 = vadd.f32 %v2143, %v2256
      %v2298 = vadd.f32 %v2144, %v2259
      %v2299 = vadd.f32 %v2145, %v2262
      %v2300 = vadd.f32 %v2146, %v2265
      %v2301 = vadd.f32 %v2147, %v2268
      %v2303 = vrot.slane %v704, 1
      %v2304 = vrot.slane %v705, 1
      %v2305 = vsel %vm1215, %v2303, %v2304
      %v2306 = vrot.slane %v706, 1
      %v2307 = vsel %vm1215, %v2304, %v2306
      %s2308 = scalar_lea.vmem %s1, 32
      %v2309 = vld [vmem:[%s2308] sm:$0xf]
      %v2310 = vsel %vm311, %v2305, 0
      %v2312 = vsel %vm311, %v2307, 0
      %v2315 = vsel %vm518, %v2309, 0
      %2317 = vmatpush.msra.mxu0 0.0
      %2318 = vmatpush.msra.mxu0 0.0
      %2319 = vmatpush.msra.mxu0 0.0
      %2320 = vmatpush.msra.mxu0 0.0
      %2321 = vmatpush.msra.mxu0 0.0
      %2322 = vmatpush.msra.mxu0 0.0
      %2323 = vmatpush.msra.mxu0 0.0
      %2324 = vmatpush.msra.mxu0 0.0
      %2325 = vmatpush.msra.mxu0 0.0
      %2326 = vmatpush.msra.mxu0 0.0
      %2327 = vmatpush.msra.mxu0 0.0
      %2328 = vmatpush.msra.mxu0 0.0
      %2329 = vmatpush.msra.mxu0 0.0
      %2330 = vmatpush.msra.mxu0 0.0
      %2331 = vmatpush.msra.mxu0 0.0
      %2332 = vmatpush.msra.mxu0 %v2315
      %2333 = vmatmul.f32.gmra.mxu0 %v1306
      %v2334 = vpop.f32.mrf.mxu0
      %v2335 = vadd.f32 0.0, %v2334
      %2336 = vmatmul.f32.gmra.mxu0 %v1308
      %v2337 = vpop.f32.mrf.mxu0
      %v2338 = vadd.f32 0.0, %v2337
      %2339 = vmatmul.f32.gmra.mxu0 %v1310
      %v2340 = vpop.f32.mrf.mxu0
      %v2341 = vadd.f32 0.0, %v2340
      %2342 = vmatmul.f32.gmra.mxu0 %v1312
      %v2343 = vpop.f32.mrf.mxu0
      %v2344 = vadd.f32 0.0, %v2343
      %2345 = vmatmul.f32.gmra.mxu0 %v1314
      %v2346 = vpop.f32.mrf.mxu0
      %v2347 = vadd.f32 0.0, %v2346
      %2348 = vmatmul.f32.gmra.mxu0 %v1316
      %v2349 = vpop.f32.mrf.mxu0
      %v2350 = vadd.f32 0.0, %v2349
      %2351 = vmatmul.f32.gmra.mxu0 %v1318
      %v2352 = vpop.f32.mrf.mxu0
      %v2353 = vadd.f32 0.0, %v2352
      %2354 = vmatmul.f32.gmra.mxu0 %v1320
      %v2355 = vpop.f32.mrf.mxu0
      %v2356 = vadd.f32 0.0, %v2355
      %2357 = vmatmul.f32.gmra.mxu0 %v1322
      %v2358 = vpop.f32.mrf.mxu0
      %v2359 = vadd.f32 0.0, %v2358
      %2360 = vmatmul.f32.gmra.mxu0 %v1324
      %v2361 = vpop.f32.mrf.mxu0
      %v2362 = vadd.f32 0.0, %v2361
      %2363 = vmatmul.f32.gmra.mxu0 %v1326
      %v2364 = vpop.f32.mrf.mxu0
      %v2365 = vadd.f32 0.0, %v2364
      %2366 = vmatmul.f32.gmra.mxu0 %v1328
      %v2367 = vpop.f32.mrf.mxu0
      %v2368 = vadd.f32 0.0, %v2367
      %2369 = vmatmul.f32.gmra.mxu0 %v1330
      %v2370 = vpop.f32.mrf.mxu0
      %v2371 = vadd.f32 0.0, %v2370
      %2372 = vmatmul.f32.gmra.mxu0 %v1332
      %v2373 = vpop.f32.mrf.mxu0
      %v2374 = vadd.f32 0.0, %v2373
      %2375 = vmatmul.f32.gmra.mxu0 %v1334
      %v2376 = vpop.f32.mrf.mxu0
      %v2377 = vadd.f32 0.0, %v2376
      %2378 = vmatmul.f32.gmra.mxu0 %v1336
      %v2379 = vpop.f32.mrf.mxu0
      %v2380 = vadd.f32 0.0, %v2379
      %2381 = vmatmul.f32.gmra.mxu0 %v1338
      %v2382 = vpop.f32.mrf.mxu0
      %v2383 = vadd.f32 0.0, %v2382
      %2384 = vmatmul.f32.gmra.mxu0 %v1340
      %v2385 = vpop.f32.mrf.mxu0
      %v2386 = vadd.f32 0.0, %v2385
      %2387 = vmatmul.f32.gmra.mxu0 %v1342
      %v2388 = vpop.f32.mrf.mxu0
      %v2389 = vadd.f32 0.0, %v2388
      %2390 = vmatmul.f32.gmra.mxu0 %v1344
      %v2391 = vpop.f32.mrf.mxu0
      %v2392 = vadd.f32 0.0, %v2391
      %2393 = vmatmul.f32.gmra.mxu0 %v1346
      %v2394 = vpop.f32.mrf.mxu0
      %v2395 = vadd.f32 0.0, %v2394
      %2396 = vmatmul.f32.gmra.mxu0 %v1348
      %v2397 = vpop.f32.mrf.mxu0
      %v2398 = vadd.f32 0.0, %v2397
      %2399 = vmatmul.f32.gmra.mxu0 %v1350
      %v2400 = vpop.f32.mrf.mxu0
      %v2401 = vadd.f32 0.0, %v2400
      %2402 = vmatmul.f32.gmra.mxu0 %v1352
      %v2403 = vpop.f32.mrf.mxu0
      %v2404 = vadd.f32 0.0, %v2403
      %2405 = vmatmul.f32.gmra.mxu0 %v1354
      %v2406 = vpop.f32.mrf.mxu0
      %v2407 = vadd.f32 0.0, %v2406
      %2408 = vmatmul.f32.gmra.mxu0 %v1356
      %v2409 = vpop.f32.mrf.mxu0
      %v2410 = vadd.f32 0.0, %v2409
      %2411 = vmatmul.f32.gmra.mxu0 %v1358
      %v2412 = vpop.f32.mrf.mxu0
      %v2413 = vadd.f32 0.0, %v2412
      %2414 = vmatmul.f32.gmra.mxu0 %v1360
      %v2415 = vpop.f32.mrf.mxu0
      %v2416 = vadd.f32 0.0, %v2415
      %2417 = vmatmul.f32.gmra.mxu0 %v1834
      %v2418 = vpop.f32.mrf.mxu0
      %v2419 = vadd.f32 0.0, %v2418
      %2420 = vmatmul.f32.gmra.mxu0 %v1836
      %v2421 = vpop.f32.mrf.mxu0
      %v2422 = vadd.f32 0.0, %v2421
      %2423 = vmatmul.f32.gmra.mxu0 %v2310
      %v2424 = vpop.f32.mrf.mxu0
      %v2425 = vadd.f32 0.0, %v2424
      %2426 = vmatmul.f32.gmra.mxu0 %v2312
      %v2427 = vpop.f32.mrf.mxu0
      %v2428 = vadd.f32 0.0, %v2427
      %2429 = vdwg.mxu0
      %v2430 = vadd.f32 %v2270, %v2335
      %v2431 = vadd.f32 %v2271, %v2338
      %v2432 = vadd.f32 %v2272, %v2341
      %v2433 = vadd.f32 %v2273, %v2344
      %v2434 = vadd.f32 %v2274, %v2347
      %v2435 = vadd.f32 %v2275, %v2350
      %v2436 = vadd.f32 %v2276, %v2353
      %v2437 = vadd.f32 %v2277, %v2356
      %v2438 = vadd.f32 %v2278, %v2359
      %v2439 = vadd.f32 %v2279, %v2362
      %v2440 = vadd.f32 %v2280, %v2365
      %v2441 = vadd.f32 %v2281, %v2368
      %v2442 = vadd.f32 %v2282, %v2371
      %v2443 = vadd.f32 %v2283, %v2374
      %v2444 = vadd.f32 %v2284, %v2377
      %v2445 = vadd.f32 %v2285, %v2380
      %v2446 = vadd.f32 %v2286, %v2383
      %v2447 = vadd.f32 %v2287, %v2386
      %v2448 = vadd.f32 %v2288, %v2389
      %v2449 = vadd.f32 %v2289, %v2392
      %v2450 = vadd.f32 %v2290, %v2395
      %v2451 = vadd.f32 %v2291, %v2398
      %v2452 = vadd.f32 %v2292, %v2401
      %v2453 = vadd.f32 %v2293, %v2404
      %v2454 = vadd.f32 %v2294, %v2407
      %v2455 = vadd.f32 %v2295, %v2410
      %v2456 = vadd.f32 %v2296, %v2413
      %v2457 = vadd.f32 %v2297, %v2416
      %v2458 = vadd.f32 %v2298, %v2419
      %v2459 = vadd.f32 %v2299, %v2422
      %v2460 = vadd.f32 %v2300, %v2425
      %v2461 = vadd.f32 %v2301, %v2428
      %v2462 = vld [vmem:[%s2] sm:$0x1]
      %v2464 = vperm.slane %v2462, 0
      %v2466 = vadd.f32 %v2430, %v2464
      %v2467 = vadd.f32 %v2431, %v2464
      %v2468 = vadd.f32 %v2432, %v2464
      %v2469 = vadd.f32 %v2433, %v2464
      %v2470 = vadd.f32 %v2434, %v2464
      %v2471 = vadd.f32 %v2435, %v2464
      %v2472 = vadd.f32 %v2436, %v2464
      %v2473 = vadd.f32 %v2437, %v2464
      %v2474 = vadd.f32 %v2438, %v2464
      %v2475 = vadd.f32 %v2439, %v2464
      %v2476 = vadd.f32 %v2440, %v2464
      %v2477 = vadd.f32 %v2441, %v2464
      %v2478 = vadd.f32 %v2442, %v2464
      %v2479 = vadd.f32 %v2443, %v2464
      %v2480 = vadd.f32 %v2444, %v2464
      %v2481 = vadd.f32 %v2445, %v2464
      %v2482 = vadd.f32 %v2446, %v2464
      %v2483 = vadd.f32 %v2447, %v2464
      %v2484 = vadd.f32 %v2448, %v2464
      %v2485 = vadd.f32 %v2449, %v2464
      %v2486 = vadd.f32 %v2450, %v2464
      %v2487 = vadd.f32 %v2451, %v2464
      %v2488 = vadd.f32 %v2452, %v2464
      %v2489 = vadd.f32 %v2453, %v2464
      %v2490 = vadd.f32 %v2454, %v2464
      %v2491 = vadd.f32 %v2455, %v2464
      %v2492 = vadd.f32 %v2456, %v2464
      %v2493 = vadd.f32 %v2457, %v2464
      %v2494 = vadd.f32 %v2458, %v2464
      %v2495 = vadd.f32 %v2459, %v2464
      %v2496 = vadd.f32 %v2460, %v2464
      %v2497 = vadd.f32 %v2461, %v2464
      %v2498 = vmul.f32 %v2466, 0.5
      %v2499 = vmul.f32 %v2467, 0.5
      %v2500 = vmul.f32 %v2468, 0.5
      %v2501 = vmul.f32 %v2469, 0.5
      %v2502 = vmul.f32 %v2470, 0.5
      %v2503 = vmul.f32 %v2471, 0.5
      %v2504 = vmul.f32 %v2472, 0.5
      %v2505 = vmul.f32 %v2473, 0.5
      %v2506 = vmul.f32 %v2474, 0.5
      %v2507 = vmul.f32 %v2475, 0.5
      %v2508 = vmul.f32 %v2476, 0.5
      %v2509 = vmul.f32 %v2477, 0.5
      %v2510 = vmul.f32 %v2478, 0.5
      %v2511 = vmul.f32 %v2479, 0.5
      %v2512 = vmul.f32 %v2480, 0.5
      %v2513 = vmul.f32 %v2481, 0.5
      %v2514 = vmul.f32 %v2482, 0.5
      %v2515 = vmul.f32 %v2483, 0.5
      %v2516 = vmul.f32 %v2484, 0.5
      %v2517 = vmul.f32 %v2485, 0.5
      %v2518 = vmul.f32 %v2486, 0.5
      %v2519 = vmul.f32 %v2487, 0.5
      %v2520 = vmul.f32 %v2488, 0.5
      %v2521 = vmul.f32 %v2489, 0.5
      %v2522 = vmul.f32 %v2490, 0.5
      %v2523 = vmul.f32 %v2491, 0.5
      %v2524 = vmul.f32 %v2492, 0.5
      %v2525 = vmul.f32 %v2493, 0.5
      %v2526 = vmul.f32 %v2494, 0.5
      %v2527 = vmul.f32 %v2495, 0.5
      %v2528 = vmul.f32 %v2496, 0.5
      %v2529 = vmul.f32 %v2497, 0.5
      %vm2530 = vcmp.ge.f32.partialorder %v2498, 1.0
      %vm2531 = vcmp.ge.f32.partialorder %v2499, 1.0
      %vm2532 = vcmp.ge.f32.partialorder %v2500, 1.0
      %vm2533 = vcmp.ge.f32.partialorder %v2501, 1.0
      %vm2534 = vcmp.ge.f32.partialorder %v2502, 1.0
      %vm2535 = vcmp.ge.f32.partialorder %v2503, 1.0
      %vm2536 = vcmp.ge.f32.partialorder %v2504, 1.0
      %vm2537 = vcmp.ge.f32.partialorder %v2505, 1.0
      %vm2538 = vcmp.ge.f32.partialorder %v2506, 1.0
      %vm2539 = vcmp.ge.f32.partialorder %v2507, 1.0
      %vm2540 = vcmp.ge.f32.partialorder %v2508, 1.0
      %vm2541 = vcmp.ge.f32.partialorder %v2509, 1.0
      %vm2542 = vcmp.ge.f32.partialorder %v2510, 1.0
      %vm2543 = vcmp.ge.f32.partialorder %v2511, 1.0
      %vm2544 = vcmp.ge.f32.partialorder %v2512, 1.0
      %vm2545 = vcmp.ge.f32.partialorder %v2513, 1.0
      %vm2546 = vcmp.ge.f32.partialorder %v2514, 1.0
      %vm2547 = vcmp.ge.f32.partialorder %v2515, 1.0
      %vm2548 = vcmp.ge.f32.partialorder %v2516, 1.0
      %vm2549 = vcmp.ge.f32.partialorder %v2517, 1.0
      %vm2550 = vcmp.ge.f32.partialorder %v2518, 1.0
      %vm2551 = vcmp.ge.f32.partialorder %v2519, 1.0
      %vm2552 = vcmp.ge.f32.partialorder %v2520, 1.0
      %vm2553 = vcmp.ge.f32.partialorder %v2521, 1.0
      %vm2554 = vcmp.ge.f32.partialorder %v2522, 1.0
      %vm2555 = vcmp.ge.f32.partialorder %v2523, 1.0
      %vm2556 = vcmp.ge.f32.partialorder %v2524, 1.0
      %vm2557 = vcmp.ge.f32.partialorder %v2525, 1.0
      %vm2558 = vcmp.ge.f32.partialorder %v2526, 1.0
      %vm2559 = vcmp.ge.f32.partialorder %v2527, 1.0
      %vm2560 = vcmp.ge.f32.partialorder %v2528, 1.0
      %vm2561 = vcmp.ge.f32.partialorder %v2529, 1.0
      %v2562 = vsel %vm2530, 1, 0
      %v2563 = vsel %vm2531, 1, 0
      %v2564 = vsel %vm2532, 1, 0
      %v2565 = vsel %vm2533, 1, 0
      %v2566 = vsel %vm2534, 1, 0
      %v2567 = vsel %vm2535, 1, 0
      %v2568 = vsel %vm2536, 1, 0
      %v2569 = vsel %vm2537, 1, 0
      %v2570 = vsel %vm2538, 1, 0
      %v2571 = vsel %vm2539, 1, 0
      %v2572 = vsel %vm2540, 1, 0
      %v2573 = vsel %vm2541, 1, 0
      %v2574 = vsel %vm2542, 1, 0
      %v2575 = vsel %vm2543, 1, 0
      %v2576 = vsel %vm2544, 1, 0
      %v2577 = vsel %vm2545, 1, 0
      %v2578 = vsel %vm2546, 1, 0
      %v2579 = vsel %vm2547, 1, 0
      %v2580 = vsel %vm2548, 1, 0
      %v2581 = vsel %vm2549, 1, 0
      %v2582 = vsel %vm2550, 1, 0
      %v2583 = vsel %vm2551, 1, 0
      %v2584 = vsel %vm2552, 1, 0
      %v2585 = vsel %vm2553, 1, 0
      %v2586 = vsel %vm2554, 1, 0
      %v2587 = vsel %vm2555, 1, 0
      %v2588 = vsel %vm2556, 1, 0
      %v2589 = vsel %vm2557, 1, 0
      %v2590 = vsel %vm2558, 1, 0
      %v2591 = vsel %vm2559, 1, 0
      %v2592 = vsel %vm2560, 1, 0
      %v2593 = vsel %vm2561, 1, 0
      %v2594 = vcvt.s32.f32 %v2562
      %v2595 = vcvt.s32.f32 %v2563
      %v2596 = vcvt.s32.f32 %v2564
      %v2597 = vcvt.s32.f32 %v2565
      %v2598 = vcvt.s32.f32 %v2566
      %v2599 = vcvt.s32.f32 %v2567
      %v2600 = vcvt.s32.f32 %v2568
      %v2601 = vcvt.s32.f32 %v2569
      %v2602 = vcvt.s32.f32 %v2570
      %v2603 = vcvt.s32.f32 %v2571
      %v2604 = vcvt.s32.f32 %v2572
      %v2605 = vcvt.s32.f32 %v2573
      %v2606 = vcvt.s32.f32 %v2574
      %v2607 = vcvt.s32.f32 %v2575
      %v2608 = vcvt.s32.f32 %v2576
      %v2609 = vcvt.s32.f32 %v2577
      %v2610 = vcvt.s32.f32 %v2578
      %v2611 = vcvt.s32.f32 %v2579
      %v2612 = vcvt.s32.f32 %v2580
      %v2613 = vcvt.s32.f32 %v2581
      %v2614 = vcvt.s32.f32 %v2582
      %v2615 = vcvt.s32.f32 %v2583
      %v2616 = vcvt.s32.f32 %v2584
      %v2617 = vcvt.s32.f32 %v2585
      %v2618 = vcvt.s32.f32 %v2586
      %v2619 = vcvt.s32.f32 %v2587
      %v2620 = vcvt.s32.f32 %v2588
      %v2621 = vcvt.s32.f32 %v2589
      %v2622 = vcvt.s32.f32 %v2590
      %v2623 = vcvt.s32.f32 %v2591
      %v2624 = vcvt.s32.f32 %v2592
      %v2625 = vcvt.s32.f32 %v2593
      %vm2626 = vcmask 64512
      %2627 = vst.msk [vmem:[#allocation3] sm:$0xff] %vm2626, 0.0
      %2628 = vst.msk [vmem:[#allocation3 + $0x8] sm:$0xff] %vm2626, 0.0
      %2629 = vst.msk [vmem:[#allocation3 + $0x10] sm:$0xff] %vm2626, 0.0
      %2630 = vst.msk [vmem:[#allocation3 + $0x18] sm:$0xff] %vm2626, 0.0
      %2631 = vst.msk [vmem:[#allocation3 + $0x20] sm:$0xff] %vm2626, 0.0
      %2632 = vst.msk [vmem:[#allocation3 + $0x28] sm:$0xff] %vm2626, 0.0
      %2633 = vst.msk [vmem:[#allocation3 + $0x30] sm:$0xff] %vm2626, 0.0
      %2634 = vst.msk [vmem:[#allocation3 + $0x38] sm:$0xff] %vm2626, 0.0
      %2635 = vst.msk [vmem:[#allocation3 + $0x40] sm:$0xff] %vm2626, 0.0
      %2636 = vst.msk [vmem:[#allocation3 + $0x48] sm:$0xff] %vm2626, 0.0
      %2637 = vst.msk [vmem:[#allocation3 + $0x50] sm:$0xff] %vm2626, 0.0
      %2638 = vst.msk [vmem:[#allocation3 + $0x58] sm:$0xff] %vm2626, 0.0
      %2639 = vst.msk [vmem:[#allocation3 + $0x60] sm:$0xff] %vm2626, 0.0
      %2640 = vst.msk [vmem:[#allocation3 + $0x68] sm:$0xff] %vm2626, 0.0
      %2641 = vst.msk [vmem:[#allocation3 + $0x70] sm:$0xff] %vm2626, 0.0
      %2642 = vst.msk [vmem:[#allocation3 + $0x78] sm:$0xff] %vm2626, 0.0
      %2643 = vst.msk [vmem:[#allocation3 + $0x80] sm:$0xff] %vm2626, 0.0
      %2644 = vst.msk [vmem:[#allocation3 + $0x88] sm:$0xff] %vm2626, 0.0
      %2645 = vst.msk [vmem:[#allocation3 + $0x90] sm:$0xff] %vm2626, 0.0
      %2646 = vst.msk [vmem:[#allocation3 + $0x98] sm:$0xff] %vm2626, 0.0
      %2647 = vst.msk [vmem:[#allocation3 + $0xa0] sm:$0xff] %vm2626, 0.0
      %2648 = vst.msk [vmem:[#allocation3 + $0xa8] sm:$0xff] %vm2626, 0.0
      %2649 = vst.msk [vmem:[#allocation3 + $0xb0] sm:$0xff] %vm2626, 0.0
      %2650 = vst.msk [vmem:[#allocation3 + $0xb8] sm:$0xff] %vm2626, 0.0
      %2651 = vst.msk [vmem:[#allocation3 + $0xc0] sm:$0xff] %vm2626, 0.0
      %2652 = vst.msk [vmem:[#allocation3 + $0xc8] sm:$0xff] %vm2626, 0.0
      %2653 = vst.msk [vmem:[#allocation3 + $0xd0] sm:$0xff] %vm2626, 0.0
      %2654 = vst.msk [vmem:[#allocation3 + $0xd8] sm:$0xff] %vm2626, 0.0
      %2655 = vst.msk [vmem:[#allocation3 + $0xe0] sm:$0xff] %vm2626, 0.0
      %2656 = vst.msk [vmem:[#allocation3 + $0xe8] sm:$0xff] %vm2626, 0.0
      %2657 = vst.msk [vmem:[#allocation3 + $0xf0] sm:$0xff] %vm2626, 0.0
      %2658 = vst.msk [vmem:[#allocation3 + $0xf8] sm:$0xff] %vm2626, 0.0
      %2659 = vst.msk [vmem:[#allocation3 + $0x100] sm:$0xff] %vm2626, 0.0
      %2660 = vst.msk [vmem:[#allocation3 + $0x108] sm:$0xff] %vm2626, 0.0
      %2661 = vst.msk [vmem:[#allocation3 + $0x110] sm:$0xff] %vm2626, 0.0
      %2662 = vst.msk [vmem:[#allocation3 + $0x118] sm:$0xff] %vm2626, 0.0
      %2663 = vst.msk [vmem:[#allocation3 + $0x120] sm:$0xff] %vm2626, 0.0
      %2664 = vst.msk [vmem:[#allocation3 + $0x128] sm:$0xff] %vm2626, 0.0
      %2665 = vst.msk [vmem:[#allocation3 + $0x130] sm:$0xff] %vm2626, 0.0
      %2666 = vst.msk [vmem:[#allocation3 + $0x138] sm:$0xff] %vm2626, 0.0
      %2667 = vst.msk [vmem:[#allocation3 + $0x140] sm:$0xff] %vm2626, 0.0
      %2668 = vst.msk [vmem:[#allocation3 + $0x148] sm:$0xff] %vm2626, 0.0
      %2669 = vst.msk [vmem:[#allocation3 + $0x150] sm:$0xff] %vm2626, 0.0
      %2670 = vst.msk [vmem:[#allocation3 + $0x158] sm:$0xff] %vm2626, 0.0
      %2671 = vst.msk [vmem:[#allocation3 + $0x160] sm:$0xff] %vm2626, 0.0
      %2672 = vst.msk [vmem:[#allocation3 + $0x168] sm:$0xff] %vm2626, 0.0
      %2673 = vst.msk [vmem:[#allocation3 + $0x170] sm:$0xff] %vm2626, 0.0
      %2674 = vst.msk [vmem:[#allocation3 + $0x178] sm:$0xff] %vm2626, 0.0
      %2675 = vst.msk [vmem:[#allocation3 + $0x180] sm:$0xff] %vm2626, 0.0
      %2676 = vst.msk [vmem:[#allocation3 + $0x188] sm:$0xff] %vm2626, 0.0
      %2677 = vst.msk [vmem:[#allocation3 + $0x190] sm:$0xff] %vm2626, 0.0
      %2678 = vst.msk [vmem:[#allocation3 + $0x198] sm:$0xff] %vm2626, 0.0
      %2679 = vst.msk [vmem:[#allocation3 + $0x1a0] sm:$0xff] %vm2626, 0.0
      %2680 = vst.msk [vmem:[#allocation3 + $0x1a8] sm:$0xff] %vm2626, 0.0
      %2681 = vst.msk [vmem:[#allocation3 + $0x1b0] sm:$0xff] %vm2626, 0.0
      %2682 = vst.msk [vmem:[#allocation3 + $0x1b8] sm:$0xff] %vm2626, 0.0
      %2683 = vst.msk [vmem:[#allocation3 + $0x1c0] sm:$0xff] %vm2626, 0.0
      %2684 = vst.msk [vmem:[#allocation3 + $0x1c8] sm:$0xff] %vm2626, 0.0
      %2685 = vst.msk [vmem:[#allocation3 + $0x1d0] sm:$0xff] %vm2626, 0.0
      %2686 = vst.msk [vmem:[#allocation3 + $0x1d8] sm:$0xff] %vm2626, 0.0
      %2687 = vst.msk [vmem:[#allocation3 + $0x1e0] sm:$0xff] %vm2626, 0.0
      %2688 = vst.msk [vmem:[#allocation3 + $0x1e8] sm:$0xff] %vm2626, 0.0
      %2689 = vst.msk [vmem:[#allocation3 + $0x1f0] sm:$0xff] %vm2626, 0.0
      %2690 = vst.msk [vmem:[#allocation3 + $0x1f8] sm:$0xff] %vm2626, 0.0
      %2691 = vst.msk [vmem:[#allocation3 + $0x200] sm:$0xff] %vm2626, 0.0
      %2692 = vst.msk [vmem:[#allocation3 + $0x208] sm:$0xff] %vm2626, 0.0
      %2693 = vst.msk [vmem:[#allocation3 + $0x210] sm:$0xff] %vm2626, 0.0
      %2694 = vst.msk [vmem:[#allocation3 + $0x218] sm:$0xff] %vm2626, 0.0
      %2695 = vst.msk [vmem:[#allocation3 + $0x220] sm:$0xff] %vm2626, 0.0
      %2696 = vst.msk [vmem:[#allocation3 + $0x228] sm:$0xff] %vm2626, 0.0
      %2697 = vst.msk [vmem:[#allocation3 + $0x230] sm:$0xff] %vm2626, 0.0
      %2698 = vst.msk [vmem:[#allocation3 + $0x238] sm:$0xff] %vm2626, 0.0
      %s2699 = scalar_lea.vmem [#allocation3], 32
      %2700 = vst.msk [vmem:[%s2699 + $0x8] sm:$0xff] %vm2626, %v2594
      %2701 = vst.msk [vmem:[%s2699 + $0x10] sm:$0xff] %vm2626, %v2595
      %2702 = vst.msk [vmem:[%s2699 + $0x28] sm:$0xff] %vm2626, %v2596
      %2703 = vst.msk [vmem:[%s2699 + $0x30] sm:$0xff] %vm2626, %v2597
      %2704 = vst.msk [vmem:[%s2699 + $0x48] sm:$0xff] %vm2626, %v2598
      %2705 = vst.msk [vmem:[%s2699 + $0x50] sm:$0xff] %vm2626, %v2599
      %2706 = vst.msk [vmem:[%s2699 + $0x68] sm:$0xff] %vm2626, %v2600
      %2707 = vst.msk [vmem:[%s2699 + $0x70] sm:$0xff] %vm2626, %v2601
      %2708 = vst.msk [vmem:[%s2699 + $0x88] sm:$0xff] %vm2626, %v2602
      %2709 = vst.msk [vmem:[%s2699 + $0x90] sm:$0xff] %vm2626, %v2603
      %2710 = vst.msk [vmem:[%s2699 + $0xa8] sm:$0xff] %vm2626, %v2604
      %2711 = vst.msk [vmem:[%s2699 + $0xb0] sm:$0xff] %vm2626, %v2605
      %2712 = vst.msk [vmem:[%s2699 + $0xc8] sm:$0xff] %vm2626, %v2606
      %2713 = vst.msk [vmem:[%s2699 + $0xd0] sm:$0xff] %vm2626, %v2607
      %2714 = vst.msk [vmem:[%s2699 + $0xe8] sm:$0xff] %vm2626, %v2608
      %2715 = vst.msk [vmem:[%s2699 + $0xf0] sm:$0xff] %vm2626, %v2609
      %2716 = vst.msk [vmem:[%s2699 + $0x108] sm:$0xff] %vm2626, %v2610
      %2717 = vst.msk [vmem:[%s2699 + $0x110] sm:$0xff] %vm2626, %v2611
      %2718 = vst.msk [vmem:[%s2699 + $0x128] sm:$0xff] %vm2626, %v2612
      %2719 = vst.msk [vmem:[%s2699 + $0x130] sm:$0xff] %vm2626, %v2613
      %2720 = vst.msk [vmem:[%s2699 + $0x148] sm:$0xff] %vm2626, %v2614
      %2721 = vst.msk [vmem:[%s2699 + $0x150] sm:$0xff] %vm2626, %v2615
      %2722 = vst.msk [vmem:[%s2699 + $0x168] sm:$0xff] %vm2626, %v2616
      %2723 = vst.msk [vmem:[%s2699 + $0x170] sm:$0xff] %vm2626, %v2617
      %2724 = vst.msk [vmem:[%s2699 + $0x188] sm:$0xff] %vm2626, %v2618
      %2725 = vst.msk [vmem:[%s2699 + $0x190] sm:$0xff] %vm2626, %v2619
      %2726 = vst.msk [vmem:[%s2699 + $0x1a8] sm:$0xff] %vm2626, %v2620
      %2727 = vst.msk [vmem:[%s2699 + $0x1b0] sm:$0xff] %vm2626, %v2621
      %2728 = vst.msk [vmem:[%s2699 + $0x1c8] sm:$0xff] %vm2626, %v2622
      %2729 = vst.msk [vmem:[%s2699 + $0x1d0] sm:$0xff] %vm2626, %v2623
      %2730 = vst.msk [vmem:[%s2699 + $0x1e8] sm:$0xff] %vm2626, %v2624
      %2731 = vst.msk [vmem:[%s2699 + $0x1f0] sm:$0xff] %vm2626, %v2625
      %v2732 = vld [vmem:[#allocation3] sm:$0xff]
      %v2733 = vld [vmem:[#allocation3 + $0x8] sm:$0xff]
      %v2734 = vld [vmem:[#allocation3 + $0x10] sm:$0xff]
      %v2735 = vld [vmem:[#allocation3 + $0x18] sm:$0xff]
      %v2736 = vld [vmem:[#allocation3 + $0x20] sm:$0xff]
      %v2737 = vld [vmem:[#allocation3 + $0x28] sm:$0xff]
      %v2738 = vld [vmem:[#allocation3 + $0x30] sm:$0xff]
      %v2739 = vld [vmem:[#allocation3 + $0x38] sm:$0xff]
      %v2740 = vld [vmem:[#allocation3 + $0x40] sm:$0xff]
      %v2741 = vld [vmem:[#allocation3 + $0x48] sm:$0xff]
      %v2742 = vld [vmem:[#allocation3 + $0x50] sm:$0xff]
      %v2743 = vld [vmem:[#allocation3 + $0x58] sm:$0xff]
      %v2744 = vld [vmem:[#allocation3 + $0x60] sm:$0xff]
      %v2745 = vld [vmem:[#allocation3 + $0x68] sm:$0xff]
      %v2746 = vld [vmem:[#allocation3 + $0x70] sm:$0xff]
      %v2747 = vld [vmem:[#allocation3 + $0x78] sm:$0xff]
      %v2748 = vld [vmem:[#allocation3 + $0x80] sm:$0xff]
      %v2749 = vld [vmem:[#allocation3 + $0x88] sm:$0xff]
      %v2750 = vld [vmem:[#allocation3 + $0x90] sm:$0xff]
      %v2751 = vld [vmem:[#allocation3 + $0x98] sm:$0xff]
      %v2752 = vld [vmem:[#allocation3 + $0xa0] sm:$0xff]
      %v2753 = vld [vmem:[#allocation3 + $0xa8] sm:$0xff]
      %v2754 = vld [vmem:[#allocation3 + $0xb0] sm:$0xff]
      %v2755 = vld [vmem:[#allocation3 + $0xb8] sm:$0xff]
      %v2756 = vld [vmem:[#allocation3 + $0xc0] sm:$0xff]
      %v2757 = vld [vmem:[#allocation3 + $0xc8] sm:$0xff]
      %v2758 = vld [vmem:[#allocation3 + $0xd0] sm:$0xff]
      %v2759 = vld [vmem:[#allocation3 + $0xd8] sm:$0xff]
      %v2760 = vld [vmem:[#allocation3 + $0xe0] sm:$0xff]
      %v2761 = vld [vmem:[#allocation3 + $0xe8] sm:$0xff]
      %v2762 = vld [vmem:[#allocation3 + $0xf0] sm:$0xff]
      %v2763 = vld [vmem:[#allocation3 + $0xf8] sm:$0xff]
      %v2764 = vld [vmem:[#allocation3 + $0x100] sm:$0xff]
      %v2765 = vld [vmem:[#allocation3 + $0x108] sm:$0xff]
      %v2766 = vld [vmem:[#allocation3 + $0x110] sm:$0xff]
      %v2767 = vld [vmem:[#allocation3 + $0x118] sm:$0xff]
      %v2768 = vld [vmem:[#allocation3 + $0x120] sm:$0xff]
      %v2769 = vld [vmem:[#allocation3 + $0x128] sm:$0xff]
      %v2770 = vld [vmem:[#allocation3 + $0x130] sm:$0xff]
      %v2771 = vld [vmem:[#allocation3 + $0x138] sm:$0xff]
      %v2772 = vld [vmem:[#allocation3 + $0x140] sm:$0xff]
      %v2773 = vld [vmem:[#allocation3 + $0x148] sm:$0xff]
      %v2774 = vld [vmem:[#allocation3 + $0x150] sm:$0xff]
      %v2775 = vld [vmem:[#allocation3 + $0x158] sm:$0xff]
      %v2776 = vld [vmem:[#allocation3 + $0x160] sm:$0xff]
      %v2777 = vld [vmem:[#allocation3 + $0x168] sm:$0xff]
      %v2778 = vld [vmem:[#allocation3 + $0x170] sm:$0xff]
      %v2779 = vld [vmem:[#allocation3 + $0x178] sm:$0xff]
      %v2780 = vld [vmem:[#allocation3 + $0x180] sm:$0xff]
      %v2781 = vld [vmem:[#allocation3 + $0x188] sm:$0xff]
      %v2782 = vld [vmem:[#allocation3 + $0x190] sm:$0xff]
      %v2783 = vld [vmem:[#allocation3 + $0x198] sm:$0xff]
      %v2784 = vld [vmem:[#allocation3 + $0x1a0] sm:$0xff]
      %v2785 = vld [vmem:[#allocation3 + $0x1a8] sm:$0xff]
      %v2786 = vld [vmem:[#allocation3 + $0x1b0] sm:$0xff]
      %v2787 = vld [vmem:[#allocation3 + $0x1b8] sm:$0xff]
      %v2788 = vld [vmem:[#allocation3 + $0x1c0] sm:$0xff]
      %v2789 = vld [vmem:[#allocation3 + $0x1c8] sm:$0xff]
      %v2790 = vld [vmem:[#allocation3 + $0x1d0] sm:$0xff]
      %v2791 = vld [vmem:[#allocation3 + $0x1d8] sm:$0xff]
      %v2792 = vld [vmem:[#allocation3 + $0x1e0] sm:$0xff]
      %v2793 = vld [vmem:[#allocation3 + $0x1e8] sm:$0xff]
      %v2794 = vld [vmem:[#allocation3 + $0x1f0] sm:$0xff]
      %v2795 = vld [vmem:[#allocation3 + $0x1f8] sm:$0xff]
      %v2796 = vld [vmem:[#allocation3 + $0x200] sm:$0xff]
      %v2797 = vld [vmem:[#allocation3 + $0x208] sm:$0xff]
      %v2798 = vld [vmem:[#allocation3 + $0x210] sm:$0xff]
      %v2799 = vld [vmem:[#allocation3 + $0x218] sm:$0xff]
      %v2800 = vld [vmem:[#allocation3 + $0x220] sm:$0xff]
      %v2801 = vld [vmem:[#allocation3 + $0x228] sm:$0xff]
      %v2802 = vld [vmem:[#allocation3 + $0x230] sm:$0xff]
      %v2803 = vld [vmem:[#allocation3 + $0x238] sm:$0xff]
      %v2852 = vrot.slane %v2732, 7
      %v2853 = vrot.slane %v2733, 7
      %v2854 = vsel %vm755, %v2852, %v2853
      %v2855 = vrot.slane %v2734, 7
      %v2856 = vsel %vm755, %v2853, %v2855
      %v2857 = vrot.slane %v2736, 7
      %v2858 = vrot.slane %v2737, 7
      %v2859 = vsel %vm755, %v2857, %v2858
      %v2860 = vrot.slane %v2738, 7
      %v2861 = vsel %vm755, %v2858, %v2860
      %v2862 = vrot.slane %v2740, 7
      %v2863 = vrot.slane %v2741, 7
      %v2864 = vsel %vm755, %v2862, %v2863
      %v2865 = vrot.slane %v2742, 7
      %v2866 = vsel %vm755, %v2863, %v2865
      %v2867 = vrot.slane %v2744, 7
      %v2868 = vrot.slane %v2745, 7
      %v2869 = vsel %vm755, %v2867, %v2868
      %v2870 = vrot.slane %v2746, 7
      %v2871 = vsel %vm755, %v2868, %v2870
      %v2872 = vrot.slane %v2748, 7
      %v2873 = vrot.slane %v2749, 7
      %v2874 = vsel %vm755, %v2872, %v2873
      %v2875 = vrot.slane %v2750, 7
      %v2876 = vsel %vm755, %v2873, %v2875
      %v2877 = vrot.slane %v2752, 7
      %v2878 = vrot.slane %v2753, 7
      %v2879 = vsel %vm755, %v2877, %v2878
      %v2880 = vrot.slane %v2754, 7
      %v2881 = vsel %vm755, %v2878, %v2880
      %v2882 = vrot.slane %v2756, 7
      %v2883 = vrot.slane %v2757, 7
      %v2884 = vsel %vm755, %v2882, %v2883
      %v2885 = vrot.slane %v2758, 7
      %v2886 = vsel %vm755, %v2883, %v2885
      %v2887 = vrot.slane %v2760, 7
      %v2888 = vrot.slane %v2761, 7
      %v2889 = vsel %vm755, %v2887, %v2888
      %v2890 = vrot.slane %v2762, 7
      %v2891 = vsel %vm755, %v2888, %v2890
      %v2892 = vrot.slane %v2764, 7
      %v2893 = vrot.slane %v2765, 7
      %v2894 = vsel %vm755, %v2892, %v2893
      %v2895 = vrot.slane %v2766, 7
      %v2896 = vsel %vm755, %v2893, %v2895
      %v2897 = vrot.slane %v2768, 7
      %v2898 = vrot.slane %v2769, 7
      %v2899 = vsel %vm755, %v2897, %v2898
      %v2900 = vrot.slane %v2770, 7
      %v2901 = vsel %vm755, %v2898, %v2900
      %v2902 = vrot.slane %v2772, 7
      %v2903 = vrot.slane %v2773, 7
      %v2904 = vsel %vm755, %v2902, %v2903
      %v2905 = vrot.slane %v2774, 7
      %v2906 = vsel %vm755, %v2903, %v2905
      %v2907 = vrot.slane %v2776, 7
      %v2908 = vrot.slane %v2777, 7
      %v2909 = vsel %vm755, %v2907, %v2908
      %v2910 = vrot.slane %v2778, 7
      %v2911 = vsel %vm755, %v2908, %v2910
      %v2912 = vrot.slane %v2780, 7
      %v2913 = vrot.slane %v2781, 7
      %v2914 = vsel %vm755, %v2912, %v2913
      %v2915 = vrot.slane %v2782, 7
      %v2916 = vsel %vm755, %v2913, %v2915
      %v2917 = vrot.slane %v2784, 7
      %v2918 = vrot.slane %v2785, 7
      %v2919 = vsel %vm755, %v2917, %v2918
      %v2920 = vrot.slane %v2786, 7
      %v2921 = vsel %vm755, %v2918, %v2920
      %v2922 = vrot.slane %v2788, 7
      %v2923 = vrot.slane %v2789, 7
      %v2924 = vsel %vm755, %v2922, %v2923
      %v2925 = vrot.slane %v2790, 7
      %v2926 = vsel %vm755, %v2923, %v2925
      %v2927 = vrot.slane %v2792, 7
      %v2928 = vrot.slane %v2793, 7
      %v2929 = vsel %vm755, %v2927, %v2928
      %v2930 = vrot.slane %v2794, 7
      %v2931 = vsel %vm755, %v2928, %v2930
      %v2932 = vld [vmem:[%s5] sm:$0xff]
      %s2933 = scalar_lea.vmem %s5, 8
      %v2934 = vld [vmem:[%s2933] sm:$0xff]
      %v2935 = vsel %vm2626, %v2733, 0
      %v2937 = vsel %vm2626, %v2734, 0
      %v2939 = vsel %vm2626, %v2737, 0
      %v2941 = vsel %vm2626, %v2738, 0
      %v2943 = vsel %vm2626, %v2741, 0
      %v2945 = vsel %vm2626, %v2742, 0
      %v2947 = vsel %vm2626, %v2745, 0
      %v2949 = vsel %vm2626, %v2746, 0
      %v2951 = vsel %vm2626, %v2749, 0
      %v2953 = vsel %vm2626, %v2750, 0
      %v2955 = vsel %vm2626, %v2753, 0
      %v2957 = vsel %vm2626, %v2754, 0
      %v2959 = vsel %vm2626, %v2757, 0
      %v2961 = vsel %vm2626, %v2758, 0
      %v2963 = vsel %vm2626, %v2761, 0
      %v2965 = vsel %vm2626, %v2762, 0
      %v2967 = vsel %vm2626, %v2765, 0
      %v2969 = vsel %vm2626, %v2766, 0
      %v2971 = vsel %vm2626, %v2769, 0
      %v2973 = vsel %vm2626, %v2770, 0
      %v2975 = vsel %vm2626, %v2773, 0
      %v2977 = vsel %vm2626, %v2774, 0
      %v2979 = vsel %vm2626, %v2777, 0
      %v2981 = vsel %vm2626, %v2778, 0
      %v2983 = vsel %vm2626, %v2781, 0
      %v2985 = vsel %vm2626, %v2782, 0
      %v2987 = vsel %vm2626, %v2785, 0
      %v2989 = vsel %vm2626, %v2786, 0
      %v2991 = vsel %vm2626, %v2789, 0
      %v2993 = vsel %vm2626, %v2790, 0
      %v2995 = vsel %vm2626, %v2793, 0
      %v2997 = vsel %vm2626, %v2794, 0
      %2999 = vmatpush.msra.mxu0 0.0
      %3000 = vmatpush.msra.mxu0 0.0
      %3001 = vmatpush.msra.mxu0 0.0
      %3002 = vmatpush.msra.mxu0 0.0
      %3003 = vmatpush.msra.mxu0 0.0
      %3004 = vmatpush.msra.mxu0 0.0
      %3005 = vmatpush.msra.mxu0 0.0
      %3006 = vmatpush.msra.mxu0 0.0
      %3007 = vmatpush.msra.mxu0 0.0
      %3008 = vmatpush.msra.mxu0 0.0
      %3009 = vmatpush.msra.mxu0 0.0
      %3010 = vmatpush.msra.mxu0 0.0
      %3011 = vmatpush.msra.mxu0 0.0
      %3012 = vmatpush.msra.mxu0 0.0
      %3013 = vmatpush.msra.mxu0 0.0
      %3014 = vmatpush.msra.mxu0 %v2934
      %3015 = vmatmul.f32.gmra.mxu0 %v2935
      %v3016 = vpop.f32.mrf.mxu0
      %v3017 = vadd.f32 0.0, %v3016
      %3018 = vmatmul.f32.gmra.mxu0 %v2937
      %v3019 = vpop.f32.mrf.mxu0
      %v3020 = vadd.f32 0.0, %v3019
      %3021 = vmatmul.f32.gmra.mxu0 %v2939
      %v3022 = vpop.f32.mrf.mxu0
      %v3023 = vadd.f32 0.0, %v3022
      %3024 = vmatmul.f32.gmra.mxu0 %v2941
      %v3025 = vpop.f32.mrf.mxu0
      %v3026 = vadd.f32 0.0, %v3025
      %3027 = vmatmul.f32.gmra.mxu0 %v2943
      %v3028 = vpop.f32.mrf.mxu0
      %v3029 = vadd.f32 0.0, %v3028
      %3030 = vmatmul.f32.gmra.mxu0 %v2945
      %v3031 = vpop.f32.mrf.mxu0
      %v3032 = vadd.f32 0.0, %v3031
      %3033 = vmatmul.f32.gmra.mxu0 %v2947
      %v3034 = vpop.f32.mrf.mxu0
      %v3035 = vadd.f32 0.0, %v3034
      %3036 = vmatmul.f32.gmra.mxu0 %v2949
      %v3037 = vpop.f32.mrf.mxu0
      %v3038 = vadd.f32 0.0, %v3037
      %3039 = vmatmul.f32.gmra.mxu0 %v2951
      %v3040 = vpop.f32.mrf.mxu0
      %v3041 = vadd.f32 0.0, %v3040
      %3042 = vmatmul.f32.gmra.mxu0 %v2953
      %v3043 = vpop.f32.mrf.mxu0
      %v3044 = vadd.f32 0.0, %v3043
      %3045 = vmatmul.f32.gmra.mxu0 %v2955
      %v3046 = vpop.f32.mrf.mxu0
      %v3047 = vadd.f32 0.0, %v3046
      %3048 = vmatmul.f32.gmra.mxu0 %v2957
      %v3049 = vpop.f32.mrf.mxu0
      %v3050 = vadd.f32 0.0, %v3049
      %3051 = vmatmul.f32.gmra.mxu0 %v2959
      %v3052 = vpop.f32.mrf.mxu0
      %v3053 = vadd.f32 0.0, %v3052
      %3054 = vmatmul.f32.gmra.mxu0 %v2961
      %v3055 = vpop.f32.mrf.mxu0
      %v3056 = vadd.f32 0.0, %v3055
      %3057 = vmatmul.f32.gmra.mxu0 %v2963
      %v3058 = vpop.f32.mrf.mxu0
      %v3059 = vadd.f32 0.0, %v3058
      %3060 = vmatmul.f32.gmra.mxu0 %v2965
      %v3061 = vpop.f32.mrf.mxu0
      %v3062 = vadd.f32 0.0, %v3061
      %3063 = vmatmul.f32.gmra.mxu0 %v2967
      %v3064 = vpop.f32.mrf.mxu0
      %v3065 = vadd.f32 0.0, %v3064
      %3066 = vmatmul.f32.gmra.mxu0 %v2969
      %v3067 = vpop.f32.mrf.mxu0
      %v3068 = vadd.f32 0.0, %v3067
      %3069 = vmatmul.f32.gmra.mxu0 %v2971
      %v3070 = vpop.f32.mrf.mxu0
      %v3071 = vadd.f32 0.0, %v3070
      %3072 = vmatmul.f32.gmra.mxu0 %v2973
      %v3073 = vpop.f32.mrf.mxu0
      %v3074 = vadd.f32 0.0, %v3073
      %3075 = vmatmul.f32.gmra.mxu0 %v2975
      %v3076 = vpop.f32.mrf.mxu0
      %v3077 = vadd.f32 0.0, %v3076
      %3078 = vmatmul.f32.gmra.mxu0 %v2977
      %v3079 = vpop.f32.mrf.mxu0
      %v3080 = vadd.f32 0.0, %v3079
      %3081 = vmatmul.f32.gmra.mxu0 %v2979
      %v3082 = vpop.f32.mrf.mxu0
      %v3083 = vadd.f32 0.0, %v3082
      %3084 = vmatmul.f32.gmra.mxu0 %v2981
      %v3085 = vpop.f32.mrf.mxu0
      %v3086 = vadd.f32 0.0, %v3085
      %3087 = vmatmul.f32.gmra.mxu0 %v2983
      %v3088 = vpop.f32.mrf.mxu0
      %v3089 = vadd.f32 0.0, %v3088
      %3090 = vmatmul.f32.gmra.mxu0 %v2985
      %v3091 = vpop.f32.mrf.mxu0
      %v3092 = vadd.f32 0.0, %v3091
      %3093 = vmatmul.f32.gmra.mxu0 %v2987
      %v3094 = vpop.f32.mrf.mxu0
      %v3095 = vadd.f32 0.0, %v3094
      %3096 = vmatmul.f32.gmra.mxu0 %v2989
      %v3097 = vpop.f32.mrf.mxu0
      %v3098 = vadd.f32 0.0, %v3097
      %3099 = vmatmul.f32.gmra.mxu0 %v2991
      %v3100 = vpop.f32.mrf.mxu0
      %v3101 = vadd.f32 0.0, %v3100
      %3102 = vmatmul.f32.gmra.mxu0 %v2993
      %v3103 = vpop.f32.mrf.mxu0
      %v3104 = vadd.f32 0.0, %v3103
      %3105 = vmatmul.f32.gmra.mxu0 %v2995
      %v3106 = vpop.f32.mrf.mxu0
      %v3107 = vadd.f32 0.0, %v3106
      %3108 = vmatmul.f32.gmra.mxu0 %v2997
      %v3109 = vpop.f32.mrf.mxu0
      %v3110 = vadd.f32 0.0, %v3109
      %3111 = vdwg.mxu0
      %v3112 = vsel %vm2626, %v2854, 0
      %v3114 = vsel %vm2626, %v2856, 0
      %v3116 = vsel %vm2626, %v2859, 0
      %v3118 = vsel %vm2626, %v2861, 0
      %v3120 = vsel %vm2626, %v2864, 0
      %v3122 = vsel %vm2626, %v2866, 0
      %v3124 = vsel %vm2626, %v2869, 0
      %v3126 = vsel %vm2626, %v2871, 0
      %v3128 = vsel %vm2626, %v2874, 0
      %v3130 = vsel %vm2626, %v2876, 0
      %v3132 = vsel %vm2626, %v2879, 0
      %v3134 = vsel %vm2626, %v2881, 0
      %v3136 = vsel %vm2626, %v2884, 0
      %v3138 = vsel %vm2626, %v2886, 0
      %v3140 = vsel %vm2626, %v2889, 0
      %v3142 = vsel %vm2626, %v2891, 0
      %v3144 = vsel %vm2626, %v2894, 0
      %v3146 = vsel %vm2626, %v2896, 0
      %v3148 = vsel %vm2626, %v2899, 0
      %v3150 = vsel %vm2626, %v2901, 0
      %v3152 = vsel %vm2626, %v2904, 0
      %v3154 = vsel %vm2626, %v2906, 0
      %v3156 = vsel %vm2626, %v2909, 0
      %v3158 = vsel %vm2626, %v2911, 0
      %v3160 = vsel %vm2626, %v2914, 0
      %v3162 = vsel %vm2626, %v2916, 0
      %v3164 = vsel %vm2626, %v2919, 0
      %v3166 = vsel %vm2626, %v2921, 0
      %v3168 = vsel %vm2626, %v2924, 0
      %v3170 = vsel %vm2626, %v2926, 0
      %v3172 = vsel %vm2626, %v2929, 0
      %v3174 = vsel %vm2626, %v2931, 0
      %3176 = vmatpush.msra.mxu0 0.0
      %3177 = vmatpush.msra.mxu0 0.0
      %3178 = vmatpush.msra.mxu0 0.0
      %3179 = vmatpush.msra.mxu0 0.0
      %3180 = vmatpush.msra.mxu0 0.0
      %3181 = vmatpush.msra.mxu0 0.0
      %3182 = vmatpush.msra.mxu0 0.0
      %3183 = vmatpush.msra.mxu0 0.0
      %3184 = vmatpush.msra.mxu0 0.0
      %3185 = vmatpush.msra.mxu0 0.0
      %3186 = vmatpush.msra.mxu0 0.0
      %3187 = vmatpush.msra.mxu0 0.0
      %3188 = vmatpush.msra.mxu0 0.0
      %3189 = vmatpush.msra.mxu0 0.0
      %3190 = vmatpush.msra.mxu0 0.0
      %3191 = vmatpush.msra.mxu0 %v2932
      %3192 = vmatmul.f32.gmra.mxu0 %v3112
      %v3193 = vpop.f32.mrf.mxu0
      %v3194 = vadd.f32 %v3017, %v3193
      %3195 = vmatmul.f32.gmra.mxu0 %v3114
      %v3196 = vpop.f32.mrf.mxu0
      %v3197 = vadd.f32 %v3020, %v3196
      %3198 = vmatmul.f32.gmra.mxu0 %v3116
      %v3199 = vpop.f32.mrf.mxu0
      %v3200 = vadd.f32 %v3023, %v3199
      %3201 = vmatmul.f32.gmra.mxu0 %v3118
      %v3202 = vpop.f32.mrf.mxu0
      %v3203 = vadd.f32 %v3026, %v3202
      %3204 = vmatmul.f32.gmra.mxu0 %v3120
      %v3205 = vpop.f32.mrf.mxu0
      %v3206 = vadd.f32 %v3029, %v3205
      %3207 = vmatmul.f32.gmra.mxu0 %v3122
      %v3208 = vpop.f32.mrf.mxu0
      %v3209 = vadd.f32 %v3032, %v3208
      %3210 = vmatmul.f32.gmra.mxu0 %v3124
      %v3211 = vpop.f32.mrf.mxu0
      %v3212 = vadd.f32 %v3035, %v3211
      %3213 = vmatmul.f32.gmra.mxu0 %v3126
      %v3214 = vpop.f32.mrf.mxu0
      %v3215 = vadd.f32 %v3038, %v3214
      %3216 = vmatmul.f32.gmra.mxu0 %v3128
      %v3217 = vpop.f32.mrf.mxu0
      %v3218 = vadd.f32 %v3041, %v3217
      %3219 = vmatmul.f32.gmra.mxu0 %v3130
      %v3220 = vpop.f32.mrf.mxu0
      %v3221 = vadd.f32 %v3044, %v3220
      %3222 = vmatmul.f32.gmra.mxu0 %v3132
      %v3223 = vpop.f32.mrf.mxu0
      %v3224 = vadd.f32 %v3047, %v3223
      %3225 = vmatmul.f32.gmra.mxu0 %v3134
      %v3226 = vpop.f32.mrf.mxu0
      %v3227 = vadd.f32 %v3050, %v3226
      %3228 = vmatmul.f32.gmra.mxu0 %v3136
      %v3229 = vpop.f32.mrf.mxu0
      %v3230 = vadd.f32 %v3053, %v3229
      %3231 = vmatmul.f32.gmra.mxu0 %v3138
      %v3232 = vpop.f32.mrf.mxu0
      %v3233 = vadd.f32 %v3056, %v3232
      %3234 = vmatmul.f32.gmra.mxu0 %v3140
      %v3235 = vpop.f32.mrf.mxu0
      %v3236 = vadd.f32 %v3059, %v3235
      %3237 = vmatmul.f32.gmra.mxu0 %v3142
      %v3238 = vpop.f32.mrf.mxu0
      %v3239 = vadd.f32 %v3062, %v3238
      %3240 = vmatmul.f32.gmra.mxu0 %v3144
      %v3241 = vpop.f32.mrf.mxu0
      %v3242 = vadd.f32 %v3065, %v3241
      %3243 = vmatmul.f32.gmra.mxu0 %v3146
      %v3244 = vpop.f32.mrf.mxu0
      %v3245 = vadd.f32 %v3068, %v3244
      %3246 = vmatmul.f32.gmra.mxu0 %v3148
      %v3247 = vpop.f32.mrf.mxu0
      %v3248 = vadd.f32 %v3071, %v3247
      %3249 = vmatmul.f32.gmra.mxu0 %v3150
      %v3250 = vpop.f32.mrf.mxu0
      %v3251 = vadd.f32 %v3074, %v3250
      %3252 = vmatmul.f32.gmra.mxu0 %v3152
      %v3253 = vpop.f32.mrf.mxu0
      %v3254 = vadd.f32 %v3077, %v3253
      %3255 = vmatmul.f32.gmra.mxu0 %v3154
      %v3256 = vpop.f32.mrf.mxu0
      %v3257 = vadd.f32 %v3080, %v3256
      %3258 = vmatmul.f32.gmra.mxu0 %v3156
      %v3259 = vpop.f32.mrf.mxu0
      %v3260 = vadd.f32 %v3083, %v3259
      %3261 = vmatmul.f32.gmra.mxu0 %v3158
      %v3262 = vpop.f32.mrf.mxu0
      %v3263 = vadd.f32 %v3086, %v3262
      %3264 = vmatmul.f32.gmra.mxu0 %v3160
      %v3265 = vpop.f32.mrf.mxu0
      %v3266 = vadd.f32 %v3089, %v3265
      %3267 = vmatmul.f32.gmra.mxu0 %v3162
      %v3268 = vpop.f32.mrf.mxu0
      %v3269 = vadd.f32 %v3092, %v3268
      %3270 = vmatmul.f32.gmra.mxu0 %v3164
      %v3271 = vpop.f32.mrf.mxu0
      %v3272 = vadd.f32 %v3095, %v3271
      %3273 = vmatmul.f32.gmra.mxu0 %v3166
      %v3274 = vpop.f32.mrf.mxu0
      %v3275 = vadd.f32 %v3098, %v3274
      %3276 = vmatmul.f32.gmra.mxu0 %v3168
      %v3277 = vpop.f32.mrf.mxu0
      %v3278 = vadd.f32 %v3101, %v3277
      %3279 = vmatmul.f32.gmra.mxu0 %v3170
      %v3280 = vpop.f32.mrf.mxu0
      %v3281 = vadd.f32 %v3104, %v3280
      %3282 = vmatmul.f32.gmra.mxu0 %v3172
      %v3283 = vpop.f32.mrf.mxu0
      %v3284 = vadd.f32 %v3107, %v3283
      %3285 = vmatmul.f32.gmra.mxu0 %v3174
      %v3286 = vpop.f32.mrf.mxu0
      %v3287 = vadd.f32 %v3110, %v3286
      %3288 = vdwg.mxu0
      %v3305 = vrot.slane %v2733, 1
      %v3306 = vrot.slane %v2734, 1
      %v3307 = vsel %vm1215, %v3305, %v3306
      %v3308 = vrot.slane %v2735, 1
      %v3309 = vsel %vm1215, %v3306, %v3308
      %v3310 = vrot.slane %v2737, 1
      %v3311 = vrot.slane %v2738, 1
      %v3312 = vsel %vm1215, %v3310, %v3311
      %v3313 = vrot.slane %v2739, 1
      %v3314 = vsel %vm1215, %v3311, %v3313
      %v3315 = vrot.slane %v2741, 1
      %v3316 = vrot.slane %v2742, 1
      %v3317 = vsel %vm1215, %v3315, %v3316
      %v3318 = vrot.slane %v2743, 1
      %v3319 = vsel %vm1215, %v3316, %v3318
      %v3320 = vrot.slane %v2745, 1
      %v3321 = vrot.slane %v2746, 1
      %v3322 = vsel %vm1215, %v3320, %v3321
      %v3323 = vrot.slane %v2747, 1
      %v3324 = vsel %vm1215, %v3321, %v3323
      %v3325 = vrot.slane %v2749, 1
      %v3326 = vrot.slane %v2750, 1
      %v3327 = vsel %vm1215, %v3325, %v3326
      %v3328 = vrot.slane %v2751, 1
      %v3329 = vsel %vm1215, %v3326, %v3328
      %v3330 = vrot.slane %v2753, 1
      %v3331 = vrot.slane %v2754, 1
      %v3332 = vsel %vm1215, %v3330, %v3331
      %v3333 = vrot.slane %v2755, 1
      %v3334 = vsel %vm1215, %v3331, %v3333
      %v3335 = vrot.slane %v2757, 1
      %v3336 = vrot.slane %v2758, 1
      %v3337 = vsel %vm1215, %v3335, %v3336
      %v3338 = vrot.slane %v2759, 1
      %v3339 = vsel %vm1215, %v3336, %v3338
      %v3340 = vrot.slane %v2761, 1
      %v3341 = vrot.slane %v2762, 1
      %v3342 = vsel %vm1215, %v3340, %v3341
      %v3343 = vrot.slane %v2763, 1
      %v3344 = vsel %vm1215, %v3341, %v3343
      %v3345 = vrot.slane %v2765, 1
      %v3346 = vrot.slane %v2766, 1
      %v3347 = vsel %vm1215, %v3345, %v3346
      %v3348 = vrot.slane %v2767, 1
      %v3349 = vsel %vm1215, %v3346, %v3348
      %v3350 = vrot.slane %v2769, 1
      %v3351 = vrot.slane %v2770, 1
      %v3352 = vsel %vm1215, %v3350, %v3351
      %v3353 = vrot.slane %v2771, 1
      %v3354 = vsel %vm1215, %v3351, %v3353
      %v3355 = vrot.slane %v2773, 1
      %v3356 = vrot.slane %v2774, 1
      %v3357 = vsel %vm1215, %v3355, %v3356
      %v3358 = vrot.slane %v2775, 1
      %v3359 = vsel %vm1215, %v3356, %v3358
      %v3360 = vrot.slane %v2777, 1
      %v3361 = vrot.slane %v2778, 1
      %v3362 = vsel %vm1215, %v3360, %v3361
      %v3363 = vrot.slane %v2779, 1
      %v3364 = vsel %vm1215, %v3361, %v3363
      %v3365 = vrot.slane %v2781, 1
      %v3366 = vrot.slane %v2782, 1
      %v3367 = vsel %vm1215, %v3365, %v3366
      %v3368 = vrot.slane %v2783, 1
      %v3369 = vsel %vm1215, %v3366, %v3368
      %v3370 = vrot.slane %v2785, 1
      %v3371 = vrot.slane %v2786, 1
      %v3372 = vsel %vm1215, %v3370, %v3371
      %v3373 = vrot.slane %v2787, 1
      %v3374 = vsel %vm1215, %v3371, %v3373
      %v3375 = vrot.slane %v2789, 1
      %v3376 = vrot.slane %v2790, 1
      %v3377 = vsel %vm1215, %v3375, %v3376
      %v3378 = vrot.slane %v2791, 1
      %v3379 = vsel %vm1215, %v3376, %v3378
      %v3380 = vrot.slane %v2793, 1
      %v3381 = vrot.slane %v2794, 1
      %v3382 = vsel %vm1215, %v3380, %v3381
      %v3383 = vrot.slane %v2795, 1
      %v3384 = vsel %vm1215, %v3381, %v3383
      %s3385 = scalar_lea.vmem %s5, 16
      %v3386 = vld [vmem:[%s3385] sm:$0xff]
      %v3387 = vsel %vm2626, %v3307, 0
      %v3389 = vsel %vm2626, %v3309, 0
      %v3391 = vsel %vm2626, %v3312, 0
      %v3393 = vsel %vm2626, %v3314, 0
      %v3395 = vsel %vm2626, %v3317, 0
      %v3397 = vsel %vm2626, %v3319, 0
      %v3399 = vsel %vm2626, %v3322, 0
      %v3401 = vsel %vm2626, %v3324, 0
      %v3403 = vsel %vm2626, %v3327, 0
      %v3405 = vsel %vm2626, %v3329, 0
      %v3407 = vsel %vm2626, %v3332, 0
      %v3409 = vsel %vm2626, %v3334, 0
      %v3411 = vsel %vm2626, %v3337, 0
      %v3413 = vsel %vm2626, %v3339, 0
      %v3415 = vsel %vm2626, %v3342, 0
      %v3417 = vsel %vm2626, %v3344, 0
      %v3419 = vsel %vm2626, %v3347, 0
      %v3421 = vsel %vm2626, %v3349, 0
      %v3423 = vsel %vm2626, %v3352, 0
      %v3425 = vsel %vm2626, %v3354, 0
      %v3427 = vsel %vm2626, %v3357, 0
      %v3429 = vsel %vm2626, %v3359, 0
      %v3431 = vsel %vm2626, %v3362, 0
      %v3433 = vsel %vm2626, %v3364, 0
      %v3435 = vsel %vm2626, %v3367, 0
      %v3437 = vsel %vm2626, %v3369, 0
      %v3439 = vsel %vm2626, %v3372, 0
      %v3441 = vsel %vm2626, %v3374, 0
      %v3443 = vsel %vm2626, %v3377, 0
      %v3445 = vsel %vm2626, %v3379, 0
      %v3447 = vsel %vm2626, %v3382, 0
      %v3449 = vsel %vm2626, %v3384, 0
      %3451 = vmatpush.msra.mxu0 0.0
      %3452 = vmatpush.msra.mxu0 0.0
      %3453 = vmatpush.msra.mxu0 0.0
      %3454 = vmatpush.msra.mxu0 0.0
      %3455 = vmatpush.msra.mxu0 0.0
      %3456 = vmatpush.msra.mxu0 0.0
      %3457 = vmatpush.msra.mxu0 0.0
      %3458 = vmatpush.msra.mxu0 0.0
      %3459 = vmatpush.msra.mxu0 0.0
      %3460 = vmatpush.msra.mxu0 0.0
      %3461 = vmatpush.msra.mxu0 0.0
      %3462 = vmatpush.msra.mxu0 0.0
      %3463 = vmatpush.msra.mxu0 0.0
      %3464 = vmatpush.msra.mxu0 0.0
      %3465 = vmatpush.msra.mxu0 0.0
      %3466 = vmatpush.msra.mxu0 %v3386
      %3467 = vmatmul.f32.gmra.mxu0 %v3387
      %v3468 = vpop.f32.mrf.mxu0
      %v3469 = vadd.f32 0.0, %v3468
      %3470 = vmatmul.f32.gmra.mxu0 %v3389
      %v3471 = vpop.f32.mrf.mxu0
      %v3472 = vadd.f32 0.0, %v3471
      %3473 = vmatmul.f32.gmra.mxu0 %v3391
      %v3474 = vpop.f32.mrf.mxu0
      %v3475 = vadd.f32 0.0, %v3474
      %3476 = vmatmul.f32.gmra.mxu0 %v3393
      %v3477 = vpop.f32.mrf.mxu0
      %v3478 = vadd.f32 0.0, %v3477
      %3479 = vmatmul.f32.gmra.mxu0 %v3395
      %v3480 = vpop.f32.mrf.mxu0
      %v3481 = vadd.f32 0.0, %v3480
      %3482 = vmatmul.f32.gmra.mxu0 %v3397
      %v3483 = vpop.f32.mrf.mxu0
      %v3484 = vadd.f32 0.0, %v3483
      %3485 = vmatmul.f32.gmra.mxu0 %v3399
      %v3486 = vpop.f32.mrf.mxu0
      %v3487 = vadd.f32 0.0, %v3486
      %3488 = vmatmul.f32.gmra.mxu0 %v3401
      %v3489 = vpop.f32.mrf.mxu0
      %v3490 = vadd.f32 0.0, %v3489
      %3491 = vmatmul.f32.gmra.mxu0 %v3403
      %v3492 = vpop.f32.mrf.mxu0
      %v3493 = vadd.f32 0.0, %v3492
      %3494 = vmatmul.f32.gmra.mxu0 %v3405
      %v3495 = vpop.f32.mrf.mxu0
      %v3496 = vadd.f32 0.0, %v3495
      %3497 = vmatmul.f32.gmra.mxu0 %v3407
      %v3498 = vpop.f32.mrf.mxu0
      %v3499 = vadd.f32 0.0, %v3498
      %3500 = vmatmul.f32.gmra.mxu0 %v3409
      %v3501 = vpop.f32.mrf.mxu0
      %v3502 = vadd.f32 0.0, %v3501
      %3503 = vmatmul.f32.gmra.mxu0 %v3411
      %v3504 = vpop.f32.mrf.mxu0
      %v3505 = vadd.f32 0.0, %v3504
      %3506 = vmatmul.f32.gmra.mxu0 %v3413
      %v3507 = vpop.f32.mrf.mxu0
      %v3508 = vadd.f32 0.0, %v3507
      %3509 = vmatmul.f32.gmra.mxu0 %v3415
      %v3510 = vpop.f32.mrf.mxu0
      %v3511 = vadd.f32 0.0, %v3510
      %3512 = vmatmul.f32.gmra.mxu0 %v3417
      %v3513 = vpop.f32.mrf.mxu0
      %v3514 = vadd.f32 0.0, %v3513
      %3515 = vmatmul.f32.gmra.mxu0 %v3419
      %v3516 = vpop.f32.mrf.mxu0
      %v3517 = vadd.f32 0.0, %v3516
      %3518 = vmatmul.f32.gmra.mxu0 %v3421
      %v3519 = vpop.f32.mrf.mxu0
      %v3520 = vadd.f32 0.0, %v3519
      %3521 = vmatmul.f32.gmra.mxu0 %v3423
      %v3522 = vpop.f32.mrf.mxu0
      %v3523 = vadd.f32 0.0, %v3522
      %3524 = vmatmul.f32.gmra.mxu0 %v3425
      %v3525 = vpop.f32.mrf.mxu0
      %v3526 = vadd.f32 0.0, %v3525
      %3527 = vmatmul.f32.gmra.mxu0 %v3427
      %v3528 = vpop.f32.mrf.mxu0
      %v3529 = vadd.f32 0.0, %v3528
      %3530 = vmatmul.f32.gmra.mxu0 %v3429
      %v3531 = vpop.f32.mrf.mxu0
      %v3532 = vadd.f32 0.0, %v3531
      %3533 = vmatmul.f32.gmra.mxu0 %v3431
      %v3534 = vpop.f32.mrf.mxu0
      %v3535 = vadd.f32 0.0, %v3534
      %3536 = vmatmul.f32.gmra.mxu0 %v3433
      %v3537 = vpop.f32.mrf.mxu0
      %v3538 = vadd.f32 0.0, %v3537
      %3539 = vmatmul.f32.gmra.mxu0 %v3435
      %v3540 = vpop.f32.mrf.mxu0
      %v3541 = vadd.f32 0.0, %v3540
      %3542 = vmatmul.f32.gmra.mxu0 %v3437
      %v3543 = vpop.f32.mrf.mxu0
      %v3544 = vadd.f32 0.0, %v3543
      %3545 = vmatmul.f32.gmra.mxu0 %v3439
      %v3546 = vpop.f32.mrf.mxu0
      %v3547 = vadd.f32 0.0, %v3546
      %3548 = vmatmul.f32.gmra.mxu0 %v3441
      %v3549 = vpop.f32.mrf.mxu0
      %v3550 = vadd.f32 0.0, %v3549
      %3551 = vmatmul.f32.gmra.mxu0 %v3443
      %v3552 = vpop.f32.mrf.mxu0
      %v3553 = vadd.f32 0.0, %v3552
      %3554 = vmatmul.f32.gmra.mxu0 %v3445
      %v3555 = vpop.f32.mrf.mxu0
      %v3556 = vadd.f32 0.0, %v3555
      %3557 = vmatmul.f32.gmra.mxu0 %v3447
      %v3558 = vpop.f32.mrf.mxu0
      %v3559 = vadd.f32 0.0, %v3558
      %3560 = vmatmul.f32.gmra.mxu0 %v3449
      %v3561 = vpop.f32.mrf.mxu0
      %v3562 = vadd.f32 0.0, %v3561
      %3563 = vdwg.mxu0
      %v3564 = vadd.f32 %v3194, %v3469
      %v3565 = vadd.f32 %v3197, %v3472
      %v3566 = vadd.f32 %v3200, %v3475
      %v3567 = vadd.f32 %v3203, %v3478
      %v3568 = vadd.f32 %v3206, %v3481
      %v3569 = vadd.f32 %v3209, %v3484
      %v3570 = vadd.f32 %v3212, %v3487
      %v3571 = vadd.f32 %v3215, %v3490
      %v3572 = vadd.f32 %v3218, %v3493
      %v3573 = vadd.f32 %v3221, %v3496
      %v3574 = vadd.f32 %v3224, %v3499
      %v3575 = vadd.f32 %v3227, %v3502
      %v3576 = vadd.f32 %v3230, %v3505
      %v3577 = vadd.f32 %v3233, %v3508
      %v3578 = vadd.f32 %v3236, %v3511
      %v3579 = vadd.f32 %v3239, %v3514
      %v3580 = vadd.f32 %v3242, %v3517
      %v3581 = vadd.f32 %v3245, %v3520
      %v3582 = vadd.f32 %v3248, %v3523
      %v3583 = vadd.f32 %v3251, %v3526
      %v3584 = vadd.f32 %v3254, %v3529
      %v3585 = vadd.f32 %v3257, %v3532
      %v3586 = vadd.f32 %v3260, %v3535
      %v3587 = vadd.f32 %v3263, %v3538
      %v3588 = vadd.f32 %v3266, %v3541
      %v3589 = vadd.f32 %v3269, %v3544
      %v3590 = vadd.f32 %v3272, %v3547
      %v3591 = vadd.f32 %v3275, %v3550
      %v3592 = vadd.f32 %v3278, %v3553
      %v3593 = vadd.f32 %v3281, %v3556
      %v3594 = vadd.f32 %v3284, %v3559
      %v3595 = vadd.f32 %v3287, %v3562
      %v3599 = vrot.slane %v2796, 7
      %v3600 = vrot.slane %v2797, 7
      %v3601 = vsel %vm755, %v3599, %v3600
      %v3602 = vrot.slane %v2798, 7
      %v3603 = vsel %vm755, %v3600, %v3602
      %s3604 = scalar_lea.vmem %s5, 24
      %v3605 = vld [vmem:[%s3604] sm:$0xff]
      %v3606 = vsel %vm2626, %v3601, 0
      %v3608 = vsel %vm2626, %v3603, 0
      %3610 = vmatpush.msra.mxu0 0.0
      %3611 = vmatpush.msra.mxu0 0.0
      %3612 = vmatpush.msra.mxu0 0.0
      %3613 = vmatpush.msra.mxu0 0.0
      %3614 = vmatpush.msra.mxu0 0.0
      %3615 = vmatpush.msra.mxu0 0.0
      %3616 = vmatpush.msra.mxu0 0.0
      %3617 = vmatpush.msra.mxu0 0.0
      %3618 = vmatpush.msra.mxu0 0.0
      %3619 = vmatpush.msra.mxu0 0.0
      %3620 = vmatpush.msra.mxu0 0.0
      %3621 = vmatpush.msra.mxu0 0.0
      %3622 = vmatpush.msra.mxu0 0.0
      %3623 = vmatpush.msra.mxu0 0.0
      %3624 = vmatpush.msra.mxu0 0.0
      %3625 = vmatpush.msra.mxu0 %v3605
      %3626 = vmatmul.f32.gmra.mxu0 %v3116
      %v3627 = vpop.f32.mrf.mxu0
      %v3628 = vadd.f32 0.0, %v3627
      %3629 = vmatmul.f32.gmra.mxu0 %v3118
      %v3630 = vpop.f32.mrf.mxu0
      %v3631 = vadd.f32 0.0, %v3630
      %3632 = vmatmul.f32.gmra.mxu0 %v3120
      %v3633 = vpop.f32.mrf.mxu0
      %v3634 = vadd.f32 0.0, %v3633
      %3635 = vmatmul.f32.gmra.mxu0 %v3122
      %v3636 = vpop.f32.mrf.mxu0
      %v3637 = vadd.f32 0.0, %v3636
      %3638 = vmatmul.f32.gmra.mxu0 %v3124
      %v3639 = vpop.f32.mrf.mxu0
      %v3640 = vadd.f32 0.0, %v3639
      %3641 = vmatmul.f32.gmra.mxu0 %v3126
      %v3642 = vpop.f32.mrf.mxu0
      %v3643 = vadd.f32 0.0, %v3642
      %3644 = vmatmul.f32.gmra.mxu0 %v3128
      %v3645 = vpop.f32.mrf.mxu0
      %v3646 = vadd.f32 0.0, %v3645
      %3647 = vmatmul.f32.gmra.mxu0 %v3130
      %v3648 = vpop.f32.mrf.mxu0
      %v3649 = vadd.f32 0.0, %v3648
      %3650 = vmatmul.f32.gmra.mxu0 %v3132
      %v3651 = vpop.f32.mrf.mxu0
      %v3652 = vadd.f32 0.0, %v3651
      %3653 = vmatmul.f32.gmra.mxu0 %v3134
      %v3654 = vpop.f32.mrf.mxu0
      %v3655 = vadd.f32 0.0, %v3654
      %3656 = vmatmul.f32.gmra.mxu0 %v3136
      %v3657 = vpop.f32.mrf.mxu0
      %v3658 = vadd.f32 0.0, %v3657
      %3659 = vmatmul.f32.gmra.mxu0 %v3138
      %v3660 = vpop.f32.mrf.mxu0
      %v3661 = vadd.f32 0.0, %v3660
      %3662 = vmatmul.f32.gmra.mxu0 %v3140
      %v3663 = vpop.f32.mrf.mxu0
      %v3664 = vadd.f32 0.0, %v3663
      %3665 = vmatmul.f32.gmra.mxu0 %v3142
      %v3666 = vpop.f32.mrf.mxu0
      %v3667 = vadd.f32 0.0, %v3666
      %3668 = vmatmul.f32.gmra.mxu0 %v3144
      %v3669 = vpop.f32.mrf.mxu0
      %v3670 = vadd.f32 0.0, %v3669
      %3671 = vmatmul.f32.gmra.mxu0 %v3146
      %v3672 = vpop.f32.mrf.mxu0
      %v3673 = vadd.f32 0.0, %v3672
      %3674 = vmatmul.f32.gmra.mxu0 %v3148
      %v3675 = vpop.f32.mrf.mxu0
      %v3676 = vadd.f32 0.0, %v3675
      %3677 = vmatmul.f32.gmra.mxu0 %v3150
      %v3678 = vpop.f32.mrf.mxu0
      %v3679 = vadd.f32 0.0, %v3678
      %3680 = vmatmul.f32.gmra.mxu0 %v3152
      %v3681 = vpop.f32.mrf.mxu0
      %v3682 = vadd.f32 0.0, %v3681
      %3683 = vmatmul.f32.gmra.mxu0 %v3154
      %v3684 = vpop.f32.mrf.mxu0
      %v3685 = vadd.f32 0.0, %v3684
      %3686 = vmatmul.f32.gmra.mxu0 %v3156
      %v3687 = vpop.f32.mrf.mxu0
      %v3688 = vadd.f32 0.0, %v3687
      %3689 = vmatmul.f32.gmra.mxu0 %v3158
      %v3690 = vpop.f32.mrf.mxu0
      %v3691 = vadd.f32 0.0, %v3690
      %3692 = vmatmul.f32.gmra.mxu0 %v3160
      %v3693 = vpop.f32.mrf.mxu0
      %v3694 = vadd.f32 0.0, %v3693
      %3695 = vmatmul.f32.gmra.mxu0 %v3162
      %v3696 = vpop.f32.mrf.mxu0
      %v3697 = vadd.f32 0.0, %v3696
      %3698 = vmatmul.f32.gmra.mxu0 %v3164
      %v3699 = vpop.f32.mrf.mxu0
      %v3700 = vadd.f32 0.0, %v3699
      %3701 = vmatmul.f32.gmra.mxu0 %v3166
      %v3702 = vpop.f32.mrf.mxu0
      %v3703 = vadd.f32 0.0, %v3702
      %3704 = vmatmul.f32.gmra.mxu0 %v3168
      %v3705 = vpop.f32.mrf.mxu0
      %v3706 = vadd.f32 0.0, %v3705
      %3707 = vmatmul.f32.gmra.mxu0 %v3170
      %v3708 = vpop.f32.mrf.mxu0
      %v3709 = vadd.f32 0.0, %v3708
      %3710 = vmatmul.f32.gmra.mxu0 %v3172
      %v3711 = vpop.f32.mrf.mxu0
      %v3712 = vadd.f32 0.0, %v3711
      %3713 = vmatmul.f32.gmra.mxu0 %v3174
      %v3714 = vpop.f32.mrf.mxu0
      %v3715 = vadd.f32 0.0, %v3714
      %3716 = vmatmul.f32.gmra.mxu0 %v3606
      %v3717 = vpop.f32.mrf.mxu0
      %v3718 = vadd.f32 0.0, %v3717
      %3719 = vmatmul.f32.gmra.mxu0 %v3608
      %v3720 = vpop.f32.mrf.mxu0
      %v3721 = vadd.f32 0.0, %v3720
      %3722 = vdwg.mxu0
      %v3723 = vadd.f32 %v3564, %v3628
      %v3724 = vadd.f32 %v3565, %v3631
      %v3725 = vadd.f32 %v3566, %v3634
      %v3726 = vadd.f32 %v3567, %v3637
      %v3727 = vadd.f32 %v3568, %v3640
      %v3728 = vadd.f32 %v3569, %v3643
      %v3729 = vadd.f32 %v3570, %v3646
      %v3730 = vadd.f32 %v3571, %v3649
      %v3731 = vadd.f32 %v3572, %v3652
      %v3732 = vadd.f32 %v3573, %v3655
      %v3733 = vadd.f32 %v3574, %v3658
      %v3734 = vadd.f32 %v3575, %v3661
      %v3735 = vadd.f32 %v3576, %v3664
      %v3736 = vadd.f32 %v3577, %v3667
      %v3737 = vadd.f32 %v3578, %v3670
      %v3738 = vadd.f32 %v3579, %v3673
      %v3739 = vadd.f32 %v3580, %v3676
      %v3740 = vadd.f32 %v3581, %v3679
      %v3741 = vadd.f32 %v3582, %v3682
      %v3742 = vadd.f32 %v3583, %v3685
      %v3743 = vadd.f32 %v3584, %v3688
      %v3744 = vadd.f32 %v3585, %v3691
      %v3745 = vadd.f32 %v3586, %v3694
      %v3746 = vadd.f32 %v3587, %v3697
      %v3747 = vadd.f32 %v3588, %v3700
      %v3748 = vadd.f32 %v3589, %v3703
      %v3749 = vadd.f32 %v3590, %v3706
      %v3750 = vadd.f32 %v3591, %v3709
      %v3751 = vadd.f32 %v3592, %v3712
      %v3752 = vadd.f32 %v3593, %v3715
      %v3753 = vadd.f32 %v3594, %v3718
      %v3754 = vadd.f32 %v3595, %v3721
      %s3755 = scalar_lea.vmem %s5, 32
      %v3756 = vld [vmem:[%s3755] sm:$0xff]
      %v3757 = vsel %vm2626, %v2797, 0
      %v3759 = vsel %vm2626, %v2798, 0
      %3761 = vmatpush.msra.mxu0 0.0
      %3762 = vmatpush.msra.mxu0 0.0
      %3763 = vmatpush.msra.mxu0 0.0
      %3764 = vmatpush.msra.mxu0 0.0
      %3765 = vmatpush.msra.mxu0 0.0
      %3766 = vmatpush.msra.mxu0 0.0
      %3767 = vmatpush.msra.mxu0 0.0
      %3768 = vmatpush.msra.mxu0 0.0
      %3769 = vmatpush.msra.mxu0 0.0
      %3770 = vmatpush.msra.mxu0 0.0
      %3771 = vmatpush.msra.mxu0 0.0
      %3772 = vmatpush.msra.mxu0 0.0
      %3773 = vmatpush.msra.mxu0 0.0
      %3774 = vmatpush.msra.mxu0 0.0
      %3775 = vmatpush.msra.mxu0 0.0
      %3776 = vmatpush.msra.mxu0 %v3756
      %3777 = vmatmul.f32.gmra.mxu0 %v2939
      %v3778 = vpop.f32.mrf.mxu0
      %v3779 = vadd.f32 0.0, %v3778
      %3780 = vmatmul.f32.gmra.mxu0 %v2941
      %v3781 = vpop.f32.mrf.mxu0
      %v3782 = vadd.f32 0.0, %v3781
      %3783 = vmatmul.f32.gmra.mxu0 %v2943
      %v3784 = vpop.f32.mrf.mxu0
      %v3785 = vadd.f32 0.0, %v3784
      %3786 = vmatmul.f32.gmra.mxu0 %v2945
      %v3787 = vpop.f32.mrf.mxu0
      %v3788 = vadd.f32 0.0, %v3787
      %3789 = vmatmul.f32.gmra.mxu0 %v2947
      %v3790 = vpop.f32.mrf.mxu0
      %v3791 = vadd.f32 0.0, %v3790
      %3792 = vmatmul.f32.gmra.mxu0 %v2949
      %v3793 = vpop.f32.mrf.mxu0
      %v3794 = vadd.f32 0.0, %v3793
      %3795 = vmatmul.f32.gmra.mxu0 %v2951
      %v3796 = vpop.f32.mrf.mxu0
      %v3797 = vadd.f32 0.0, %v3796
      %3798 = vmatmul.f32.gmra.mxu0 %v2953
      %v3799 = vpop.f32.mrf.mxu0
      %v3800 = vadd.f32 0.0, %v3799
      %3801 = vmatmul.f32.gmra.mxu0 %v2955
      %v3802 = vpop.f32.mrf.mxu0
      %v3803 = vadd.f32 0.0, %v3802
      %3804 = vmatmul.f32.gmra.mxu0 %v2957
      %v3805 = vpop.f32.mrf.mxu0
      %v3806 = vadd.f32 0.0, %v3805
      %3807 = vmatmul.f32.gmra.mxu0 %v2959
      %v3808 = vpop.f32.mrf.mxu0
      %v3809 = vadd.f32 0.0, %v3808
      %3810 = vmatmul.f32.gmra.mxu0 %v2961
      %v3811 = vpop.f32.mrf.mxu0
      %v3812 = vadd.f32 0.0, %v3811
      %3813 = vmatmul.f32.gmra.mxu0 %v2963
      %v3814 = vpop.f32.mrf.mxu0
      %v3815 = vadd.f32 0.0, %v3814
      %3816 = vmatmul.f32.gmra.mxu0 %v2965
      %v3817 = vpop.f32.mrf.mxu0
      %v3818 = vadd.f32 0.0, %v3817
      %3819 = vmatmul.f32.gmra.mxu0 %v2967
      %v3820 = vpop.f32.mrf.mxu0
      %v3821 = vadd.f32 0.0, %v3820
      %3822 = vmatmul.f32.gmra.mxu0 %v2969
      %v3823 = vpop.f32.mrf.mxu0
      %v3824 = vadd.f32 0.0, %v3823
      %3825 = vmatmul.f32.gmra.mxu0 %v2971
      %v3826 = vpop.f32.mrf.mxu0
      %v3827 = vadd.f32 0.0, %v3826
      %3828 = vmatmul.f32.gmra.mxu0 %v2973
      %v3829 = vpop.f32.mrf.mxu0
      %v3830 = vadd.f32 0.0, %v3829
      %3831 = vmatmul.f32.gmra.mxu0 %v2975
      %v3832 = vpop.f32.mrf.mxu0
      %v3833 = vadd.f32 0.0, %v3832
      %3834 = vmatmul.f32.gmra.mxu0 %v2977
      %v3835 = vpop.f32.mrf.mxu0
      %v3836 = vadd.f32 0.0, %v3835
      %3837 = vmatmul.f32.gmra.mxu0 %v2979
      %v3838 = vpop.f32.mrf.mxu0
      %v3839 = vadd.f32 0.0, %v3838
      %3840 = vmatmul.f32.gmra.mxu0 %v2981
      %v3841 = vpop.f32.mrf.mxu0
      %v3842 = vadd.f32 0.0, %v3841
      %3843 = vmatmul.f32.gmra.mxu0 %v2983
      %v3844 = vpop.f32.mrf.mxu0
      %v3845 = vadd.f32 0.0, %v3844
      %3846 = vmatmul.f32.gmra.mxu0 %v2985
      %v3847 = vpop.f32.mrf.mxu0
      %v3848 = vadd.f32 0.0, %v3847
      %3849 = vmatmul.f32.gmra.mxu0 %v2987
      %v3850 = vpop.f32.mrf.mxu0
      %v3851 = vadd.f32 0.0, %v3850
      %3852 = vmatmul.f32.gmra.mxu0 %v2989
      %v3853 = vpop.f32.mrf.mxu0
      %v3854 = vadd.f32 0.0, %v3853
      %3855 = vmatmul.f32.gmra.mxu0 %v2991
      %v3856 = vpop.f32.mrf.mxu0
      %v3857 = vadd.f32 0.0, %v3856
      %3858 = vmatmul.f32.gmra.mxu0 %v2993
      %v3859 = vpop.f32.mrf.mxu0
      %v3860 = vadd.f32 0.0, %v3859
      %3861 = vmatmul.f32.gmra.mxu0 %v2995
      %v3862 = vpop.f32.mrf.mxu0
      %v3863 = vadd.f32 0.0, %v3862
      %3864 = vmatmul.f32.gmra.mxu0 %v2997
      %v3865 = vpop.f32.mrf.mxu0
      %v3866 = vadd.f32 0.0, %v3865
      %3867 = vmatmul.f32.gmra.mxu0 %v3757
      %v3868 = vpop.f32.mrf.mxu0
      %v3869 = vadd.f32 0.0, %v3868
      %3870 = vmatmul.f32.gmra.mxu0 %v3759
      %v3871 = vpop.f32.mrf.mxu0
      %v3872 = vadd.f32 0.0, %v3871
      %3873 = vdwg.mxu0
      %v3874 = vadd.f32 %v3723, %v3779
      %v3875 = vadd.f32 %v3724, %v3782
      %v3876 = vadd.f32 %v3725, %v3785
      %v3877 = vadd.f32 %v3726, %v3788
      %v3878 = vadd.f32 %v3727, %v3791
      %v3879 = vadd.f32 %v3728, %v3794
      %v3880 = vadd.f32 %v3729, %v3797
      %v3881 = vadd.f32 %v3730, %v3800
      %v3882 = vadd.f32 %v3731, %v3803
      %v3883 = vadd.f32 %v3732, %v3806
      %v3884 = vadd.f32 %v3733, %v3809
      %v3885 = vadd.f32 %v3734, %v3812
      %v3886 = vadd.f32 %v3735, %v3815
      %v3887 = vadd.f32 %v3736, %v3818
      %v3888 = vadd.f32 %v3737, %v3821
      %v3889 = vadd.f32 %v3738, %v3824
      %v3890 = vadd.f32 %v3739, %v3827
      %v3891 = vadd.f32 %v3740, %v3830
      %v3892 = vadd.f32 %v3741, %v3833
      %v3893 = vadd.f32 %v3742, %v3836
      %v3894 = vadd.f32 %v3743, %v3839
      %v3895 = vadd.f32 %v3744, %v3842
      %v3896 = vadd.f32 %v3745, %v3845
      %v3897 = vadd.f32 %v3746, %v3848
      %v3898 = vadd.f32 %v3747, %v3851
      %v3899 = vadd.f32 %v3748, %v3854
      %v3900 = vadd.f32 %v3749, %v3857
      %v3901 = vadd.f32 %v3750, %v3860
      %v3902 = vadd.f32 %v3751, %v3863
      %v3903 = vadd.f32 %v3752, %v3866
      %v3904 = vadd.f32 %v3753, %v3869
      %v3905 = vadd.f32 %v3754, %v3872
      %v3907 = vrot.slane %v2797, 1
      %v3908 = vrot.slane %v2798, 1
      %v3909 = vsel %vm1215, %v3907, %v3908
      %v3910 = vrot.slane %v2799, 1
      %v3911 = vsel %vm1215, %v3908, %v3910
      %s3912 = scalar_lea.vmem %s5, 40
      %v3913 = vld [vmem:[%s3912] sm:$0xff]
      %v3914 = vsel %vm2626, %v3909, 0
      %v3916 = vsel %vm2626, %v3911, 0
      %3918 = vmatpush.msra.mxu0 0.0
      %3919 = vmatpush.msra.mxu0 0.0
      %3920 = vmatpush.msra.mxu0 0.0
      %3921 = vmatpush.msra.mxu0 0.0
      %3922 = vmatpush.msra.mxu0 0.0
      %3923 = vmatpush.msra.mxu0 0.0
      %3924 = vmatpush.msra.mxu0 0.0
      %3925 = vmatpush.msra.mxu0 0.0
      %3926 = vmatpush.msra.mxu0 0.0
      %3927 = vmatpush.msra.mxu0 0.0
      %3928 = vmatpush.msra.mxu0 0.0
      %3929 = vmatpush.msra.mxu0 0.0
      %3930 = vmatpush.msra.mxu0 0.0
      %3931 = vmatpush.msra.mxu0 0.0
      %3932 = vmatpush.msra.mxu0 0.0
      %3933 = vmatpush.msra.mxu0 %v3913
      %3934 = vmatmul.f32.gmra.mxu0 %v3391
      %v3935 = vpop.f32.mrf.mxu0
      %v3936 = vadd.f32 0.0, %v3935
      %3937 = vmatmul.f32.gmra.mxu0 %v3393
      %v3938 = vpop.f32.mrf.mxu0
      %v3939 = vadd.f32 0.0, %v3938
      %3940 = vmatmul.f32.gmra.mxu0 %v3395
      %v3941 = vpop.f32.mrf.mxu0
      %v3942 = vadd.f32 0.0, %v3941
      %3943 = vmatmul.f32.gmra.mxu0 %v3397
      %v3944 = vpop.f32.mrf.mxu0
      %v3945 = vadd.f32 0.0, %v3944
      %3946 = vmatmul.f32.gmra.mxu0 %v3399
      %v3947 = vpop.f32.mrf.mxu0
      %v3948 = vadd.f32 0.0, %v3947
      %3949 = vmatmul.f32.gmra.mxu0 %v3401
      %v3950 = vpop.f32.mrf.mxu0
      %v3951 = vadd.f32 0.0, %v3950
      %3952 = vmatmul.f32.gmra.mxu0 %v3403
      %v3953 = vpop.f32.mrf.mxu0
      %v3954 = vadd.f32 0.0, %v3953
      %3955 = vmatmul.f32.gmra.mxu0 %v3405
      %v3956 = vpop.f32.mrf.mxu0
      %v3957 = vadd.f32 0.0, %v3956
      %3958 = vmatmul.f32.gmra.mxu0 %v3407
      %v3959 = vpop.f32.mrf.mxu0
      %v3960 = vadd.f32 0.0, %v3959
      %3961 = vmatmul.f32.gmra.mxu0 %v3409
      %v3962 = vpop.f32.mrf.mxu0
      %v3963 = vadd.f32 0.0, %v3962
      %3964 = vmatmul.f32.gmra.mxu0 %v3411
      %v3965 = vpop.f32.mrf.mxu0
      %v3966 = vadd.f32 0.0, %v3965
      %3967 = vmatmul.f32.gmra.mxu0 %v3413
      %v3968 = vpop.f32.mrf.mxu0
      %v3969 = vadd.f32 0.0, %v3968
      %3970 = vmatmul.f32.gmra.mxu0 %v3415
      %v3971 = vpop.f32.mrf.mxu0
      %v3972 = vadd.f32 0.0, %v3971
      %3973 = vmatmul.f32.gmra.mxu0 %v3417
      %v3974 = vpop.f32.mrf.mxu0
      %v3975 = vadd.f32 0.0, %v3974
      %3976 = vmatmul.f32.gmra.mxu0 %v3419
      %v3977 = vpop.f32.mrf.mxu0
      %v3978 = vadd.f32 0.0, %v3977
      %3979 = vmatmul.f32.gmra.mxu0 %v3421
      %v3980 = vpop.f32.mrf.mxu0
      %v3981 = vadd.f32 0.0, %v3980
      %3982 = vmatmul.f32.gmra.mxu0 %v3423
      %v3983 = vpop.f32.mrf.mxu0
      %v3984 = vadd.f32 0.0, %v3983
      %3985 = vmatmul.f32.gmra.mxu0 %v3425
      %v3986 = vpop.f32.mrf.mxu0
      %v3987 = vadd.f32 0.0, %v3986
      %3988 = vmatmul.f32.gmra.mxu0 %v3427
      %v3989 = vpop.f32.mrf.mxu0
      %v3990 = vadd.f32 0.0, %v3989
      %3991 = vmatmul.f32.gmra.mxu0 %v3429
      %v3992 = vpop.f32.mrf.mxu0
      %v3993 = vadd.f32 0.0, %v3992
      %3994 = vmatmul.f32.gmra.mxu0 %v3431
      %v3995 = vpop.f32.mrf.mxu0
      %v3996 = vadd.f32 0.0, %v3995
      %3997 = vmatmul.f32.gmra.mxu0 %v3433
      %v3998 = vpop.f32.mrf.mxu0
      %v3999 = vadd.f32 0.0, %v3998
      %4000 = vmatmul.f32.gmra.mxu0 %v3435
      %v4001 = vpop.f32.mrf.mxu0
      %v4002 = vadd.f32 0.0, %v4001
      %4003 = vmatmul.f32.gmra.mxu0 %v3437
      %v4004 = vpop.f32.mrf.mxu0
      %v4005 = vadd.f32 0.0, %v4004
      %4006 = vmatmul.f32.gmra.mxu0 %v3439
      %v4007 = vpop.f32.mrf.mxu0
      %v4008 = vadd.f32 0.0, %v4007
      %4009 = vmatmul.f32.gmra.mxu0 %v3441
      %v4010 = vpop.f32.mrf.mxu0
      %v4011 = vadd.f32 0.0, %v4010
      %4012 = vmatmul.f32.gmra.mxu0 %v3443
      %v4013 = vpop.f32.mrf.mxu0
      %v4014 = vadd.f32 0.0, %v4013
      %4015 = vmatmul.f32.gmra.mxu0 %v3445
      %v4016 = vpop.f32.mrf.mxu0
      %v4017 = vadd.f32 0.0, %v4016
      %4018 = vmatmul.f32.gmra.mxu0 %v3447
      %v4019 = vpop.f32.mrf.mxu0
      %v4020 = vadd.f32 0.0, %v4019
      %4021 = vmatmul.f32.gmra.mxu0 %v3449
      %v4022 = vpop.f32.mrf.mxu0
      %v4023 = vadd.f32 0.0, %v4022
      %4024 = vmatmul.f32.gmra.mxu0 %v3914
      %v4025 = vpop.f32.mrf.mxu0
      %v4026 = vadd.f32 0.0, %v4025
      %4027 = vmatmul.f32.gmra.mxu0 %v3916
      %v4028 = vpop.f32.mrf.mxu0
      %v4029 = vadd.f32 0.0, %v4028
      %4030 = vdwg.mxu0
      %v4031 = vadd.f32 %v3874, %v3936
      %v4032 = vadd.f32 %v3875, %v3939
      %v4033 = vadd.f32 %v3876, %v3942
      %v4034 = vadd.f32 %v3877, %v3945
      %v4035 = vadd.f32 %v3878, %v3948
      %v4036 = vadd.f32 %v3879, %v3951
      %v4037 = vadd.f32 %v3880, %v3954
      %v4038 = vadd.f32 %v3881, %v3957
      %v4039 = vadd.f32 %v3882, %v3960
      %v4040 = vadd.f32 %v3883, %v3963
      %v4041 = vadd.f32 %v3884, %v3966
      %v4042 = vadd.f32 %v3885, %v3969
      %v4043 = vadd.f32 %v3886, %v3972
      %v4044 = vadd.f32 %v3887, %v3975
      %v4045 = vadd.f32 %v3888, %v3978
      %v4046 = vadd.f32 %v3889, %v3981
      %v4047 = vadd.f32 %v3890, %v3984
      %v4048 = vadd.f32 %v3891, %v3987
      %v4049 = vadd.f32 %v3892, %v3990
      %v4050 = vadd.f32 %v3893, %v3993
      %v4051 = vadd.f32 %v3894, %v3996
      %v4052 = vadd.f32 %v3895, %v3999
      %v4053 = vadd.f32 %v3896, %v4002
      %v4054 = vadd.f32 %v3897, %v4005
      %v4055 = vadd.f32 %v3898, %v4008
      %v4056 = vadd.f32 %v3899, %v4011
      %v4057 = vadd.f32 %v3900, %v4014
      %v4058 = vadd.f32 %v3901, %v4017
      %v4059 = vadd.f32 %v3902, %v4020
      %v4060 = vadd.f32 %v3903, %v4023
      %v4061 = vadd.f32 %v3904, %v4026
      %v4062 = vadd.f32 %v3905, %v4029
      %v4066 = vrot.slane %v2800, 7
      %v4067 = vrot.slane %v2801, 7
      %v4068 = vsel %vm755, %v4066, %v4067
      %v4069 = vrot.slane %v2802, 7
      %v4070 = vsel %vm755, %v4067, %v4069
      %s4071 = scalar_lea.vmem %s5, 48
      %v4072 = vld [vmem:[%s4071] sm:$0xff]
      %v4073 = vsel %vm2626, %v4068, 0
      %v4075 = vsel %vm2626, %v4070, 0
      %4077 = vmatpush.msra.mxu0 0.0
      %4078 = vmatpush.msra.mxu0 0.0
      %4079 = vmatpush.msra.mxu0 0.0
      %4080 = vmatpush.msra.mxu0 0.0
      %4081 = vmatpush.msra.mxu0 0.0
      %4082 = vmatpush.msra.mxu0 0.0
      %4083 = vmatpush.msra.mxu0 0.0
      %4084 = vmatpush.msra.mxu0 0.0
      %4085 = vmatpush.msra.mxu0 0.0
      %4086 = vmatpush.msra.mxu0 0.0
      %4087 = vmatpush.msra.mxu0 0.0
      %4088 = vmatpush.msra.mxu0 0.0
      %4089 = vmatpush.msra.mxu0 0.0
      %4090 = vmatpush.msra.mxu0 0.0
      %4091 = vmatpush.msra.mxu0 0.0
      %4092 = vmatpush.msra.mxu0 %v4072
      %4093 = vmatmul.f32.gmra.mxu0 %v3120
      %v4094 = vpop.f32.mrf.mxu0
      %v4095 = vadd.f32 0.0, %v4094
      %4096 = vmatmul.f32.gmra.mxu0 %v3122
      %v4097 = vpop.f32.mrf.mxu0
      %v4098 = vadd.f32 0.0, %v4097
      %4099 = vmatmul.f32.gmra.mxu0 %v3124
      %v4100 = vpop.f32.mrf.mxu0
      %v4101 = vadd.f32 0.0, %v4100
      %4102 = vmatmul.f32.gmra.mxu0 %v3126
      %v4103 = vpop.f32.mrf.mxu0
      %v4104 = vadd.f32 0.0, %v4103
      %4105 = vmatmul.f32.gmra.mxu0 %v3128
      %v4106 = vpop.f32.mrf.mxu0
      %v4107 = vadd.f32 0.0, %v4106
      %4108 = vmatmul.f32.gmra.mxu0 %v3130
      %v4109 = vpop.f32.mrf.mxu0
      %v4110 = vadd.f32 0.0, %v4109
      %4111 = vmatmul.f32.gmra.mxu0 %v3132
      %v4112 = vpop.f32.mrf.mxu0
      %v4113 = vadd.f32 0.0, %v4112
      %4114 = vmatmul.f32.gmra.mxu0 %v3134
      %v4115 = vpop.f32.mrf.mxu0
      %v4116 = vadd.f32 0.0, %v4115
      %4117 = vmatmul.f32.gmra.mxu0 %v3136
      %v4118 = vpop.f32.mrf.mxu0
      %v4119 = vadd.f32 0.0, %v4118
      %4120 = vmatmul.f32.gmra.mxu0 %v3138
      %v4121 = vpop.f32.mrf.mxu0
      %v4122 = vadd.f32 0.0, %v4121
      %4123 = vmatmul.f32.gmra.mxu0 %v3140
      %v4124 = vpop.f32.mrf.mxu0
      %v4125 = vadd.f32 0.0, %v4124
      %4126 = vmatmul.f32.gmra.mxu0 %v3142
      %v4127 = vpop.f32.mrf.mxu0
      %v4128 = vadd.f32 0.0, %v4127
      %4129 = vmatmul.f32.gmra.mxu0 %v3144
      %v4130 = vpop.f32.mrf.mxu0
      %v4131 = vadd.f32 0.0, %v4130
      %4132 = vmatmul.f32.gmra.mxu0 %v3146
      %v4133 = vpop.f32.mrf.mxu0
      %v4134 = vadd.f32 0.0, %v4133
      %4135 = vmatmul.f32.gmra.mxu0 %v3148
      %v4136 = vpop.f32.mrf.mxu0
      %v4137 = vadd.f32 0.0, %v4136
      %4138 = vmatmul.f32.gmra.mxu0 %v3150
      %v4139 = vpop.f32.mrf.mxu0
      %v4140 = vadd.f32 0.0, %v4139
      %4141 = vmatmul.f32.gmra.mxu0 %v3152
      %v4142 = vpop.f32.mrf.mxu0
      %v4143 = vadd.f32 0.0, %v4142
      %4144 = vmatmul.f32.gmra.mxu0 %v3154
      %v4145 = vpop.f32.mrf.mxu0
      %v4146 = vadd.f32 0.0, %v4145
      %4147 = vmatmul.f32.gmra.mxu0 %v3156
      %v4148 = vpop.f32.mrf.mxu0
      %v4149 = vadd.f32 0.0, %v4148
      %4150 = vmatmul.f32.gmra.mxu0 %v3158
      %v4151 = vpop.f32.mrf.mxu0
      %v4152 = vadd.f32 0.0, %v4151
      %4153 = vmatmul.f32.gmra.mxu0 %v3160
      %v4154 = vpop.f32.mrf.mxu0
      %v4155 = vadd.f32 0.0, %v4154
      %4156 = vmatmul.f32.gmra.mxu0 %v3162
      %v4157 = vpop.f32.mrf.mxu0
      %v4158 = vadd.f32 0.0, %v4157
      %4159 = vmatmul.f32.gmra.mxu0 %v3164
      %v4160 = vpop.f32.mrf.mxu0
      %v4161 = vadd.f32 0.0, %v4160
      %4162 = vmatmul.f32.gmra.mxu0 %v3166
      %v4163 = vpop.f32.mrf.mxu0
      %v4164 = vadd.f32 0.0, %v4163
      %4165 = vmatmul.f32.gmra.mxu0 %v3168
      %v4166 = vpop.f32.mrf.mxu0
      %v4167 = vadd.f32 0.0, %v4166
      %4168 = vmatmul.f32.gmra.mxu0 %v3170
      %v4169 = vpop.f32.mrf.mxu0
      %v4170 = vadd.f32 0.0, %v4169
      %4171 = vmatmul.f32.gmra.mxu0 %v3172
      %v4172 = vpop.f32.mrf.mxu0
      %v4173 = vadd.f32 0.0, %v4172
      %4174 = vmatmul.f32.gmra.mxu0 %v3174
      %v4175 = vpop.f32.mrf.mxu0
      %v4176 = vadd.f32 0.0, %v4175
      %4177 = vmatmul.f32.gmra.mxu0 %v3606
      %v4178 = vpop.f32.mrf.mxu0
      %v4179 = vadd.f32 0.0, %v4178
      %4180 = vmatmul.f32.gmra.mxu0 %v3608
      %v4181 = vpop.f32.mrf.mxu0
      %v4182 = vadd.f32 0.0, %v4181
      %4183 = vmatmul.f32.gmra.mxu0 %v4073
      %v4184 = vpop.f32.mrf.mxu0
      %v4185 = vadd.f32 0.0, %v4184
      %4186 = vmatmul.f32.gmra.mxu0 %v4075
      %v4187 = vpop.f32.mrf.mxu0
      %v4188 = vadd.f32 0.0, %v4187
      %4189 = vdwg.mxu0
      %v4190 = vadd.f32 %v4031, %v4095
      %v4191 = vadd.f32 %v4032, %v4098
      %v4192 = vadd.f32 %v4033, %v4101
      %v4193 = vadd.f32 %v4034, %v4104
      %v4194 = vadd.f32 %v4035, %v4107
      %v4195 = vadd.f32 %v4036, %v4110
      %v4196 = vadd.f32 %v4037, %v4113
      %v4197 = vadd.f32 %v4038, %v4116
      %v4198 = vadd.f32 %v4039, %v4119
      %v4199 = vadd.f32 %v4040, %v4122
      %v4200 = vadd.f32 %v4041, %v4125
      %v4201 = vadd.f32 %v4042, %v4128
      %v4202 = vadd.f32 %v4043, %v4131
      %v4203 = vadd.f32 %v4044, %v4134
      %v4204 = vadd.f32 %v4045, %v4137
      %v4205 = vadd.f32 %v4046, %v4140
      %v4206 = vadd.f32 %v4047, %v4143
      %v4207 = vadd.f32 %v4048, %v4146
      %v4208 = vadd.f32 %v4049, %v4149
      %v4209 = vadd.f32 %v4050, %v4152
      %v4210 = vadd.f32 %v4051, %v4155
      %v4211 = vadd.f32 %v4052, %v4158
      %v4212 = vadd.f32 %v4053, %v4161
      %v4213 = vadd.f32 %v4054, %v4164
      %v4214 = vadd.f32 %v4055, %v4167
      %v4215 = vadd.f32 %v4056, %v4170
      %v4216 = vadd.f32 %v4057, %v4173
      %v4217 = vadd.f32 %v4058, %v4176
      %v4218 = vadd.f32 %v4059, %v4179
      %v4219 = vadd.f32 %v4060, %v4182
      %v4220 = vadd.f32 %v4061, %v4185
      %v4221 = vadd.f32 %v4062, %v4188
      %s4222 = scalar_lea.vmem %s5, 56
      %v4223 = vld [vmem:[%s4222] sm:$0xff]
      %v4224 = vsel %vm2626, %v2801, 0
      %v4226 = vsel %vm2626, %v2802, 0
      %4228 = vmatpush.msra.mxu0 0.0
      %4229 = vmatpush.msra.mxu0 0.0
      %4230 = vmatpush.msra.mxu0 0.0
      %4231 = vmatpush.msra.mxu0 0.0
      %4232 = vmatpush.msra.mxu0 0.0
      %4233 = vmatpush.msra.mxu0 0.0
      %4234 = vmatpush.msra.mxu0 0.0
      %4235 = vmatpush.msra.mxu0 0.0
      %4236 = vmatpush.msra.mxu0 0.0
      %4237 = vmatpush.msra.mxu0 0.0
      %4238 = vmatpush.msra.mxu0 0.0
      %4239 = vmatpush.msra.mxu0 0.0
      %4240 = vmatpush.msra.mxu0 0.0
      %4241 = vmatpush.msra.mxu0 0.0
      %4242 = vmatpush.msra.mxu0 0.0
      %4243 = vmatpush.msra.mxu0 %v4223
      %4244 = vmatmul.f32.gmra.mxu0 %v2943
      %v4245 = vpop.f32.mrf.mxu0
      %v4246 = vadd.f32 0.0, %v4245
      %4247 = vmatmul.f32.gmra.mxu0 %v2945
      %v4248 = vpop.f32.mrf.mxu0
      %v4249 = vadd.f32 0.0, %v4248
      %4250 = vmatmul.f32.gmra.mxu0 %v2947
      %v4251 = vpop.f32.mrf.mxu0
      %v4252 = vadd.f32 0.0, %v4251
      %4253 = vmatmul.f32.gmra.mxu0 %v2949
      %v4254 = vpop.f32.mrf.mxu0
      %v4255 = vadd.f32 0.0, %v4254
      %4256 = vmatmul.f32.gmra.mxu0 %v2951
      %v4257 = vpop.f32.mrf.mxu0
      %v4258 = vadd.f32 0.0, %v4257
      %4259 = vmatmul.f32.gmra.mxu0 %v2953
      %v4260 = vpop.f32.mrf.mxu0
      %v4261 = vadd.f32 0.0, %v4260
      %4262 = vmatmul.f32.gmra.mxu0 %v2955
      %v4263 = vpop.f32.mrf.mxu0
      %v4264 = vadd.f32 0.0, %v4263
      %4265 = vmatmul.f32.gmra.mxu0 %v2957
      %v4266 = vpop.f32.mrf.mxu0
      %v4267 = vadd.f32 0.0, %v4266
      %4268 = vmatmul.f32.gmra.mxu0 %v2959
      %v4269 = vpop.f32.mrf.mxu0
      %v4270 = vadd.f32 0.0, %v4269
      %4271 = vmatmul.f32.gmra.mxu0 %v2961
      %v4272 = vpop.f32.mrf.mxu0
      %v4273 = vadd.f32 0.0, %v4272
      %4274 = vmatmul.f32.gmra.mxu0 %v2963
      %v4275 = vpop.f32.mrf.mxu0
      %v4276 = vadd.f32 0.0, %v4275
      %4277 = vmatmul.f32.gmra.mxu0 %v2965
      %v4278 = vpop.f32.mrf.mxu0
      %v4279 = vadd.f32 0.0, %v4278
      %4280 = vmatmul.f32.gmra.mxu0 %v2967
      %v4281 = vpop.f32.mrf.mxu0
      %v4282 = vadd.f32 0.0, %v4281
      %4283 = vmatmul.f32.gmra.mxu0 %v2969
      %v4284 = vpop.f32.mrf.mxu0
      %v4285 = vadd.f32 0.0, %v4284
      %4286 = vmatmul.f32.gmra.mxu0 %v2971
      %v4287 = vpop.f32.mrf.mxu0
      %v4288 = vadd.f32 0.0, %v4287
      %4289 = vmatmul.f32.gmra.mxu0 %v2973
      %v4290 = vpop.f32.mrf.mxu0
      %v4291 = vadd.f32 0.0, %v4290
      %4292 = vmatmul.f32.gmra.mxu0 %v2975
      %v4293 = vpop.f32.mrf.mxu0
      %v4294 = vadd.f32 0.0, %v4293
      %4295 = vmatmul.f32.gmra.mxu0 %v2977
      %v4296 = vpop.f32.mrf.mxu0
      %v4297 = vadd.f32 0.0, %v4296
      %4298 = vmatmul.f32.gmra.mxu0 %v2979
      %v4299 = vpop.f32.mrf.mxu0
      %v4300 = vadd.f32 0.0, %v4299
      %4301 = vmatmul.f32.gmra.mxu0 %v2981
      %v4302 = vpop.f32.mrf.mxu0
      %v4303 = vadd.f32 0.0, %v4302
      %4304 = vmatmul.f32.gmra.mxu0 %v2983
      %v4305 = vpop.f32.mrf.mxu0
      %v4306 = vadd.f32 0.0, %v4305
      %4307 = vmatmul.f32.gmra.mxu0 %v2985
      %v4308 = vpop.f32.mrf.mxu0
      %v4309 = vadd.f32 0.0, %v4308
      %4310 = vmatmul.f32.gmra.mxu0 %v2987
      %v4311 = vpop.f32.mrf.mxu0
      %v4312 = vadd.f32 0.0, %v4311
      %4313 = vmatmul.f32.gmra.mxu0 %v2989
      %v4314 = vpop.f32.mrf.mxu0
      %v4315 = vadd.f32 0.0, %v4314
      %4316 = vmatmul.f32.gmra.mxu0 %v2991
      %v4317 = vpop.f32.mrf.mxu0
      %v4318 = vadd.f32 0.0, %v4317
      %4319 = vmatmul.f32.gmra.mxu0 %v2993
      %v4320 = vpop.f32.mrf.mxu0
      %v4321 = vadd.f32 0.0, %v4320
      %4322 = vmatmul.f32.gmra.mxu0 %v2995
      %v4323 = vpop.f32.mrf.mxu0
      %v4324 = vadd.f32 0.0, %v4323
      %4325 = vmatmul.f32.gmra.mxu0 %v2997
      %v4326 = vpop.f32.mrf.mxu0
      %v4327 = vadd.f32 0.0, %v4326
      %4328 = vmatmul.f32.gmra.mxu0 %v3757
      %v4329 = vpop.f32.mrf.mxu0
      %v4330 = vadd.f32 0.0, %v4329
      %4331 = vmatmul.f32.gmra.mxu0 %v3759
      %v4332 = vpop.f32.mrf.mxu0
      %v4333 = vadd.f32 0.0, %v4332
      %4334 = vmatmul.f32.gmra.mxu0 %v4224
      %v4335 = vpop.f32.mrf.mxu0
      %v4336 = vadd.f32 0.0, %v4335
      %4337 = vmatmul.f32.gmra.mxu0 %v4226
      %v4338 = vpop.f32.mrf.mxu0
      %v4339 = vadd.f32 0.0, %v4338
      %4340 = vdwg.mxu0
      %v4341 = vadd.f32 %v4190, %v4246
      %v4342 = vadd.f32 %v4191, %v4249
      %v4343 = vadd.f32 %v4192, %v4252
      %v4344 = vadd.f32 %v4193, %v4255
      %v4345 = vadd.f32 %v4194, %v4258
      %v4346 = vadd.f32 %v4195, %v4261
      %v4347 = vadd.f32 %v4196, %v4264
      %v4348 = vadd.f32 %v4197, %v4267
      %v4349 = vadd.f32 %v4198, %v4270
      %v4350 = vadd.f32 %v4199, %v4273
      %v4351 = vadd.f32 %v4200, %v4276
      %v4352 = vadd.f32 %v4201, %v4279
      %v4353 = vadd.f32 %v4202, %v4282
      %v4354 = vadd.f32 %v4203, %v4285
      %v4355 = vadd.f32 %v4204, %v4288
      %v4356 = vadd.f32 %v4205, %v4291
      %v4357 = vadd.f32 %v4206, %v4294
      %v4358 = vadd.f32 %v4207, %v4297
      %v4359 = vadd.f32 %v4208, %v4300
      %v4360 = vadd.f32 %v4209, %v4303
      %v4361 = vadd.f32 %v4210, %v4306
      %v4362 = vadd.f32 %v4211, %v4309
      %v4363 = vadd.f32 %v4212, %v4312
      %v4364 = vadd.f32 %v4213, %v4315
      %v4365 = vadd.f32 %v4214, %v4318
      %v4366 = vadd.f32 %v4215, %v4321
      %v4367 = vadd.f32 %v4216, %v4324
      %v4368 = vadd.f32 %v4217, %v4327
      %v4369 = vadd.f32 %v4218, %v4330
      %v4370 = vadd.f32 %v4219, %v4333
      %v4371 = vadd.f32 %v4220, %v4336
      %v4372 = vadd.f32 %v4221, %v4339
      %v4374 = vrot.slane %v2801, 1
      %v4375 = vrot.slane %v2802, 1
      %v4376 = vsel %vm1215, %v4374, %v4375
      %v4377 = vrot.slane %v2803, 1
      %v4378 = vsel %vm1215, %v4375, %v4377
      %s4379 = scalar_lea.vmem %s5, 64
      %v4380 = vld [vmem:[%s4379] sm:$0xff]
      %v4381 = vsel %vm2626, %v4376, 0
      %v4383 = vsel %vm2626, %v4378, 0
      %4385 = vmatpush.msra.mxu0 0.0
      %4386 = vmatpush.msra.mxu0 0.0
      %4387 = vmatpush.msra.mxu0 0.0
      %4388 = vmatpush.msra.mxu0 0.0
      %4389 = vmatpush.msra.mxu0 0.0
      %4390 = vmatpush.msra.mxu0 0.0
      %4391 = vmatpush.msra.mxu0 0.0
      %4392 = vmatpush.msra.mxu0 0.0
      %4393 = vmatpush.msra.mxu0 0.0
      %4394 = vmatpush.msra.mxu0 0.0
      %4395 = vmatpush.msra.mxu0 0.0
      %4396 = vmatpush.msra.mxu0 0.0
      %4397 = vmatpush.msra.mxu0 0.0
      %4398 = vmatpush.msra.mxu0 0.0
      %4399 = vmatpush.msra.mxu0 0.0
      %4400 = vmatpush.msra.mxu0 %v4380
      %4401 = vmatmul.f32.gmra.mxu0 %v3395
      %v4402 = vpop.f32.mrf.mxu0
      %v4403 = vadd.f32 0.0, %v4402
      %4404 = vmatmul.f32.gmra.mxu0 %v3397
      %v4405 = vpop.f32.mrf.mxu0
      %v4406 = vadd.f32 0.0, %v4405
      %4407 = vmatmul.f32.gmra.mxu0 %v3399
      %v4408 = vpop.f32.mrf.mxu0
      %v4409 = vadd.f32 0.0, %v4408
      %4410 = vmatmul.f32.gmra.mxu0 %v3401
      %v4411 = vpop.f32.mrf.mxu0
      %v4412 = vadd.f32 0.0, %v4411
      %4413 = vmatmul.f32.gmra.mxu0 %v3403
      %v4414 = vpop.f32.mrf.mxu0
      %v4415 = vadd.f32 0.0, %v4414
      %4416 = vmatmul.f32.gmra.mxu0 %v3405
      %v4417 = vpop.f32.mrf.mxu0
      %v4418 = vadd.f32 0.0, %v4417
      %4419 = vmatmul.f32.gmra.mxu0 %v3407
      %v4420 = vpop.f32.mrf.mxu0
      %v4421 = vadd.f32 0.0, %v4420
      %4422 = vmatmul.f32.gmra.mxu0 %v3409
      %v4423 = vpop.f32.mrf.mxu0
      %v4424 = vadd.f32 0.0, %v4423
      %4425 = vmatmul.f32.gmra.mxu0 %v3411
      %v4426 = vpop.f32.mrf.mxu0
      %v4427 = vadd.f32 0.0, %v4426
      %4428 = vmatmul.f32.gmra.mxu0 %v3413
      %v4429 = vpop.f32.mrf.mxu0
      %v4430 = vadd.f32 0.0, %v4429
      %4431 = vmatmul.f32.gmra.mxu0 %v3415
      %v4432 = vpop.f32.mrf.mxu0
      %v4433 = vadd.f32 0.0, %v4432
      %4434 = vmatmul.f32.gmra.mxu0 %v3417
      %v4435 = vpop.f32.mrf.mxu0
      %v4436 = vadd.f32 0.0, %v4435
      %4437 = vmatmul.f32.gmra.mxu0 %v3419
      %v4438 = vpop.f32.mrf.mxu0
      %v4439 = vadd.f32 0.0, %v4438
      %4440 = vmatmul.f32.gmra.mxu0 %v3421
      %v4441 = vpop.f32.mrf.mxu0
      %v4442 = vadd.f32 0.0, %v4441
      %4443 = vmatmul.f32.gmra.mxu0 %v3423
      %v4444 = vpop.f32.mrf.mxu0
      %v4445 = vadd.f32 0.0, %v4444
      %4446 = vmatmul.f32.gmra.mxu0 %v3425
      %v4447 = vpop.f32.mrf.mxu0
      %v4448 = vadd.f32 0.0, %v4447
      %4449 = vmatmul.f32.gmra.mxu0 %v3427
      %v4450 = vpop.f32.mrf.mxu0
      %v4451 = vadd.f32 0.0, %v4450
      %4452 = vmatmul.f32.gmra.mxu0 %v3429
      %v4453 = vpop.f32.mrf.mxu0
      %v4454 = vadd.f32 0.0, %v4453
      %4455 = vmatmul.f32.gmra.mxu0 %v3431
      %v4456 = vpop.f32.mrf.mxu0
      %v4457 = vadd.f32 0.0, %v4456
      %4458 = vmatmul.f32.gmra.mxu0 %v3433
      %v4459 = vpop.f32.mrf.mxu0
      %v4460 = vadd.f32 0.0, %v4459
      %4461 = vmatmul.f32.gmra.mxu0 %v3435
      %v4462 = vpop.f32.mrf.mxu0
      %v4463 = vadd.f32 0.0, %v4462
      %4464 = vmatmul.f32.gmra.mxu0 %v3437
      %v4465 = vpop.f32.mrf.mxu0
      %v4466 = vadd.f32 0.0, %v4465
      %4467 = vmatmul.f32.gmra.mxu0 %v3439
      %v4468 = vpop.f32.mrf.mxu0
      %v4469 = vadd.f32 0.0, %v4468
      %4470 = vmatmul.f32.gmra.mxu0 %v3441
      %v4471 = vpop.f32.mrf.mxu0
      %v4472 = vadd.f32 0.0, %v4471
      %4473 = vmatmul.f32.gmra.mxu0 %v3443
      %v4474 = vpop.f32.mrf.mxu0
      %v4475 = vadd.f32 0.0, %v4474
      %4476 = vmatmul.f32.gmra.mxu0 %v3445
      %v4477 = vpop.f32.mrf.mxu0
      %v4478 = vadd.f32 0.0, %v4477
      %4479 = vmatmul.f32.gmra.mxu0 %v3447
      %v4480 = vpop.f32.mrf.mxu0
      %v4481 = vadd.f32 0.0, %v4480
      %4482 = vmatmul.f32.gmra.mxu0 %v3449
      %v4483 = vpop.f32.mrf.mxu0
      %v4484 = vadd.f32 0.0, %v4483
      %4485 = vmatmul.f32.gmra.mxu0 %v3914
      %v4486 = vpop.f32.mrf.mxu0
      %v4487 = vadd.f32 0.0, %v4486
      %4488 = vmatmul.f32.gmra.mxu0 %v3916
      %v4489 = vpop.f32.mrf.mxu0
      %v4490 = vadd.f32 0.0, %v4489
      %4491 = vmatmul.f32.gmra.mxu0 %v4381
      %v4492 = vpop.f32.mrf.mxu0
      %v4493 = vadd.f32 0.0, %v4492
      %4494 = vmatmul.f32.gmra.mxu0 %v4383
      %v4495 = vpop.f32.mrf.mxu0
      %v4496 = vadd.f32 0.0, %v4495
      %4497 = vdwg.mxu0
      %v4498 = vadd.f32 %v4341, %v4403
      %v4499 = vadd.f32 %v4342, %v4406
      %v4500 = vadd.f32 %v4343, %v4409
      %v4501 = vadd.f32 %v4344, %v4412
      %v4502 = vadd.f32 %v4345, %v4415
      %v4503 = vadd.f32 %v4346, %v4418
      %v4504 = vadd.f32 %v4347, %v4421
      %v4505 = vadd.f32 %v4348, %v4424
      %v4506 = vadd.f32 %v4349, %v4427
      %v4507 = vadd.f32 %v4350, %v4430
      %v4508 = vadd.f32 %v4351, %v4433
      %v4509 = vadd.f32 %v4352, %v4436
      %v4510 = vadd.f32 %v4353, %v4439
      %v4511 = vadd.f32 %v4354, %v4442
      %v4512 = vadd.f32 %v4355, %v4445
      %v4513 = vadd.f32 %v4356, %v4448
      %v4514 = vadd.f32 %v4357, %v4451
      %v4515 = vadd.f32 %v4358, %v4454
      %v4516 = vadd.f32 %v4359, %v4457
      %v4517 = vadd.f32 %v4360, %v4460
      %v4518 = vadd.f32 %v4361, %v4463
      %v4519 = vadd.f32 %v4362, %v4466
      %v4520 = vadd.f32 %v4363, %v4469
      %v4521 = vadd.f32 %v4364, %v4472
      %v4522 = vadd.f32 %v4365, %v4475
      %v4523 = vadd.f32 %v4366, %v4478
      %v4524 = vadd.f32 %v4367, %v4481
      %v4525 = vadd.f32 %v4368, %v4484
      %v4526 = vadd.f32 %v4369, %v4487
      %v4527 = vadd.f32 %v4370, %v4490
      %v4528 = vadd.f32 %v4371, %v4493
      %v4529 = vadd.f32 %v4372, %v4496
      %v4530 = vld [vmem:[%s6] sm:$0x1]
      %v4532 = vperm.slane %v4530, 0
      %v4534 = vadd.f32 %v4498, %v4532
      %v4535 = vadd.f32 %v4499, %v4532
      %v4536 = vadd.f32 %v4500, %v4532
      %v4537 = vadd.f32 %v4501, %v4532
      %v4538 = vadd.f32 %v4502, %v4532
      %v4539 = vadd.f32 %v4503, %v4532
      %v4540 = vadd.f32 %v4504, %v4532
      %v4541 = vadd.f32 %v4505, %v4532
      %v4542 = vadd.f32 %v4506, %v4532
      %v4543 = vadd.f32 %v4507, %v4532
      %v4544 = vadd.f32 %v4508, %v4532
      %v4545 = vadd.f32 %v4509, %v4532
      %v4546 = vadd.f32 %v4510, %v4532
      %v4547 = vadd.f32 %v4511, %v4532
      %v4548 = vadd.f32 %v4512, %v4532
      %v4549 = vadd.f32 %v4513, %v4532
      %v4550 = vadd.f32 %v4514, %v4532
      %v4551 = vadd.f32 %v4515, %v4532
      %v4552 = vadd.f32 %v4516, %v4532
      %v4553 = vadd.f32 %v4517, %v4532
      %v4554 = vadd.f32 %v4518, %v4532
      %v4555 = vadd.f32 %v4519, %v4532
      %v4556 = vadd.f32 %v4520, %v4532
      %v4557 = vadd.f32 %v4521, %v4532
      %v4558 = vadd.f32 %v4522, %v4532
      %v4559 = vadd.f32 %v4523, %v4532
      %v4560 = vadd.f32 %v4524, %v4532
      %v4561 = vadd.f32 %v4525, %v4532
      %v4562 = vadd.f32 %v4526, %v4532
      %v4563 = vadd.f32 %v4527, %v4532
      %v4564 = vadd.f32 %v4528, %v4532
      %v4565 = vadd.f32 %v4529, %v4532
      %v4566 = vmul.f32 %v4534, 0.5
      %v4567 = vmul.f32 %v4535, 0.5
      %v4568 = vmul.f32 %v4536, 0.5
      %v4569 = vmul.f32 %v4537, 0.5
      %v4570 = vmul.f32 %v4538, 0.5
      %v4571 = vmul.f32 %v4539, 0.5
      %v4572 = vmul.f32 %v4540, 0.5
      %v4573 = vmul.f32 %v4541, 0.5
      %v4574 = vmul.f32 %v4542, 0.5
      %v4575 = vmul.f32 %v4543, 0.5
      %v4576 = vmul.f32 %v4544, 0.5
      %v4577 = vmul.f32 %v4545, 0.5
      %v4578 = vmul.f32 %v4546, 0.5
      %v4579 = vmul.f32 %v4547, 0.5
      %v4580 = vmul.f32 %v4548, 0.5
      %v4581 = vmul.f32 %v4549, 0.5
      %v4582 = vmul.f32 %v4550, 0.5
      %v4583 = vmul.f32 %v4551, 0.5
      %v4584 = vmul.f32 %v4552, 0.5
      %v4585 = vmul.f32 %v4553, 0.5
      %v4586 = vmul.f32 %v4554, 0.5
      %v4587 = vmul.f32 %v4555, 0.5
      %v4588 = vmul.f32 %v4556, 0.5
      %v4589 = vmul.f32 %v4557, 0.5
      %v4590 = vmul.f32 %v4558, 0.5
      %v4591 = vmul.f32 %v4559, 0.5
      %v4592 = vmul.f32 %v4560, 0.5
      %v4593 = vmul.f32 %v4561, 0.5
      %v4594 = vmul.f32 %v4562, 0.5
      %v4595 = vmul.f32 %v4563, 0.5
      %v4596 = vmul.f32 %v4564, 0.5
      %v4597 = vmul.f32 %v4565, 0.5
      %vm4598 = vcmp.ge.f32.partialorder %v4566, 1.0
      %vm4599 = vcmp.ge.f32.partialorder %v4567, 1.0
      %vm4600 = vcmp.ge.f32.partialorder %v4568, 1.0
      %vm4601 = vcmp.ge.f32.partialorder %v4569, 1.0
      %vm4602 = vcmp.ge.f32.partialorder %v4570, 1.0
      %vm4603 = vcmp.ge.f32.partialorder %v4571, 1.0
      %vm4604 = vcmp.ge.f32.partialorder %v4572, 1.0
      %vm4605 = vcmp.ge.f32.partialorder %v4573, 1.0
      %vm4606 = vcmp.ge.f32.partialorder %v4574, 1.0
      %vm4607 = vcmp.ge.f32.partialorder %v4575, 1.0
      %vm4608 = vcmp.ge.f32.partialorder %v4576, 1.0
      %vm4609 = vcmp.ge.f32.partialorder %v4577, 1.0
      %vm4610 = vcmp.ge.f32.partialorder %v4578, 1.0
      %vm4611 = vcmp.ge.f32.partialorder %v4579, 1.0
      %vm4612 = vcmp.ge.f32.partialorder %v4580, 1.0
      %vm4613 = vcmp.ge.f32.partialorder %v4581, 1.0
      %vm4614 = vcmp.ge.f32.partialorder %v4582, 1.0
      %vm4615 = vcmp.ge.f32.partialorder %v4583, 1.0
      %vm4616 = vcmp.ge.f32.partialorder %v4584, 1.0
      %vm4617 = vcmp.ge.f32.partialorder %v4585, 1.0
      %vm4618 = vcmp.ge.f32.partialorder %v4586, 1.0
      %vm4619 = vcmp.ge.f32.partialorder %v4587, 1.0
      %vm4620 = vcmp.ge.f32.partialorder %v4588, 1.0
      %vm4621 = vcmp.ge.f32.partialorder %v4589, 1.0
      %vm4622 = vcmp.ge.f32.partialorder %v4590, 1.0
      %vm4623 = vcmp.ge.f32.partialorder %v4591, 1.0
      %vm4624 = vcmp.ge.f32.partialorder %v4592, 1.0
      %vm4625 = vcmp.ge.f32.partialorder %v4593, 1.0
      %vm4626 = vcmp.ge.f32.partialorder %v4594, 1.0
      %vm4627 = vcmp.ge.f32.partialorder %v4595, 1.0
      %vm4628 = vcmp.ge.f32.partialorder %v4596, 1.0
      %vm4629 = vcmp.ge.f32.partialorder %v4597, 1.0
      %v4630 = vsel %vm4598, 1, 0
      %v4631 = vsel %vm4599, 1, 0
      %v4632 = vsel %vm4600, 1, 0
      %v4633 = vsel %vm4601, 1, 0
      %v4634 = vsel %vm4602, 1, 0
      %v4635 = vsel %vm4603, 1, 0
      %v4636 = vsel %vm4604, 1, 0
      %v4637 = vsel %vm4605, 1, 0
      %v4638 = vsel %vm4606, 1, 0
      %v4639 = vsel %vm4607, 1, 0
      %v4640 = vsel %vm4608, 1, 0
      %v4641 = vsel %vm4609, 1, 0
      %v4642 = vsel %vm4610, 1, 0
      %v4643 = vsel %vm4611, 1, 0
      %v4644 = vsel %vm4612, 1, 0
      %v4645 = vsel %vm4613, 1, 0
      %v4646 = vsel %vm4614, 1, 0
      %v4647 = vsel %vm4615, 1, 0
      %v4648 = vsel %vm4616, 1, 0
      %v4649 = vsel %vm4617, 1, 0
      %v4650 = vsel %vm4618, 1, 0
      %v4651 = vsel %vm4619, 1, 0
      %v4652 = vsel %vm4620, 1, 0
      %v4653 = vsel %vm4621, 1, 0
      %v4654 = vsel %vm4622, 1, 0
      %v4655 = vsel %vm4623, 1, 0
      %v4656 = vsel %vm4624, 1, 0
      %v4657 = vsel %vm4625, 1, 0
      %v4658 = vsel %vm4626, 1, 0
      %v4659 = vsel %vm4627, 1, 0
      %v4660 = vsel %vm4628, 1, 0
      %v4661 = vsel %vm4629, 1, 0
      %v4662 = vcvt.s32.f32 %v4630
      %v4663 = vcvt.s32.f32 %v4631
      %v4664 = vcvt.s32.f32 %v4632
      %v4665 = vcvt.s32.f32 %v4633
      %v4666 = vcvt.s32.f32 %v4634
      %v4667 = vcvt.s32.f32 %v4635
      %v4668 = vcvt.s32.f32 %v4636
      %v4669 = vcvt.s32.f32 %v4637
      %v4670 = vcvt.s32.f32 %v4638
      %v4671 = vcvt.s32.f32 %v4639
      %v4672 = vcvt.s32.f32 %v4640
      %v4673 = vcvt.s32.f32 %v4641
      %v4674 = vcvt.s32.f32 %v4642
      %v4675 = vcvt.s32.f32 %v4643
      %v4676 = vcvt.s32.f32 %v4644
      %v4677 = vcvt.s32.f32 %v4645
      %v4678 = vcvt.s32.f32 %v4646
      %v4679 = vcvt.s32.f32 %v4647
      %v4680 = vcvt.s32.f32 %v4648
      %v4681 = vcvt.s32.f32 %v4649
      %v4682 = vcvt.s32.f32 %v4650
      %v4683 = vcvt.s32.f32 %v4651
      %v4684 = vcvt.s32.f32 %v4652
      %v4685 = vcvt.s32.f32 %v4653
      %v4686 = vcvt.s32.f32 %v4654
      %v4687 = vcvt.s32.f32 %v4655
      %v4688 = vcvt.s32.f32 %v4656
      %v4689 = vcvt.s32.f32 %v4657
      %v4690 = vcvt.s32.f32 %v4658
      %v4691 = vcvt.s32.f32 %v4659
      %v4692 = vcvt.s32.f32 %v4660
      %v4693 = vcvt.s32.f32 %v4661
      %v4694 = vsub.f32 1.0, %v4662
      %v4695 = vsub.f32 1.0, %v4663
      %v4696 = vsub.f32 1.0, %v4664
      %v4697 = vsub.f32 1.0, %v4665
      %v4698 = vsub.f32 1.0, %v4666
      %v4699 = vsub.f32 1.0, %v4667
      %v4700 = vsub.f32 1.0, %v4668
      %v4701 = vsub.f32 1.0, %v4669
      %v4702 = vsub.f32 1.0, %v4670
      %v4703 = vsub.f32 1.0, %v4671
      %v4704 = vsub.f32 1.0, %v4672
      %v4705 = vsub.f32 1.0, %v4673
      %v4706 = vsub.f32 1.0, %v4674
      %v4707 = vsub.f32 1.0, %v4675
      %v4708 = vsub.f32 1.0, %v4676
      %v4709 = vsub.f32 1.0, %v4677
      %v4710 = vsub.f32 1.0, %v4678
      %v4711 = vsub.f32 1.0, %v4679
      %v4712 = vsub.f32 1.0, %v4680
      %v4713 = vsub.f32 1.0, %v4681
      %v4714 = vsub.f32 1.0, %v4682
      %v4715 = vsub.f32 1.0, %v4683
      %v4716 = vsub.f32 1.0, %v4684
      %v4717 = vsub.f32 1.0, %v4685
      %v4718 = vsub.f32 1.0, %v4686
      %v4719 = vsub.f32 1.0, %v4687
      %v4720 = vsub.f32 1.0, %v4688
      %v4721 = vsub.f32 1.0, %v4689
      %v4722 = vsub.f32 1.0, %v4690
      %v4723 = vsub.f32 1.0, %v4691
      %v4724 = vsub.f32 1.0, %v4692
      %v4725 = vsub.f32 1.0, %v4693
      %v4726 = vmul.f32 %v4566, %v4694
      %v4727 = vmul.f32 %v4567, %v4695
      %v4728 = vmul.f32 %v4568, %v4696
      %v4729 = vmul.f32 %v4569, %v4697
      %v4730 = vmul.f32 %v4570, %v4698
      %v4731 = vmul.f32 %v4571, %v4699
      %v4732 = vmul.f32 %v4572, %v4700
      %v4733 = vmul.f32 %v4573, %v4701
      %v4734 = vmul.f32 %v4574, %v4702
      %v4735 = vmul.f32 %v4575, %v4703
      %v4736 = vmul.f32 %v4576, %v4704
      %v4737 = vmul.f32 %v4577, %v4705
      %v4738 = vmul.f32 %v4578, %v4706
      %v4739 = vmul.f32 %v4579, %v4707
      %v4740 = vmul.f32 %v4580, %v4708
      %v4741 = vmul.f32 %v4581, %v4709
      %v4742 = vmul.f32 %v4582, %v4710
      %v4743 = vmul.f32 %v4583, %v4711
      %v4744 = vmul.f32 %v4584, %v4712
      %v4745 = vmul.f32 %v4585, %v4713
      %v4746 = vmul.f32 %v4586, %v4714
      %v4747 = vmul.f32 %v4587, %v4715
      %v4748 = vmul.f32 %v4588, %v4716
      %v4749 = vmul.f32 %v4589, %v4717
      %v4750 = vmul.f32 %v4590, %v4718
      %v4751 = vmul.f32 %v4591, %v4719
      %v4752 = vmul.f32 %v4592, %v4720
      %v4753 = vmul.f32 %v4593, %v4721
      %v4754 = vmul.f32 %v4594, %v4722
      %v4755 = vmul.f32 %v4595, %v4723
      %v4756 = vmul.f32 %v4596, %v4724
      %v4757 = vmul.f32 %v4597, %v4725
      %v4758 = vadd.f32 %v4662, %v540
      %v4759 = vadd.f32 %v4663, %v543
      %v4760 = vadd.f32 %v4664, %v546
      %v4761 = vadd.f32 %v4665, %v549
      %v4762 = vadd.f32 %v4666, %v552
      %v4763 = vadd.f32 %v4667, %v555
      %v4764 = vadd.f32 %v4668, %v558
      %v4765 = vadd.f32 %v4669, %v561
      %v4766 = vadd.f32 %v4670, %v564
      %v4767 = vadd.f32 %v4671, %v567
      %v4768 = vadd.f32 %v4672, %v570
      %v4769 = vadd.f32 %v4673, %v573
      %v4770 = vadd.f32 %v4674, %v576
      %v4771 = vadd.f32 %v4675, %v579
      %v4772 = vadd.f32 %v4676, %v582
      %v4773 = vadd.f32 %v4677, %v585
      %v4774 = vadd.f32 %v4678, %v588
      %v4775 = vadd.f32 %v4679, %v591
      %v4776 = vadd.f32 %v4680, %v594
      %v4777 = vadd.f32 %v4681, %v597
      %v4778 = vadd.f32 %v4682, %v600
      %v4779 = vadd.f32 %v4683, %v603
      %v4780 = vadd.f32 %v4684, %v606
      %v4781 = vadd.f32 %v4685, %v609
      %v4782 = vadd.f32 %v4686, %v612
      %v4783 = vadd.f32 %v4687, %v615
      %v4784 = vadd.f32 %v4688, %v618
      %v4785 = vadd.f32 %v4689, %v621
      %v4786 = vadd.f32 %v4690, %v624
      %v4787 = vadd.f32 %v4691, %v627
      %v4788 = vadd.f32 %v4692, %v630
      %v4789 = vadd.f32 %v4693, %v633
      %v4790 = vsub.f32 %v4758, %v4726
      %v4791 = vsub.f32 %v4759, %v4727
      %v4792 = vsub.f32 %v4760, %v4728
      %v4793 = vsub.f32 %v4761, %v4729
      %v4794 = vsub.f32 %v4762, %v4730
      %v4795 = vsub.f32 %v4763, %v4731
      %v4796 = vsub.f32 %v4764, %v4732
      %v4797 = vsub.f32 %v4765, %v4733
      %v4798 = vsub.f32 %v4766, %v4734
      %v4799 = vsub.f32 %v4767, %v4735
      %v4800 = vsub.f32 %v4768, %v4736
      %v4801 = vsub.f32 %v4769, %v4737
      %v4802 = vsub.f32 %v4770, %v4738
      %v4803 = vsub.f32 %v4771, %v4739
      %v4804 = vsub.f32 %v4772, %v4740
      %v4805 = vsub.f32 %v4773, %v4741
      %v4806 = vsub.f32 %v4774, %v4742
      %v4807 = vsub.f32 %v4775, %v4743
      %v4808 = vsub.f32 %v4776, %v4744
      %v4809 = vsub.f32 %v4777, %v4745
      %v4810 = vsub.f32 %v4778, %v4746
      %v4811 = vsub.f32 %v4779, %v4747
      %v4812 = vsub.f32 %v4780, %v4748
      %v4813 = vsub.f32 %v4781, %v4749
      %v4814 = vsub.f32 %v4782, %v4750
      %v4815 = vsub.f32 %v4783, %v4751
      %v4816 = vsub.f32 %v4784, %v4752
      %v4817 = vsub.f32 %v4785, %v4753
      %v4818 = vsub.f32 %v4786, %v4754
      %v4819 = vsub.f32 %v4787, %v4755
      %v4820 = vsub.f32 %v4788, %v4756
      %v4821 = vsub.f32 %v4789, %v4757
      %v4822 = vmul.f32 %v4790, 0.5
      %v4823 = vmul.f32 %v4791, 0.5
      %v4824 = vmul.f32 %v4792, 0.5
      %v4825 = vmul.f32 %v4793, 0.5
      %v4826 = vmul.f32 %v4794, 0.5
      %v4827 = vmul.f32 %v4795, 0.5
      %v4828 = vmul.f32 %v4796, 0.5
      %v4829 = vmul.f32 %v4797, 0.5
      %v4830 = vmul.f32 %v4798, 0.5
      %v4831 = vmul.f32 %v4799, 0.5
      %v4832 = vmul.f32 %v4800, 0.5
      %v4833 = vmul.f32 %v4801, 0.5
      %v4834 = vmul.f32 %v4802, 0.5
      %v4835 = vmul.f32 %v4803, 0.5
      %v4836 = vmul.f32 %v4804, 0.5
      %v4837 = vmul.f32 %v4805, 0.5
      %v4838 = vmul.f32 %v4806, 0.5
      %v4839 = vmul.f32 %v4807, 0.5
      %v4840 = vmul.f32 %v4808, 0.5
      %v4841 = vmul.f32 %v4809, 0.5
      %v4842 = vmul.f32 %v4810, 0.5
      %v4843 = vmul.f32 %v4811, 0.5
      %v4844 = vmul.f32 %v4812, 0.5
      %v4845 = vmul.f32 %v4813, 0.5
      %v4846 = vmul.f32 %v4814, 0.5
      %v4847 = vmul.f32 %v4815, 0.5
      %v4848 = vmul.f32 %v4816, 0.5
      %v4849 = vmul.f32 %v4817, 0.5
      %v4850 = vmul.f32 %v4818, 0.5
      %v4851 = vmul.f32 %v4819, 0.5
      %v4852 = vmul.f32 %v4820, 0.5
      %v4853 = vmul.f32 %v4821, 0.5
      %v4854 = vadd.f32 %v4726, %v4822
      %v4855 = vadd.f32 %v4727, %v4823
      %v4856 = vadd.f32 %v4728, %v4824
      %v4857 = vadd.f32 %v4729, %v4825
      %v4858 = vadd.f32 %v4730, %v4826
      %v4859 = vadd.f32 %v4731, %v4827
      %v4860 = vadd.f32 %v4732, %v4828
      %v4861 = vadd.f32 %v4733, %v4829
      %v4862 = vadd.f32 %v4734, %v4830
      %v4863 = vadd.f32 %v4735, %v4831
      %v4864 = vadd.f32 %v4736, %v4832
      %v4865 = vadd.f32 %v4737, %v4833
      %v4866 = vadd.f32 %v4738, %v4834
      %v4867 = vadd.f32 %v4739, %v4835
      %v4868 = vadd.f32 %v4740, %v4836
      %v4869 = vadd.f32 %v4741, %v4837
      %v4870 = vadd.f32 %v4742, %v4838
      %v4871 = vadd.f32 %v4743, %v4839
      %v4872 = vadd.f32 %v4744, %v4840
      %v4873 = vadd.f32 %v4745, %v4841
      %v4874 = vadd.f32 %v4746, %v4842
      %v4875 = vadd.f32 %v4747, %v4843
      %v4876 = vadd.f32 %v4748, %v4844
      %v4877 = vadd.f32 %v4749, %v4845
      %v4878 = vadd.f32 %v4750, %v4846
      %v4879 = vadd.f32 %v4751, %v4847
      %v4880 = vadd.f32 %v4752, %v4848
      %v4881 = vadd.f32 %v4753, %v4849
      %v4882 = vadd.f32 %v4754, %v4850
      %v4883 = vadd.f32 %v4755, %v4851
      %v4884 = vadd.f32 %v4756, %v4852
      %v4885 = vadd.f32 %v4757, %v4853
      %vm4886 = vcmp.ge.f32.partialorder %v4854, 1.0
      %vm4887 = vcmp.ge.f32.partialorder %v4855, 1.0
      %vm4888 = vcmp.ge.f32.partialorder %v4856, 1.0
      %vm4889 = vcmp.ge.f32.partialorder %v4857, 1.0
      %vm4890 = vcmp.ge.f32.partialorder %v4858, 1.0
      %vm4891 = vcmp.ge.f32.partialorder %v4859, 1.0
      %vm4892 = vcmp.ge.f32.partialorder %v4860, 1.0
      %vm4893 = vcmp.ge.f32.partialorder %v4861, 1.0
      %vm4894 = vcmp.ge.f32.partialorder %v4862, 1.0
      %vm4895 = vcmp.ge.f32.partialorder %v4863, 1.0
      %vm4896 = vcmp.ge.f32.partialorder %v4864, 1.0
      %vm4897 = vcmp.ge.f32.partialorder %v4865, 1.0
      %vm4898 = vcmp.ge.f32.partialorder %v4866, 1.0
      %vm4899 = vcmp.ge.f32.partialorder %v4867, 1.0
      %vm4900 = vcmp.ge.f32.partialorder %v4868, 1.0
      %vm4901 = vcmp.ge.f32.partialorder %v4869, 1.0
      %vm4902 = vcmp.ge.f32.partialorder %v4870, 1.0
      %vm4903 = vcmp.ge.f32.partialorder %v4871, 1.0
      %vm4904 = vcmp.ge.f32.partialorder %v4872, 1.0
      %vm4905 = vcmp.ge.f32.partialorder %v4873, 1.0
      %vm4906 = vcmp.ge.f32.partialorder %v4874, 1.0
      %vm4907 = vcmp.ge.f32.partialorder %v4875, 1.0
      %vm4908 = vcmp.ge.f32.partialorder %v4876, 1.0
      %vm4909 = vcmp.ge.f32.partialorder %v4877, 1.0
      %vm4910 = vcmp.ge.f32.partialorder %v4878, 1.0
      %vm4911 = vcmp.ge.f32.partialorder %v4879, 1.0
      %vm4912 = vcmp.ge.f32.partialorder %v4880, 1.0
      %vm4913 = vcmp.ge.f32.partialorder %v4881, 1.0
      %vm4914 = vcmp.ge.f32.partialorder %v4882, 1.0
      %vm4915 = vcmp.ge.f32.partialorder %v4883, 1.0
      %vm4916 = vcmp.ge.f32.partialorder %v4884, 1.0
      %vm4917 = vcmp.ge.f32.partialorder %v4885, 1.0
      %v4918 = vsel %vm4886, 1, 0
      %v4919 = vsel %vm4887, 1, 0
      %v4920 = vsel %vm4888, 1, 0
      %v4921 = vsel %vm4889, 1, 0
      %v4922 = vsel %vm4890, 1, 0
      %v4923 = vsel %vm4891, 1, 0
      %v4924 = vsel %vm4892, 1, 0
      %v4925 = vsel %vm4893, 1, 0
      %v4926 = vsel %vm4894, 1, 0
      %v4927 = vsel %vm4895, 1, 0
      %v4928 = vsel %vm4896, 1, 0
      %v4929 = vsel %vm4897, 1, 0
      %v4930 = vsel %vm4898, 1, 0
      %v4931 = vsel %vm4899, 1, 0
      %v4932 = vsel %vm4900, 1, 0
      %v4933 = vsel %vm4901, 1, 0
      %v4934 = vsel %vm4902, 1, 0
      %v4935 = vsel %vm4903, 1, 0
      %v4936 = vsel %vm4904, 1, 0
      %v4937 = vsel %vm4905, 1, 0
      %v4938 = vsel %vm4906, 1, 0
      %v4939 = vsel %vm4907, 1, 0
      %v4940 = vsel %vm4908, 1, 0
      %v4941 = vsel %vm4909, 1, 0
      %v4942 = vsel %vm4910, 1, 0
      %v4943 = vsel %vm4911, 1, 0
      %v4944 = vsel %vm4912, 1, 0
      %v4945 = vsel %vm4913, 1, 0
      %v4946 = vsel %vm4914, 1, 0
      %v4947 = vsel %vm4915, 1, 0
      %v4948 = vsel %vm4916, 1, 0
      %v4949 = vsel %vm4917, 1, 0
      %v4950 = vcvt.s32.f32 %v4918
      %v4951 = vcvt.s32.f32 %v4919
      %v4952 = vcvt.s32.f32 %v4920
      %v4953 = vcvt.s32.f32 %v4921
      %v4954 = vcvt.s32.f32 %v4922
      %v4955 = vcvt.s32.f32 %v4923
      %v4956 = vcvt.s32.f32 %v4924
      %v4957 = vcvt.s32.f32 %v4925
      %v4958 = vcvt.s32.f32 %v4926
      %v4959 = vcvt.s32.f32 %v4927
      %v4960 = vcvt.s32.f32 %v4928
      %v4961 = vcvt.s32.f32 %v4929
      %v4962 = vcvt.s32.f32 %v4930
      %v4963 = vcvt.s32.f32 %v4931
      %v4964 = vcvt.s32.f32 %v4932
      %v4965 = vcvt.s32.f32 %v4933
      %v4966 = vcvt.s32.f32 %v4934
      %v4967 = vcvt.s32.f32 %v4935
      %v4968 = vcvt.s32.f32 %v4936
      %v4969 = vcvt.s32.f32 %v4937
      %v4970 = vcvt.s32.f32 %v4938
      %v4971 = vcvt.s32.f32 %v4939
      %v4972 = vcvt.s32.f32 %v4940
      %v4973 = vcvt.s32.f32 %v4941
      %v4974 = vcvt.s32.f32 %v4942
      %v4975 = vcvt.s32.f32 %v4943
      %v4976 = vcvt.s32.f32 %v4944
      %v4977 = vcvt.s32.f32 %v4945
      %v4978 = vcvt.s32.f32 %v4946
      %v4979 = vcvt.s32.f32 %v4947
      %v4980 = vcvt.s32.f32 %v4948
      %v4981 = vcvt.s32.f32 %v4949
      %4982 = vst.msk [vmem:[%s278] sm:$0xff] %vm2626, %v4950
      %4983 = vst.msk [vmem:[%s278 + $0x8] sm:$0xff] %vm2626, %v4951
      %4984 = vst.msk [vmem:[%s278 + $0x10] sm:$0xff] %vm2626, %v4952
      %4985 = vst.msk [vmem:[%s278 + $0x18] sm:$0xff] %vm2626, %v4953
      %4986 = vst.msk [vmem:[%s278 + $0x20] sm:$0xff] %vm2626, %v4954
      %4987 = vst.msk [vmem:[%s278 + $0x28] sm:$0xff] %vm2626, %v4955
      %4988 = vst.msk [vmem:[%s278 + $0x30] sm:$0xff] %vm2626, %v4956
      %4989 = vst.msk [vmem:[%s278 + $0x38] sm:$0xff] %vm2626, %v4957
      %4990 = vst.msk [vmem:[%s278 + $0x40] sm:$0xff] %vm2626, %v4958
      %4991 = vst.msk [vmem:[%s278 + $0x48] sm:$0xff] %vm2626, %v4959
      %4992 = vst.msk [vmem:[%s278 + $0x50] sm:$0xff] %vm2626, %v4960
      %4993 = vst.msk [vmem:[%s278 + $0x58] sm:$0xff] %vm2626, %v4961
      %4994 = vst.msk [vmem:[%s278 + $0x60] sm:$0xff] %vm2626, %v4962
      %4995 = vst.msk [vmem:[%s278 + $0x68] sm:$0xff] %vm2626, %v4963
      %4996 = vst.msk [vmem:[%s278 + $0x70] sm:$0xff] %vm2626, %v4964
      %4997 = vst.msk [vmem:[%s278 + $0x78] sm:$0xff] %vm2626, %v4965
      %4998 = vst.msk [vmem:[%s278 + $0x80] sm:$0xff] %vm2626, %v4966
      %4999 = vst.msk [vmem:[%s278 + $0x88] sm:$0xff] %vm2626, %v4967
      %5000 = vst.msk [vmem:[%s278 + $0x90] sm:$0xff] %vm2626, %v4968
      %5001 = vst.msk [vmem:[%s278 + $0x98] sm:$0xff] %vm2626, %v4969
      %5002 = vst.msk [vmem:[%s278 + $0xa0] sm:$0xff] %vm2626, %v4970
      %5003 = vst.msk [vmem:[%s278 + $0xa8] sm:$0xff] %vm2626, %v4971
      %5004 = vst.msk [vmem:[%s278 + $0xb0] sm:$0xff] %vm2626, %v4972
      %5005 = vst.msk [vmem:[%s278 + $0xb8] sm:$0xff] %vm2626, %v4973
      %5006 = vst.msk [vmem:[%s278 + $0xc0] sm:$0xff] %vm2626, %v4974
      %5007 = vst.msk [vmem:[%s278 + $0xc8] sm:$0xff] %vm2626, %v4975
      %5008 = vst.msk [vmem:[%s278 + $0xd0] sm:$0xff] %vm2626, %v4976
      %5009 = vst.msk [vmem:[%s278 + $0xd8] sm:$0xff] %vm2626, %v4977
      %5010 = vst.msk [vmem:[%s278 + $0xe0] sm:$0xff] %vm2626, %v4978
      %5011 = vst.msk [vmem:[%s278 + $0xe8] sm:$0xff] %vm2626, %v4979
      %5012 = vst.msk [vmem:[%s278 + $0xf0] sm:$0xff] %vm2626, %v4980
      %5013 = vst.msk [vmem:[%s278 + $0xf8] sm:$0xff] %vm2626, %v4981
      %p5014 = scmp.lt.s32.totalorder %s18, 1
      %s5015 = scalar_select %p5014, %s18, 1
      %s5016 = smul.addr %s5015, 32
      %s5017 = smul.addr %s5016, 8
      %s5018 = scalar_lea.vmem %s7, %s5017
      // Predicated region
      $region49: #{tpu_custom_call.1} parent=47 // pred_check
        %p5019 = pneg %p188
      $region50: #{tpu_custom_call.1} parent=47 // pred_check_branch
        %5021 = sbr.rel (%p5019) target = $region52
      $region51: #{tpu_custom_call.1} parent=47 // pred_region
        _
      $region52: #{tpu_custom_call.1} parent=47 // pred_fallthru
        _
    $region48: #{tpu_custom_call.1} parent=5 // pred_fallthru
      _
    %p5022 = scmp.le.s32.totalorder 2, %s13
    // Predicated region
    $region53: #{tpu_custom_call.1} parent=5 // pred_check
      %p5023 = pneg %p5022
    $region54: #{tpu_custom_call.1} parent=5 // pred_check_branch
      %5025 = sbr.rel (%p5023) target = $region56
    $region55: #{tpu_custom_call.1} parent=5 // pred_region
      %s5026 = ssub.s32 %s13, 2
      // Predicated region
      $region57: #{tpu_custom_call.1} parent=55 // pred_check
        %p5027 = pneg %p194
      $region58: #{tpu_custom_call.1} parent=55 // pred_check_branch
        %5029 = sbr.rel (%p5027) target = $region60
      $region59: #{tpu_custom_call.1} parent=55 // pred_region
        %p5030 = scmp.lt.s32.totalorder %s19, 1
        %s5031 = scalar_select %p5030, %s19, 1
        %s5032 = smul.addr %s5031, 32
        %s5033 = smul.addr %s5032, 8
        %s5034 = scalar_lea.vmem %s7, %s5033
      $region60: #{tpu_custom_call.1} parent=55 // pred_fallthru
        _
    $region56: #{tpu_custom_call.1} parent=5 // pred_fallthru
      _
  $region6: #{tpu_custom_call.1} parent=0 // loop_footer
    %s17 = sadd.s32 1, %s13
  $region7: #{tpu_custom_call.1} parent=0 // loop_footer_branch
    %12 = sbr.rel target = $region3
  $region8: #{tpu_custom_call.1} parent=0 // loop_exit
    _

</llo_original>
